<compile_context>
chip_gen: v5e
topology: v5e:2x2
jax: 0.10.0
libtpu: 0.0.40
codegen_flags: <defaults>
</compile_context>

<pallas_src>
import functools

import jax
import jax.numpy as jnp
from jax.experimental import pallas as pl
from jax.experimental.pallas import tpu as pltpu

EPS = 1e-5
LANE = 128


def _round_up(x, m):
    return (x + m - 1) // m * m


# ---------------------------------------------------------------------------
# Kernel 1: [optional fused pre-op: previous layer's BN affine + ReLU]
#           -> conv as a single folded-tap MXU matmul
#           -> raw conv output + per-image (sum, sum_sq) partials for this BN.
# Grid: one step per batch image ("parallel").
# ---------------------------------------------------------------------------
def _conv_stage_kernel(x_ref, ab_ref, w_ref, out_ref, stats_ref, xpad_ref, *,
                       kh, kw, stride, pad, ho, wo, apply_pre):
    hin, win, ci = x_ref.shape[1], x_ref.shape[2], x_ref.shape[3]

    x = x_ref[0].astype(jnp.float32)                       # (Hin, Win, Ci)
    if apply_pre:                                          # previous BN + ReLU, fused
        a = ab_ref[0:1, :].reshape(1, 1, ci)
        b = ab_ref[1:2, :].reshape(1, 1, ci)
        x = jnp.maximum(x * a + b, 0.0)

    # Zero-pad spatially into the VMEM scratch.  The halo border is re-zeroed on
    # every grid step, which keeps the "parallel" (megacore) semantics safe.
    if pad > 0:
        xpad_ref[...] = jnp.zeros_like(xpad_ref)
    xpad_ref[pad:pad + hin, pad:pad + win, :] = x

    # Form the KH*KW shifted views from the resident padded tile and fold them into
    # the contraction dim -> ONE big matmul instead of KH*KW tiny-K dots.
    taps = []
    for di in range(kh):
        for dj in range(kw):
            if stride == 1:
                taps.append(xpad_ref[di:di + ho, dj:dj + wo, :])
            else:
                taps.append(xpad_ref[pl.ds(di, ho, stride),
                                     pl.ds(dj, wo, stride), :])
    patches = jnp.concatenate(taps, axis=-1).reshape(ho * wo, kh * kw * ci)

    acc = jnp.dot(patches.astype(jnp.bfloat16), w_ref[...],
                  preferred_element_type=jnp.float32)      # (Ho*Wo, Cp) f32

    out_ref[0] = acc.astype(out_ref.dtype)

    # Single-pass BN statistics (sum and sum of squares), per image / per channel.
    s = jnp.sum(acc, axis=0, keepdims=True)
    sq = jnp.sum(acc * acc, axis=0, keepdims=True)
    stats_ref[0] = jnp.concatenate([s, sq], axis=0)


def _conv_stage(x_nhwc, ab_pre, w_mat, *, kh, kw, stride, pad, apply_pre):
    n, hin, win, ci = x_nhwc.shape
    kdim, cp = w_mat.shape
    assert kdim == kh * kw * ci
    ho = (hin + 2 * pad - kh) // stride + 1
    wo = (win + 2 * pad - kw) // stride + 1

    kernel = functools.partial(_conv_stage_kernel, kh=kh, kw=kw, stride=stride,
                               pad=pad, ho=ho, wo=wo, apply_pre=apply_pre)
    conv_raw, stats = pl.pallas_call(
        kernel,
        out_shape=(jax.ShapeDtypeStruct((n, ho * wo, cp), jnp.bfloat16),
                   jax.ShapeDtypeStruct((n, 2, cp), jnp.float32)),
        grid=(n,),
        in_specs=[
            pl.BlockSpec((1, hin, win, ci), lambda b: (b, 0, 0, 0)),   # image tile
            pl.BlockSpec((2, ci), lambda b: (0, 0)),                   # pre-op affine
            pl.BlockSpec((kdim, cp), lambda b: (0, 0)),                # folded weights
        ],
        out_specs=(
            pl.BlockSpec((1, ho * wo, cp), lambda b: (b, 0, 0)),       # raw conv out
            pl.BlockSpec((1, 2, cp), lambda b: (b, 0, 0)),             # sum / sum_sq
        ),
        scratch_shapes=[pltpu.VMEM((hin + 2 * pad, win + 2 * pad, ci), jnp.float32)],
        compiler_params=pltpu.CompilerParams(
            dimension_semantics=("parallel",),
            vmem_limit_bytes=32 * 1024 * 1024),
    )(x_nhwc, ab_pre, w_mat)
    return conv_raw, stats, ho, wo


# ---------------------------------------------------------------------------
# Tiny cross-image BN reduction (pure JAX; (Cp,) vectors only): folds BatchNorm
# (batch stats, biased variance) + gamma/beta into a per-channel affine (a, b).
# ---------------------------------------------------------------------------
def _bn_affine(stats, gamma_p, beta_p, count):
    s = jnp.sum(stats[:, 0, :], axis=0)
    sq = jnp.sum(stats[:, 1, :], axis=0)
    mean = s / count
    var = jnp.maximum(sq / count - mean * mean, 0.0)       # biased var, guard cancellation
    a = gamma_p * jax.lax.rsqrt(var + EPS)
    b = beta_p - mean * a
    return jnp.stack([a, b], axis=0).astype(jnp.float32)   # (2, Cp)


# ---------------------------------------------------------------------------
# Kernel 2: lane-dense, M-tiled BN-affine + ReLU epilogue (for the final layer).
# ---------------------------------------------------------------------------
def _bn_relu_kernel(y_ref, ab_ref, o_ref):
    y = y_ref[...].astype(jnp.float32)
    o_ref[...] = jnp.maximum(y * ab_ref[0:1, :] + ab_ref[1:2, :], 0.0).astype(o_ref.dtype)


def _pick_tile_m(m):
    for t in (2048, 1024, 512, 256, 128, 64, 32, 16, 8):
        if m % t == 0:
            return t
    return m


def _bn_relu(y2d, ab):
    m, cp = y2d.shape
    tm = _pick_tile_m(m)
    return pl.pallas_call(
        _bn_relu_kernel,
        out_shape=jax.ShapeDtypeStruct((m, cp), jnp.float32),
        grid=(m // tm,),
        in_specs=[pl.BlockSpec((tm, cp), lambda i: (i, 0)),
                  pl.BlockSpec((2, cp), lambda i: (0, 0))],
        out_specs=pl.BlockSpec((tm, cp), lambda i: (i, 0)),
        compiler_params=pltpu.CompilerParams(
            dimension_semantics=("parallel",),
            vmem_limit_bytes=32 * 1024 * 1024),
    )(y2d, ab)


# ---------------------------------------------------------------------------
# Full block: Conv(stride) -> BN -> ReLU -> Conv(1) -> BN -> ReLU
# ---------------------------------------------------------------------------
@functools.partial(jax.jit, static_argnames=("kernel_size", "stride", "padding"))
def basic_conv2d_block(x_nchw, w1, g1, b1, w2, g2, b2, *,
                       kernel_size, stride, padding):
    """Forward of BasicConv2DBlock; input/output in PyTorch NCHW layout (f32)."""
    n, cin, hin, win = x_nchw.shape
    cout = w1.shape[0]
    kh = kw = kernel_size
    cp = _round_up(cout, LANE)                 # lane-dense channel axis

    # NCHW -> NHWC, bf16 activations (f32 accumulation inside the kernels).
    x = jnp.transpose(x_nchw, (0, 2, 3, 1)).astype(jnp.bfloat16)

    # Conv1 weights (Cout, Cin, KH, KW) -> (KH*KW*Cin, Cp), out channels zero-padded.
    w1m = jnp.transpose(w1, (2, 3, 1, 0)).reshape(kh * kw * cin, cout)
    w1m = jnp.pad(w1m, ((0, 0), (0, cp - cout))).astype(jnp.bfloat16)

    # Conv2 weights: zero-pad the in-channel axis to Cp as well.
    w2p = jnp.pad(w2, ((0, 0), (0, cp - cout), (0, 0), (0, 0)))
    w2m = jnp.transpose(w2p, (2, 3, 1, 0)).reshape(kh * kw * cp, cout)
    w2m = jnp.pad(w2m, ((0, 0), (0, cp - cout))).astype(jnp.bfloat16)

    g1p = jnp.pad(g1.astype(jnp.float32), (0, cp - cout))
    b1p = jnp.pad(b1.astype(jnp.float32), (0, cp - cout))
    g2p = jnp.pad(g2.astype(jnp.float32), (0, cp - cout))
    b2p = jnp.pad(b2.astype(jnp.float32), (0, cp - cout))

    # --- Stage 1: conv1 (+ BN1 partial stats) ---------------------------------
    ab_none = jnp.zeros((2, cin), jnp.float32)             # unused (apply_pre=False)
    y1, st1, ho1, wo1 = _conv_stage(x, ab_none, w1m, kh=kh, kw=kw,
                                    stride=stride, pad=padding, apply_pre=False)
    ab1 = _bn_affine(st1, g1p, b1p, n * ho1 * wo1)

    # --- Stage 2: fused BN1+ReLU pre-op, then conv2 (+ BN2 partial stats) -----
    y1 = y1.reshape(n, ho1, wo1, cp)
    y2, st2, ho2, wo2 = _conv_stage(y1, ab1, w2m, kh=kh, kw=kw,
                                    stride=1, pad=padding, apply_pre=True)
    ab2 = _bn_affine(st2, g2p, b2p, n * ho2 * wo2)

    # --- Stage 3: BN2 + ReLU epilogue over lane-dense (M, Cp) tiles -----------
    out = _bn_relu(y2.reshape(n * ho2 * wo2, cp), ab2)
    out = out.reshape(n, ho2, wo2, cp)[:, :, :, :cout]
    return jnp.transpose(out, (0, 3, 1, 2))                # NHWC -> NCHW


# ---------------------------------------------------------------------------
# Pure-JAX reference (bf16-fed convs + f32 batch-stat BN, matching the kernel's
# precision choices so the tolerance below stays tight).
# ---------------------------------------------------------------------------
def _ref_conv_bn_relu(x_nchw, w, g, b, stride, padding):
    y = jax.lax.conv_general_dilated(
        x_nchw.astype(jnp.bfloat16), w.astype(jnp.bfloat16),
        (stride, stride), [(padding, padding)] * 2,
        dimension_numbers=("NCHW", "OIHW", "NCHW"),
        preferred_element_type=jnp.float32)
    mean = y.mean(axis=(0, 2, 3), keepdims=True)
    var = ((y - mean) ** 2).mean(axis=(0, 2, 3), keepdims=True)
    y = (y - mean) * jax.lax.rsqrt(var + EPS) * g.reshape(1, -1, 1, 1) + b.reshape(1, -1, 1, 1)
    return jnp.maximum(y, 0.0)


def _ref_block(x, w1, g1, b1, w2, g2, b2, stride, padding):
    y = _ref_conv_bn_relu(x, w1, g1, b1, stride, padding)
    return _ref_conv_bn_relu(y, w2, g2, b2, 1, padding)


# ---------------------------------------------------------------------------
if __name__ == "__main__":
    # Module config: in_channels=4, out_channels=8, kernel_size=3, stride=1, padding=1.
    N, CIN, H, W = 2, 4, 16, 16
    COUT, K, STRIDE, PAD = 8, 3, 1, 1

    key = jax.random.PRNGKey(0)
    kx, kw1, kw2 = jax.random.split(key, 3)

    x = jax.random.normal(kx, (N, CIN, H, W), jnp.float32)
    w1 = 0.1 * jax.random.normal(kw1, (COUT, CIN, K, K), jnp.float32)
    w2 = 0.1 * jax.random.normal(kw2, (COUT, COUT, K, K), jnp.float32)
    g1 = jnp.linspace(0.5, 1.5, COUT, dtype=jnp.float32)
    b1 = jnp.linspace(-0.1, 0.1, COUT, dtype=jnp.float32)
    g2 = jnp.linspace(1.5, 0.5, COUT, dtype=jnp.float32)
    b2 = jnp.linspace(0.1, -0.1, COUT, dtype=jnp.float32)

    out = basic_conv2d_block(x, w1, g1, b1, w2, g2, b2,
                             kernel_size=K, stride=STRIDE, padding=PAD)
    out = jax.block_until_ready(out)

    ref = _ref_block(x, w1, g1, b1, w2, g2, b2, STRIDE, PAD)
    assert out.shape == (N, COUT, H, W), out.shape
    # bf16 MXU inputs -> compare against the bf16-fed reference at a bf16-appropriate tolerance.
    assert jnp.allclose(out, ref, atol=2e-2, rtol=2e-2), float(jnp.max(jnp.abs(out - ref)))

    print("KERNEL_OK")
</pallas_src>

<mosaic_0001>
module attributes {stable_mosaic.version = 11 : i64} {
  func.func @_conv_stage_kernel(%arg0: i32, %arg1: memref<1x16x16x4xbf16, #tpu.memory_space<vmem>>, %arg2: memref<2x4xf32, #tpu.memory_space<vmem>>, %arg3: memref<36x128xbf16, #tpu.memory_space<vmem>>, %arg4: memref<1x256x128xbf16, #tpu.memory_space<vmem>>, %arg5: memref<1x2x128xf32, #tpu.memory_space<vmem>>, %arg6: memref<18x18x4xf32, #tpu.memory_space<vmem>>) attributes {dimension_semantics = [#tpu.dimension_semantics<parallel>], iteration_bounds = array<i64: 2>, scalar_prefetch = 0 : i64, scratch_operands = 1 : i64, tpu.core_type = #tpu.core_type<tc>, window_params = [{transform_indices = @transform_0, window_bounds = array<i64: 1, 16, 16, 4>}, {pipeline_mode = #tpu.pipeline_mode<synchronous>, transform_indices = @transform_1, window_bounds = array<i64: 2, 4>}, {pipeline_mode = #tpu.pipeline_mode<synchronous>, transform_indices = @transform_2, window_bounds = array<i64: 36, 128>}, {transform_indices = @transform_3, window_bounds = array<i64: 1, 256, 128>}, {transform_indices = @transform_4, window_bounds = array<i64: 1, 2, 128>}]} {
    %c0 = arith.constant 0 : index
    %c0_0 = arith.constant 0 : index
    %c0_1 = arith.constant 0 : index
    %c0_2 = arith.constant 0 : index
    %0 = vector.load %arg1[%c0, %c0_0, %c0_1, %c0_2] : memref<1x16x16x4xbf16, #tpu.memory_space<vmem>>, vector<1x16x16x4xbf16>
    %1 = vector.shape_cast %0 : vector<1x16x16x4xbf16> to vector<16x16x4xbf16>
    %2 = arith.extf %1 : vector<16x16x4xbf16> to vector<16x16x4xf32>
    %cst = arith.constant 0.000000e+00 : f32
    %3 = vector.broadcast %cst : f32 to vector<18x18x4xf32>
    %c0_3 = arith.constant 0 : index
    %c0_4 = arith.constant 0 : index
    %c0_5 = arith.constant 0 : index
    %4 = vector.load %arg6[%c0_3, %c0_4, %c0_5] : memref<18x18x4xf32, #tpu.memory_space<vmem>>, vector<18x18x4xf32>
    tpu.vector_store %arg6[%c0_3, %c0_4, %c0_5], %3 {strides = array<i32>} : memref<18x18x4xf32, #tpu.memory_space<vmem>>, vector<18x18x4xf32>,
    %c1 = arith.constant 1 : index
    %c1_6 = arith.constant 1 : index
    %c0_7 = arith.constant 0 : index
    %5 = vector.load %arg6[%c1, %c1_6, %c0_7] : memref<18x18x4xf32, #tpu.memory_space<vmem>>, vector<16x16x4xf32>
    tpu.vector_store %arg6[%c1, %c1_6, %c0_7], %2 {strides = array<i32>} : memref<18x18x4xf32, #tpu.memory_space<vmem>>, vector<16x16x4xf32>,
    %c0_8 = arith.constant 0 : index
    %c0_9 = arith.constant 0 : index
    %c0_10 = arith.constant 0 : index
    %6 = vector.load %arg6[%c0_8, %c0_9, %c0_10] : memref<18x18x4xf32, #tpu.memory_space<vmem>>, vector<16x16x4xf32>
    %c0_11 = arith.constant 0 : index
    %c1_12 = arith.constant 1 : index
    %c0_13 = arith.constant 0 : index
    %7 = vector.load %arg6[%c0_11, %c1_12, %c0_13] : memref<18x18x4xf32, #tpu.memory_space<vmem>>, vector<16x16x4xf32>
    %c0_14 = arith.constant 0 : index
    %c2 = arith.constant 2 : index
    %c0_15 = arith.constant 0 : index
    %8 = vector.load %arg6[%c0_14, %c2, %c0_15] : memref<18x18x4xf32, #tpu.memory_space<vmem>>, vector<16x16x4xf32>
    %c1_16 = arith.constant 1 : index
    %c0_17 = arith.constant 0 : index
    %c0_18 = arith.constant 0 : index
    %9 = vector.load %arg6[%c1_16, %c0_17, %c0_18] : memref<18x18x4xf32, #tpu.memory_space<vmem>>, vector<16x16x4xf32>
    %c1_19 = arith.constant 1 : index
    %c1_20 = arith.constant 1 : index
    %c0_21 = arith.constant 0 : index
    %10 = vector.load %arg6[%c1_19, %c1_20, %c0_21] : memref<18x18x4xf32, #tpu.memory_space<vmem>>, vector<16x16x4xf32>
    %c1_22 = arith.constant 1 : index
    %c2_23 = arith.constant 2 : index
    %c0_24 = arith.constant 0 : index
    %11 = vector.load %arg6[%c1_22, %c2_23, %c0_24] : memref<18x18x4xf32, #tpu.memory_space<vmem>>, vector<16x16x4xf32>
    %c2_25 = arith.constant 2 : index
    %c0_26 = arith.constant 0 : index
    %c0_27 = arith.constant 0 : index
    %12 = vector.load %arg6[%c2_25, %c0_26, %c0_27] : memref<18x18x4xf32, #tpu.memory_space<vmem>>, vector<16x16x4xf32>
    %c2_28 = arith.constant 2 : index
    %c1_29 = arith.constant 1 : index
    %c0_30 = arith.constant 0 : index
    %13 = vector.load %arg6[%c2_28, %c1_29, %c0_30] : memref<18x18x4xf32, #tpu.memory_space<vmem>>, vector<16x16x4xf32>
    %c2_31 = arith.constant 2 : index
    %c2_32 = arith.constant 2 : index
    %c0_33 = arith.constant 0 : index
    %14 = vector.load %arg6[%c2_31, %c2_32, %c0_33] : memref<18x18x4xf32, #tpu.memory_space<vmem>>, vector<16x16x4xf32>
    %15 = tpu.concatenate %6, %7, %8, %9, %10, %11, %12, %13, %14 in 2 : vector<16x16x4xf32>, vector<16x16x4xf32>, vector<16x16x4xf32>, vector<16x16x4xf32>, vector<16x16x4xf32>, vector<16x16x4xf32>, vector<16x16x4xf32>, vector<16x16x4xf32>, vector<16x16x4xf32> -> vector<16x16x36xf32>
    %16 = vector.shape_cast %15 : vector<16x16x36xf32> to vector<256x36xf32>
    %17 = arith.truncf %16 : vector<256x36xf32> to vector<256x36xbf16>
    %c0_34 = arith.constant 0 : index
    %c0_35 = arith.constant 0 : index
    %18 = vector.load %arg3[%c0_34, %c0_35] : memref<36x128xbf16, #tpu.memory_space<vmem>>, vector<36x128xbf16>
    %cst_36 = arith.constant dense<0.000000e+00> : vector<256x128xf32>
    %19 = tpu.matmul %17, %18, %cst_36 {dimension_numbers = #tpu.dot_dimension_numbers<[1], [0], [0], [1], [0, 0, 1, 1], [], []>} : vector<256x36xbf16>, vector<36x128xbf16>, vector<256x128xf32> -> vector<256x128xf32>
    %20 = arith.truncf %19 : vector<256x128xf32> to vector<256x128xbf16>
    %c0_37 = arith.constant 0 : index
    %c0_38 = arith.constant 0 : index
    %c0_39 = arith.constant 0 : index
    %21 = vector.load %arg4[%c0_37, %c0_38, %c0_39] : memref<1x256x128xbf16, #tpu.memory_space<vmem>>, vector<1x256x128xbf16>
    %22 = vector.shape_cast %21 : vector<1x256x128xbf16> to vector<256x128xbf16>
    %23 = vector.shape_cast %20 : vector<256x128xbf16> to vector<1x256x128xbf16>
    tpu.vector_store %arg4[%c0_37, %c0_38, %c0_39], %23 {strides = array<i32>} : memref<1x256x128xbf16, #tpu.memory_space<vmem>>, vector<1x256x128xbf16>,
    %cst_40 = arith.constant dense<0.000000e+00> : vector<128xf32>
    %24 = vector.multi_reduction <add>, %19, %cst_40 [0] : vector<256x128xf32> to vector<128xf32>
    %25 = vector.shape_cast %24 : vector<128xf32> to vector<1x128xf32>
    %26 = arith.mulf %19, %19 : vector<256x128xf32>
    %cst_41 = arith.constant dense<0.000000e+00> : vector<128xf32>
    %27 = vector.multi_reduction <add>, %26, %cst_41 [0] : vector<256x128xf32> to vector<128xf32>
    %28 = vector.shape_cast %27 : vector<128xf32> to vector<1x128xf32>
    %29 = tpu.concatenate %25, %28 in 0 : vector<1x128xf32>, vector<1x128xf32> -> vector<2x128xf32>
    %c0_42 = arith.constant 0 : index
    %c0_43 = arith.constant 0 : index
    %c0_44 = arith.constant 0 : index
    %30 = vector.load %arg5[%c0_42, %c0_43, %c0_44] : memref<1x2x128xf32, #tpu.memory_space<vmem>>, vector<1x2x128xf32>
    %31 = vector.shape_cast %30 : vector<1x2x128xf32> to vector<2x128xf32>
    %32 = vector.shape_cast %29 : vector<2x128xf32> to vector<1x2x128xf32>
    tpu.vector_store %arg5[%c0_42, %c0_43, %c0_44], %32 {strides = array<i32>} : memref<1x2x128xf32, #tpu.memory_space<vmem>>, vector<1x2x128xf32>,
    return
  }
  func.func @transform_0(%arg0: i32) -> (i32, i32, i32, i32) {
    %c0_i32 = arith.constant 0 : i32
    %c0_i32_0 = arith.constant 0 : i32
    %c0_i32_1 = arith.constant 0 : i32
    %c0_i32_2 = arith.constant 0 : i32
    return %arg0, %c0_i32, %c0_i32_0, %c0_i32_1 : i32, i32, i32, i32
  }
  func.func @transform_1(%arg0: i32) -> (i32, i32) {
    %c0_i32 = arith.constant 0 : i32
    %c0_i32_0 = arith.constant 0 : i32
    %c0_i32_1 = arith.constant 0 : i32
    return %c0_i32, %c0_i32_0 : i32, i32
  }
  func.func @transform_2(%arg0: i32) -> (i32, i32) {
    %c0_i32 = arith.constant 0 : i32
    %c0_i32_0 = arith.constant 0 : i32
    %c0_i32_1 = arith.constant 0 : i32
    return %c0_i32, %c0_i32_0 : i32, i32
  }
  func.func @transform_3(%arg0: i32) -> (i32, i32, i32) {
    %c0_i32 = arith.constant 0 : i32
    %c0_i32_0 = arith.constant 0 : i32
    %c0_i32_1 = arith.constant 0 : i32
    return %arg0, %c0_i32, %c0_i32_0 : i32, i32, i32
  }
  func.func @transform_4(%arg0: i32) -> (i32, i32, i32) {
    %c0_i32 = arith.constant 0 : i32
    %c0_i32_0 = arith.constant 0 : i32
    %c0_i32_1 = arith.constant 0 : i32
    return %arg0, %c0_i32, %c0_i32_0 : i32, i32, i32
  }
}

module attributes {stable_mosaic.version = 11 : i64} {
  func.func @_conv_stage_kernel(%arg0: i32, %arg1: memref<1x16x16x128xbf16, #tpu.memory_space<vmem>>, %arg2: memref<2x128xf32, #tpu.memory_space<vmem>>, %arg3: memref<1152x128xbf16, #tpu.memory_space<vmem>>, %arg4: memref<1x256x128xbf16, #tpu.memory_space<vmem>>, %arg5: memref<1x2x128xf32, #tpu.memory_space<vmem>>, %arg6: memref<18x18x128xf32, #tpu.memory_space<vmem>>) attributes {dimension_semantics = [#tpu.dimension_semantics<parallel>], iteration_bounds = array<i64: 2>, scalar_prefetch = 0 : i64, scratch_operands = 1 : i64, tpu.core_type = #tpu.core_type<tc>, window_params = [{transform_indices = @transform_0, window_bounds = array<i64: 1, 16, 16, 128>}, {pipeline_mode = #tpu.pipeline_mode<synchronous>, transform_indices = @transform_1, window_bounds = array<i64: 2, 128>}, {pipeline_mode = #tpu.pipeline_mode<synchronous>, transform_indices = @transform_2, window_bounds = array<i64: 1152, 128>}, {transform_indices = @transform_3, window_bounds = array<i64: 1, 256, 128>}, {transform_indices = @transform_4, window_bounds = array<i64: 1, 2, 128>}]} {
    %c0 = arith.constant 0 : index
    %c0_0 = arith.constant 0 : index
    %c0_1 = arith.constant 0 : index
    %c0_2 = arith.constant 0 : index
    %0 = vector.load %arg1[%c0, %c0_0, %c0_1, %c0_2] : memref<1x16x16x128xbf16, #tpu.memory_space<vmem>>, vector<1x16x16x128xbf16>
    %1 = vector.shape_cast %0 : vector<1x16x16x128xbf16> to vector<16x16x128xbf16>
    %2 = arith.extf %1 : vector<16x16x128xbf16> to vector<16x16x128xf32>
    %c0_3 = arith.constant 0 : index
    %c0_4 = arith.constant 0 : index
    %3 = vector.load %arg2[%c0_3, %c0_4] : memref<2x128xf32, #tpu.memory_space<vmem>>, vector<1x128xf32>
    %4 = vector.shape_cast %3 : vector<1x128xf32> to vector<1x1x128xf32>
    %c1 = arith.constant 1 : index
    %c0_5 = arith.constant 0 : index
    %5 = vector.load %arg2[%c1, %c0_5] : memref<2x128xf32, #tpu.memory_space<vmem>>, vector<1x128xf32>
    %6 = vector.shape_cast %5 : vector<1x128xf32> to vector<1x1x128xf32>
    %7 = vector.broadcast %4 : vector<1x1x128xf32> to vector<16x16x128xf32>
    %8 = arith.mulf %2, %7 : vector<16x16x128xf32>
    %9 = vector.broadcast %6 : vector<1x1x128xf32> to vector<16x16x128xf32>
    %10 = arith.addf %8, %9 : vector<16x16x128xf32>
    %cst = arith.constant 0.000000e+00 : f32
    %11 = vector.broadcast %cst : f32 to vector<16x16x128xf32>
    %12 = arith.maximumf %10, %11 : vector<16x16x128xf32>
    %cst_6 = arith.constant 0.000000e+00 : f32
    %13 = vector.broadcast %cst_6 : f32 to vector<18x18x128xf32>
    %c0_7 = arith.constant 0 : index
    %c0_8 = arith.constant 0 : index
    %c0_9 = arith.constant 0 : index
    %14 = vector.load %arg6[%c0_7, %c0_8, %c0_9] : memref<18x18x128xf32, #tpu.memory_space<vmem>>, vector<18x18x128xf32>
    tpu.vector_store %arg6[%c0_7, %c0_8, %c0_9], %13 {strides = array<i32>} : memref<18x18x128xf32, #tpu.memory_space<vmem>>, vector<18x18x128xf32>,
    %c1_10 = arith.constant 1 : index
    %c1_11 = arith.constant 1 : index
    %c0_12 = arith.constant 0 : index
    %15 = vector.load %arg6[%c1_10, %c1_11, %c0_12] : memref<18x18x128xf32, #tpu.memory_space<vmem>>, vector<16x16x128xf32>
    tpu.vector_store %arg6[%c1_10, %c1_11, %c0_12], %12 {strides = array<i32>} : memref<18x18x128xf32, #tpu.memory_space<vmem>>, vector<16x16x128xf32>,
    %c0_13 = arith.constant 0 : index
    %c0_14 = arith.constant 0 : index
    %c0_15 = arith.constant 0 : index
    %16 = vector.load %arg6[%c0_13, %c0_14, %c0_15] : memref<18x18x128xf32, #tpu.memory_space<vmem>>, vector<16x16x128xf32>
    %c0_16 = arith.constant 0 : index
    %c1_17 = arith.constant 1 : index
    %c0_18 = arith.constant 0 : index
    %17 = vector.load %arg6[%c0_16, %c1_17, %c0_18] : memref<18x18x128xf32, #tpu.memory_space<vmem>>, vector<16x16x128xf32>
    %c0_19 = arith.constant 0 : index
    %c2 = arith.constant 2 : index
    %c0_20 = arith.constant 0 : index
    %18 = vector.load %arg6[%c0_19, %c2, %c0_20] : memref<18x18x128xf32, #tpu.memory_space<vmem>>, vector<16x16x128xf32>
    %c1_21 = arith.constant 1 : index
    %c0_22 = arith.constant 0 : index
    %c0_23 = arith.constant 0 : index
    %19 = vector.load %arg6[%c1_21, %c0_22, %c0_23] : memref<18x18x128xf32, #tpu.memory_space<vmem>>, vector<16x16x128xf32>
    %c1_24 = arith.constant 1 : index
    %c1_25 = arith.constant 1 : index
    %c0_26 = arith.constant 0 : index
    %20 = vector.load %arg6[%c1_24, %c1_25, %c0_26] : memref<18x18x128xf32, #tpu.memory_space<vmem>>, vector<16x16x128xf32>
    %c1_27 = arith.constant 1 : index
    %c2_28 = arith.constant 2 : index
    %c0_29 = arith.constant 0 : index
    %21 = vector.load %arg6[%c1_27, %c2_28, %c0_29] : memref<18x18x128xf32, #tpu.memory_space<vmem>>, vector<16x16x128xf32>
    %c2_30 = arith.constant 2 : index
    %c0_31 = arith.constant 0 : index
    %c0_32 = arith.constant 0 : index
    %22 = vector.load %arg6[%c2_30, %c0_31, %c0_32] : memref<18x18x128xf32, #tpu.memory_space<vmem>>, vector<16x16x128xf32>
    %c2_33 = arith.constant 2 : index
    %c1_34 = arith.constant 1 : index
    %c0_35 = arith.constant 0 : index
    %23 = vector.load %arg6[%c2_33, %c1_34, %c0_35] : memref<18x18x128xf32, #tpu.memory_space<vmem>>, vector<16x16x128xf32>
    %c2_36 = arith.constant 2 : index
    %c2_37 = arith.constant 2 : index
    %c0_38 = arith.constant 0 : index
    %24 = vector.load %arg6[%c2_36, %c2_37, %c0_38] : memref<18x18x128xf32, #tpu.memory_space<vmem>>, vector<16x16x128xf32>
    %25 = tpu.concatenate %16, %17, %18, %19, %20, %21, %22, %23, %24 in 2 : vector<16x16x128xf32>, vector<16x16x128xf32>, vector<16x16x128xf32>, vector<16x16x128xf32>, vector<16x16x128xf32>, vector<16x16x128xf32>, vector<16x16x128xf32>, vector<16x16x128xf32>, vector<16x16x128xf32> -> vector<16x16x1152xf32>
    %26 = vector.shape_cast %25 : vector<16x16x1152xf32> to vector<256x1152xf32>
    %27 = arith.truncf %26 : vector<256x1152xf32> to vector<256x1152xbf16>
    %c0_39 = arith.constant 0 : index
    %c0_40 = arith.constant 0 : index
    %28 = vector.load %arg3[%c0_39, %c0_40] : memref<1152x128xbf16, #tpu.memory_space<vmem>>, vector<1152x128xbf16>
    %cst_41 = arith.constant dense<0.000000e+00> : vector<256x128xf32>
    %29 = tpu.matmul %27, %28, %cst_41 {dimension_numbers = #tpu.dot_dimension_numbers<[1], [0], [0], [1], [0, 0, 1, 1], [], []>} : vector<256x1152xbf16>, vector<1152x128xbf16>, vector<256x128xf32> -> vector<256x128xf32>
    %30 = arith.truncf %29 : vector<256x128xf32> to vector<256x128xbf16>
    %c0_42 = arith.constant 0 : index
    %c0_43 = arith.constant 0 : index
    %c0_44 = arith.constant 0 : index
    %31 = vector.load %arg4[%c0_42, %c0_43, %c0_44] : memref<1x256x128xbf16, #tpu.memory_space<vmem>>, vector<1x256x128xbf16>
    %32 = vector.shape_cast %31 : vector<1x256x128xbf16> to vector<256x128xbf16>
    %33 = vector.shape_cast %30 : vector<256x128xbf16> to vector<1x256x128xbf16>
    tpu.vector_store %arg4[%c0_42, %c0_43, %c0_44], %33 {strides = array<i32>} : memref<1x256x128xbf16, #tpu.memory_space<vmem>>, vector<1x256x128xbf16>,
    %cst_45 = arith.constant dense<0.000000e+00> : vector<128xf32>
    %34 = vector.multi_reduction <add>, %29, %cst_45 [0] : vector<256x128xf32> to vector<128xf32>
    %35 = vector.shape_cast %34 : vector<128xf32> to vector<1x128xf32>
    %36 = arith.mulf %29, %29 : vector<256x128xf32>
    %cst_46 = arith.constant dense<0.000000e+00> : vector<128xf32>
    %37 = vector.multi_reduction <add>, %36, %cst_46 [0] : vector<256x128xf32> to vector<128xf32>
    %38 = vector.shape_cast %37 : vector<128xf32> to vector<1x128xf32>
    %39 = tpu.concatenate %35, %38 in 0 : vector<1x128xf32>, vector<1x128xf32> -> vector<2x128xf32>
    %c0_47 = arith.constant 0 : index
    %c0_48 = arith.constant 0 : index
    %c0_49 = arith.constant 0 : index
    %40 = vector.load %arg5[%c0_47, %c0_48, %c0_49] : memref<1x2x128xf32, #tpu.memory_space<vmem>>, vector<1x2x128xf32>
    %41 = vector.shape_cast %40 : vector<1x2x128xf32> to vector<2x128xf32>
    %42 = vector.shape_cast %39 : vector<2x128xf32> to vector<1x2x128xf32>
    tpu.vector_store %arg5[%c0_47, %c0_48, %c0_49], %42 {strides = array<i32>} : memref<1x2x128xf32, #tpu.memory_space<vmem>>, vector<1x2x128xf32>,
    return
  }
  func.func @transform_0(%arg0: i32) -> (i32, i32, i32, i32) {
    %c0_i32 = arith.constant 0 : i32
    %c0_i32_0 = arith.constant 0 : i32
    %c0_i32_1 = arith.constant 0 : i32
    %c0_i32_2 = arith.constant 0 : i32
    return %arg0, %c0_i32, %c0_i32_0, %c0_i32_1 : i32, i32, i32, i32
  }
  func.func @transform_1(%arg0: i32) -> (i32, i32) {
    %c0_i32 = arith.constant 0 : i32
    %c0_i32_0 = arith.constant 0 : i32
    %c0_i32_1 = arith.constant 0 : i32
    return %c0_i32, %c0_i32_0 : i32, i32
  }
  func.func @transform_2(%arg0: i32) -> (i32, i32) {
    %c0_i32 = arith.constant 0 : i32
    %c0_i32_0 = arith.constant 0 : i32
    %c0_i32_1 = arith.constant 0 : i32
    return %c0_i32, %c0_i32_0 : i32, i32
  }
  func.func @transform_3(%arg0: i32) -> (i32, i32, i32) {
    %c0_i32 = arith.constant 0 : i32
    %c0_i32_0 = arith.constant 0 : i32
    %c0_i32_1 = arith.constant 0 : i32
    return %arg0, %c0_i32, %c0_i32_0 : i32, i32, i32
  }
  func.func @transform_4(%arg0: i32) -> (i32, i32, i32) {
    %c0_i32 = arith.constant 0 : i32
    %c0_i32_0 = arith.constant 0 : i32
    %c0_i32_1 = arith.constant 0 : i32
    return %arg0, %c0_i32, %c0_i32_0 : i32, i32, i32
  }
}

module attributes {stable_mosaic.version = 11 : i64} {
  func.func @_bn_relu_kernel(%arg0: i32, %arg1: memref<512x128xbf16, #tpu.memory_space<vmem>>, %arg2: memref<2x128xf32, #tpu.memory_space<vmem>>, %arg3: memref<512x128xf32, #tpu.memory_space<vmem>>) attributes {dimension_semantics = [#tpu.dimension_semantics<parallel>], iteration_bounds = array<i64: 1>, scalar_prefetch = 0 : i64, scratch_operands = 0 : i64, tpu.core_type = #tpu.core_type<tc>, window_params = [{transform_indices = @transform_0, window_bounds = array<i64: 512, 128>}, {pipeline_mode = #tpu.pipeline_mode<synchronous>, transform_indices = @transform_1, window_bounds = array<i64: 2, 128>}, {transform_indices = @transform_2, window_bounds = array<i64: 512, 128>}]} {
    %c0 = arith.constant 0 : index
    %c0_0 = arith.constant 0 : index
    %0 = vector.load %arg1[%c0, %c0_0] : memref<512x128xbf16, #tpu.memory_space<vmem>>, vector<512x128xbf16>
    %1 = arith.extf %0 : vector<512x128xbf16> to vector<512x128xf32>
    %c0_1 = arith.constant 0 : index
    %c0_2 = arith.constant 0 : index
    %2 = vector.load %arg2[%c0_1, %c0_2] : memref<2x128xf32, #tpu.memory_space<vmem>>, vector<1x128xf32>
    %3 = vector.broadcast %2 : vector<1x128xf32> to vector<512x128xf32>
    %4 = arith.mulf %1, %3 : vector<512x128xf32>
    %c1 = arith.constant 1 : index
    %c0_3 = arith.constant 0 : index
    %5 = vector.load %arg2[%c1, %c0_3] : memref<2x128xf32, #tpu.memory_space<vmem>>, vector<1x128xf32>
    %6 = vector.broadcast %5 : vector<1x128xf32> to vector<512x128xf32>
    %7 = arith.addf %4, %6 : vector<512x128xf32>
    %cst = arith.constant 0.000000e+00 : f32
    %8 = vector.broadcast %cst : f32 to vector<512x128xf32>
    %9 = arith.maximumf %7, %8 : vector<512x128xf32>
    %c0_4 = arith.constant 0 : index
    %c0_5 = arith.constant 0 : index
    %10 = vector.load %arg3[%c0_4, %c0_5] : memref<512x128xf32, #tpu.memory_space<vmem>>, vector<512x128xf32>
    tpu.vector_store %arg3[%c0_4, %c0_5], %9 {strides = array<i32>} : memref<512x128xf32, #tpu.memory_space<vmem>>, vector<512x128xf32>,
    return
  }
  func.func @transform_0(%arg0: i32) -> (i32, i32) {
    %c0_i32 = arith.constant 0 : i32
    %c0_i32_0 = arith.constant 0 : i32
    return %arg0, %c0_i32 : i32, i32
  }
  func.func @transform_1(%arg0: i32) -> (i32, i32) {
    %c0_i32 = arith.constant 0 : i32
    %c0_i32_0 = arith.constant 0 : i32
    %c0_i32_1 = arith.constant 0 : i32
    return %c0_i32, %c0_i32_0 : i32, i32
  }
  func.func @transform_2(%arg0: i32) -> (i32, i32) {
    %c0_i32 = arith.constant 0 : i32
    %c0_i32_0 = arith.constant 0 : i32
    return %arg0, %c0_i32 : i32, i32
  }
}

</mosaic_0001>

<llo_original>
// kernel: basic_conv2d_block.5
$region0: #{basic_conv2d_block.5}
  #allocation0 [shape = 'u32[]', space=smem, size = 0x4, offset = 0x4, fixed_abs, tag = 'smem constant byte address 0x4 - core index']
  #allocation1 [shape = 'u32[72,128]{1,0:T(1,128)}', space=vmem, size = 0x9000, scoped, tag = 'internal scratch']
  %s0 = inlined_call_operand.vmem [shape: bf16[512,128], index: 0, kind: input, shape index: {}]
  %s1 = inlined_call_operand.vmem [shape: f32[2,128], index: 1, kind: input, shape index: {}]
  %s2 = inlined_call_operand.vmem [shape: f32[512,128], index: 2, kind: output, shape index: {}]
  %s3 = sld [smem:[#allocation0]]
  $region18: #{basic_conv2d_block.5} parent=0
    _
  %s5 = ssub.s32 1, %s3
  %s6 = scalar_select 0, %s5, %s3
  // Predicated region
  $region2: #{basic_conv2d_block.5} parent=0 // pred_check
    _
  $region3: #{basic_conv2d_block.5} parent=0 // pred_check_branch
    %8 = sbr.rel (0) target = $region5
  $region4: #{basic_conv2d_block.5} parent=0 // pred_region
    _
  $region5: #{basic_conv2d_block.5} parent=0 // pred_fallthru
    _
  // Predicated region
  $region6: #{basic_conv2d_block.5} parent=0 // pred_check
    _
  $region7: #{basic_conv2d_block.5} parent=0 // pred_check_branch
    %10 = sbr.rel (0) target = $region9
  $region8: #{basic_conv2d_block.5} parent=0 // pred_region
    _
  $region9: #{basic_conv2d_block.5} parent=0 // pred_fallthru
    _
  %v11 = vld [vmem:[%s0] sm:$0xf]
  %v12 = vld [vmem:[%s0 + $0x4] sm:$0xf]
  %v13 = vld [vmem:[%s0 + $0x8] sm:$0xf]
  %v14 = vld [vmem:[%s0 + $0xc] sm:$0xf]
  %v15 = vld [vmem:[%s0 + $0x10] sm:$0xf]
  %v16 = vld [vmem:[%s0 + $0x14] sm:$0xf]
  %v17 = vld [vmem:[%s0 + $0x18] sm:$0xf]
  %v18 = vld [vmem:[%s0 + $0x1c] sm:$0xf]
  %v19 = vld [vmem:[%s0 + $0x20] sm:$0xf]
  %v20 = vld [vmem:[%s0 + $0x24] sm:$0xf]
  %v21 = vld [vmem:[%s0 + $0x28] sm:$0xf]
  %v22 = vld [vmem:[%s0 + $0x2c] sm:$0xf]
  %v23 = vld [vmem:[%s0 + $0x30] sm:$0xf]
  %v24 = vld [vmem:[%s0 + $0x34] sm:$0xf]
  %v25 = vld [vmem:[%s0 + $0x38] sm:$0xf]
  %v26 = vld [vmem:[%s0 + $0x3c] sm:$0xf]
  %v27 = vld [vmem:[%s0 + $0x40] sm:$0xf]
  %v28 = vld [vmem:[%s0 + $0x44] sm:$0xf]
  %v29 = vld [vmem:[%s0 + $0x48] sm:$0xf]
  %v30 = vld [vmem:[%s0 + $0x4c] sm:$0xf]
  %v31 = vld [vmem:[%s0 + $0x50] sm:$0xf]
  %v32 = vld [vmem:[%s0 + $0x54] sm:$0xf]
  %v33 = vld [vmem:[%s0 + $0x58] sm:$0xf]
  %v34 = vld [vmem:[%s0 + $0x5c] sm:$0xf]
  %v35 = vld [vmem:[%s0 + $0x60] sm:$0xf]
  %v36 = vld [vmem:[%s0 + $0x64] sm:$0xf]
  %v37 = vld [vmem:[%s0 + $0x68] sm:$0xf]
  %v38 = vld [vmem:[%s0 + $0x6c] sm:$0xf]
  %v39 = vld [vmem:[%s0 + $0x70] sm:$0xf]
  %v40 = vld [vmem:[%s0 + $0x74] sm:$0xf]
  %v41 = vld [vmem:[%s0 + $0x78] sm:$0xf]
  %v42 = vld [vmem:[%s0 + $0x7c] sm:$0xf]
  %v43 = vld [vmem:[%s0 + $0x80] sm:$0xf]
  %v44 = vld [vmem:[%s0 + $0x84] sm:$0xf]
  %v45 = vld [vmem:[%s0 + $0x88] sm:$0xf]
  %v46 = vld [vmem:[%s0 + $0x8c] sm:$0xf]
  %v47 = vld [vmem:[%s0 + $0x90] sm:$0xf]
  %v48 = vld [vmem:[%s0 + $0x94] sm:$0xf]
  %v49 = vld [vmem:[%s0 + $0x98] sm:$0xf]
  %v50 = vld [vmem:[%s0 + $0x9c] sm:$0xf]
  %v51 = vld [vmem:[%s0 + $0xa0] sm:$0xf]
  %v52 = vld [vmem:[%s0 + $0xa4] sm:$0xf]
  %v53 = vld [vmem:[%s0 + $0xa8] sm:$0xf]
  %v54 = vld [vmem:[%s0 + $0xac] sm:$0xf]
  %v55 = vld [vmem:[%s0 + $0xb0] sm:$0xf]
  %v56 = vld [vmem:[%s0 + $0xb4] sm:$0xf]
  %v57 = vld [vmem:[%s0 + $0xb8] sm:$0xf]
  %v58 = vld [vmem:[%s0 + $0xbc] sm:$0xf]
  %v59 = vld [vmem:[%s0 + $0xc0] sm:$0xf]
  %v60 = vld [vmem:[%s0 + $0xc4] sm:$0xf]
  %v61 = vld [vmem:[%s0 + $0xc8] sm:$0xf]
  %v62 = vld [vmem:[%s0 + $0xcc] sm:$0xf]
  %v63 = vld [vmem:[%s0 + $0xd0] sm:$0xf]
  %v64 = vld [vmem:[%s0 + $0xd4] sm:$0xf]
  %v65 = vld [vmem:[%s0 + $0xd8] sm:$0xf]
  %v66 = vld [vmem:[%s0 + $0xdc] sm:$0xf]
  %v67 = vld [vmem:[%s0 + $0xe0] sm:$0xf]
  %v68 = vld [vmem:[%s0 + $0xe4] sm:$0xf]
  %v69 = vld [vmem:[%s0 + $0xe8] sm:$0xf]
  %v70 = vld [vmem:[%s0 + $0xec] sm:$0xf]
  %v71 = vld [vmem:[%s0 + $0xf0] sm:$0xf]
  %v72 = vld [vmem:[%s0 + $0xf4] sm:$0xf]
  %v73 = vld [vmem:[%s0 + $0xf8] sm:$0xf]
  %v74 = vld [vmem:[%s0 + $0xfc] sm:$0xf]
  %v75 = vunpack.c.l.bf16 %v11
  %v76 = vunpack.c.l.bf16 %v12
  %v77 = vunpack.c.l.bf16 %v13
  %v78 = vunpack.c.l.bf16 %v14
  %v79 = vunpack.c.l.bf16 %v15
  %v80 = vunpack.c.l.bf16 %v16
  %v81 = vunpack.c.l.bf16 %v17
  %v82 = vunpack.c.l.bf16 %v18
  %v83 = vunpack.c.l.bf16 %v19
  %v84 = vunpack.c.l.bf16 %v20
  %v85 = vunpack.c.l.bf16 %v21
  %v86 = vunpack.c.l.bf16 %v22
  %v87 = vunpack.c.l.bf16 %v23
  %v88 = vunpack.c.l.bf16 %v24
  %v89 = vunpack.c.l.bf16 %v25
  %v90 = vunpack.c.l.bf16 %v26
  %v91 = vunpack.c.l.bf16 %v27
  %v92 = vunpack.c.l.bf16 %v28
  %v93 = vunpack.c.l.bf16 %v29
  %v94 = vunpack.c.l.bf16 %v30
  %v95 = vunpack.c.l.bf16 %v31
  %v96 = vunpack.c.l.bf16 %v32
  %v97 = vunpack.c.l.bf16 %v33
  %v98 = vunpack.c.l.bf16 %v34
  %v99 = vunpack.c.l.bf16 %v35
  %v100 = vunpack.c.l.bf16 %v36
  %v101 = vunpack.c.l.bf16 %v37
  %v102 = vunpack.c.l.bf16 %v38
  %v103 = vunpack.c.l.bf16 %v39
  %v104 = vunpack.c.l.bf16 %v40
  %v105 = vunpack.c.l.bf16 %v41
  %v106 = vunpack.c.l.bf16 %v42
  %v107 = vunpack.c.l.bf16 %v43
  %v108 = vunpack.c.l.bf16 %v44
  %v109 = vunpack.c.l.bf16 %v45
  %v110 = vunpack.c.l.bf16 %v46
  %v111 = vunpack.c.l.bf16 %v47
  %v112 = vunpack.c.l.bf16 %v48
  %v113 = vunpack.c.l.bf16 %v49
  %v114 = vunpack.c.l.bf16 %v50
  %v115 = vunpack.c.l.bf16 %v51
  %v116 = vunpack.c.l.bf16 %v52
  %v117 = vunpack.c.l.bf16 %v53
  %v118 = vunpack.c.l.bf16 %v54
  %v119 = vunpack.c.l.bf16 %v55
  %v120 = vunpack.c.l.bf16 %v56
  %v121 = vunpack.c.l.bf16 %v57
  %v122 = vunpack.c.l.bf16 %v58
  %v123 = vunpack.c.l.bf16 %v59
  %v124 = vunpack.c.l.bf16 %v60
  %v125 = vunpack.c.l.bf16 %v61
  %v126 = vunpack.c.l.bf16 %v62
  %v127 = vunpack.c.l.bf16 %v63
  %v128 = vunpack.c.l.bf16 %v64
  %v129 = vunpack.c.l.bf16 %v65
  %v130 = vunpack.c.l.bf16 %v66
  %v131 = vunpack.c.l.bf16 %v67
  %v132 = vunpack.c.l.bf16 %v68
  %v133 = vunpack.c.l.bf16 %v69
  %v134 = vunpack.c.l.bf16 %v70
  %v135 = vunpack.c.l.bf16 %v71
  %v136 = vunpack.c.l.bf16 %v72
  %v137 = vunpack.c.l.bf16 %v73
  %v138 = vunpack.c.l.bf16 %v74
  %v139 = vld [vmem:[%s1] sm:$0x1]
  %v140 = vperm.slane %v139, 0
  %v141 = vmul.f32 %v75, %v140
  %v142 = vmul.f32 %v76, %v140
  %v143 = vmul.f32 %v77, %v140
  %v144 = vmul.f32 %v78, %v140
  %v145 = vmul.f32 %v79, %v140
  %v146 = vmul.f32 %v80, %v140
  %v147 = vmul.f32 %v81, %v140
  %v148 = vmul.f32 %v82, %v140
  %v149 = vmul.f32 %v83, %v140
  %v150 = vmul.f32 %v84, %v140
  %v151 = vmul.f32 %v85, %v140
  %v152 = vmul.f32 %v86, %v140
  %v153 = vmul.f32 %v87, %v140
  %v154 = vmul.f32 %v88, %v140
  %v155 = vmul.f32 %v89, %v140
  %v156 = vmul.f32 %v90, %v140
  %v157 = vmul.f32 %v91, %v140
  %v158 = vmul.f32 %v92, %v140
  %v159 = vmul.f32 %v93, %v140
  %v160 = vmul.f32 %v94, %v140
  %v161 = vmul.f32 %v95, %v140
  %v162 = vmul.f32 %v96, %v140
  %v163 = vmul.f32 %v97, %v140
  %v164 = vmul.f32 %v98, %v140
  %v165 = vmul.f32 %v99, %v140
  %v166 = vmul.f32 %v100, %v140
  %v167 = vmul.f32 %v101, %v140
  %v168 = vmul.f32 %v102, %v140
  %v169 = vmul.f32 %v103, %v140
  %v170 = vmul.f32 %v104, %v140
  %v171 = vmul.f32 %v105, %v140
  %v172 = vmul.f32 %v106, %v140
  %v173 = vmul.f32 %v107, %v140
  %v174 = vmul.f32 %v108, %v140
  %v175 = vmul.f32 %v109, %v140
  %v176 = vmul.f32 %v110, %v140
  %v177 = vmul.f32 %v111, %v140
  %v178 = vmul.f32 %v112, %v140
  %v179 = vmul.f32 %v113, %v140
  %v180 = vmul.f32 %v114, %v140
  %v181 = vmul.f32 %v115, %v140
  %v182 = vmul.f32 %v116, %v140
  %v183 = vmul.f32 %v117, %v140
  %v184 = vmul.f32 %v118, %v140
  %v185 = vmul.f32 %v119, %v140
  %v186 = vmul.f32 %v120, %v140
  %v187 = vmul.f32 %v121, %v140
  %v188 = vmul.f32 %v122, %v140
  %v189 = vmul.f32 %v123, %v140
  %v190 = vmul.f32 %v124, %v140
  %v191 = vmul.f32 %v125, %v140
  %v192 = vmul.f32 %v126, %v140
  %v193 = vmul.f32 %v127, %v140
  %v194 = vmul.f32 %v128, %v140
  %v195 = vmul.f32 %v129, %v140
  %v196 = vmul.f32 %v130, %v140
  %v197 = vmul.f32 %v131, %v140
  %v198 = vmul.f32 %v132, %v140
  %v199 = vmul.f32 %v133, %v140
  %v200 = vmul.f32 %v134, %v140
  %v201 = vmul.f32 %v135, %v140
  %v202 = vmul.f32 %v136, %v140
  %v203 = vmul.f32 %v137, %v140
  %v204 = vmul.f32 %v138, %v140
  %v205 = vld [vmem:[%s1 + $0x1] sm:$0x1]
  %v206 = vperm.slane %v205, 0
  %v207 = vadd.f32 %v141, %v206
  %v208 = vadd.f32 %v142, %v206
  %v209 = vadd.f32 %v143, %v206
  %v210 = vadd.f32 %v144, %v206
  %v211 = vadd.f32 %v145, %v206
  %v212 = vadd.f32 %v146, %v206
  %v213 = vadd.f32 %v147, %v206
  %v214 = vadd.f32 %v148, %v206
  %v215 = vadd.f32 %v149, %v206
  %v216 = vadd.f32 %v150, %v206
  %v217 = vadd.f32 %v151, %v206
  %v218 = vadd.f32 %v152, %v206
  %v219 = vadd.f32 %v153, %v206
  %v220 = vadd.f32 %v154, %v206
  %v221 = vadd.f32 %v155, %v206
  %v222 = vadd.f32 %v156, %v206
  %v223 = vadd.f32 %v157, %v206
  %v224 = vadd.f32 %v158, %v206
  %v225 = vadd.f32 %v159, %v206
  %v226 = vadd.f32 %v160, %v206
  %v227 = vadd.f32 %v161, %v206
  %v228 = vadd.f32 %v162, %v206
  %v229 = vadd.f32 %v163, %v206
  %v230 = vadd.f32 %v164, %v206
  %v231 = vadd.f32 %v165, %v206
  %v232 = vadd.f32 %v166, %v206
  %v233 = vadd.f32 %v167, %v206
  %v234 = vadd.f32 %v168, %v206
  %v235 = vadd.f32 %v169, %v206
  %v236 = vadd.f32 %v170, %v206
  %v237 = vadd.f32 %v171, %v206
  %v238 = vadd.f32 %v172, %v206
  %v239 = vadd.f32 %v173, %v206
  %v240 = vadd.f32 %v174, %v206
  %v241 = vadd.f32 %v175, %v206
  %v242 = vadd.f32 %v176, %v206
  %v243 = vadd.f32 %v177, %v206
  %v244 = vadd.f32 %v178, %v206
  %v245 = vadd.f32 %v179, %v206
  %v246 = vadd.f32 %v180, %v206
  %v247 = vadd.f32 %v181, %v206
  %v248 = vadd.f32 %v182, %v206
  %v249 = vadd.f32 %v183, %v206
  %v250 = vadd.f32 %v184, %v206
  %v251 = vadd.f32 %v185, %v206
  %v252 = vadd.f32 %v186, %v206
  %v253 = vadd.f32 %v187, %v206
  %v254 = vadd.f32 %v188, %v206
  %v255 = vadd.f32 %v189, %v206
  %v256 = vadd.f32 %v190, %v206
  %v257 = vadd.f32 %v191, %v206
  %v258 = vadd.f32 %v192, %v206
  %v259 = vadd.f32 %v193, %v206
  %v260 = vadd.f32 %v194, %v206
  %v261 = vadd.f32 %v195, %v206
  %v262 = vadd.f32 %v196, %v206
  %v263 = vadd.f32 %v197, %v206
  %v264 = vadd.f32 %v198, %v206
  %v265 = vadd.f32 %v199, %v206
  %v266 = vadd.f32 %v200, %v206
  %v267 = vadd.f32 %v201, %v206
  %v268 = vadd.f32 %v202, %v206
  %v269 = vadd.f32 %v203, %v206
  %v270 = vadd.f32 %v204, %v206
  %v271 = vmax.f32 %v207, 0.0
  %v272 = vmax.f32 %v208, 0.0
  %v273 = vmax.f32 %v209, 0.0
  %v274 = vmax.f32 %v210, 0.0
  %v275 = vmax.f32 %v211, 0.0
  %v276 = vmax.f32 %v212, 0.0
  %v277 = vmax.f32 %v213, 0.0
  %v278 = vmax.f32 %v214, 0.0
  %v279 = vmax.f32 %v215, 0.0
  %v280 = vmax.f32 %v216, 0.0
  %v281 = vmax.f32 %v217, 0.0
  %v282 = vmax.f32 %v218, 0.0
  %v283 = vmax.f32 %v219, 0.0
  %v284 = vmax.f32 %v220, 0.0
  %v285 = vmax.f32 %v221, 0.0
  %v286 = vmax.f32 %v222, 0.0
  %v287 = vmax.f32 %v223, 0.0
  %v288 = vmax.f32 %v224, 0.0
  %v289 = vmax.f32 %v225, 0.0
  %v290 = vmax.f32 %v226, 0.0
  %v291 = vmax.f32 %v227, 0.0
  %v292 = vmax.f32 %v228, 0.0
  %v293 = vmax.f32 %v229, 0.0
  %v294 = vmax.f32 %v230, 0.0
  %v295 = vmax.f32 %v231, 0.0
  %v296 = vmax.f32 %v232, 0.0
  %v297 = vmax.f32 %v233, 0.0
  %v298 = vmax.f32 %v234, 0.0
  %v299 = vmax.f32 %v235, 0.0
  %v300 = vmax.f32 %v236, 0.0
  %v301 = vmax.f32 %v237, 0.0
  %v302 = vmax.f32 %v238, 0.0
  %v303 = vmax.f32 %v239, 0.0
  %v304 = vmax.f32 %v240, 0.0
  %v305 = vmax.f32 %v241, 0.0
  %v306 = vmax.f32 %v242, 0.0
  %v307 = vmax.f32 %v243, 0.0
  %v308 = vmax.f32 %v244, 0.0
  %v309 = vmax.f32 %v245, 0.0
  %v310 = vmax.f32 %v246, 0.0
  %v311 = vmax.f32 %v247, 0.0
  %v312 = vmax.f32 %v248, 0.0
  %v313 = vmax.f32 %v249, 0.0
  %v314 = vmax.f32 %v250, 0.0
  %v315 = vmax.f32 %v251, 0.0
  %v316 = vmax.f32 %v252, 0.0
  %v317 = vmax.f32 %v253, 0.0
  %v318 = vmax.f32 %v254, 0.0
  %v319 = vmax.f32 %v255, 0.0
  %v320 = vmax.f32 %v256, 0.0
  %v321 = vmax.f32 %v257, 0.0
  %v322 = vmax.f32 %v258, 0.0
  %v323 = vmax.f32 %v259, 0.0
  %v324 = vmax.f32 %v260, 0.0
  %v325 = vmax.f32 %v261, 0.0
  %v326 = vmax.f32 %v262, 0.0
  %v327 = vmax.f32 %v263, 0.0
  %v328 = vmax.f32 %v264, 0.0
  %v329 = vmax.f32 %v265, 0.0
  %v330 = vmax.f32 %v266, 0.0
  %v331 = vmax.f32 %v267, 0.0
  %v332 = vmax.f32 %v268, 0.0
  %v333 = vmax.f32 %v269, 0.0
  %v334 = vmax.f32 %v270, 0.0
  %335 = vst [vmem:[%s2] sm:$0xff] %v271
  %336 = vst [vmem:[%s2 + $0x8] sm:$0xff] %v272
  %337 = vst [vmem:[%s2 + $0x10] sm:$0xff] %v273
  %338 = vst [vmem:[%s2 + $0x18] sm:$0xff] %v274
  %339 = vst [vmem:[%s2 + $0x20] sm:$0xff] %v275
  %340 = vst [vmem:[%s2 + $0x28] sm:$0xff] %v276
  %341 = vst [vmem:[%s2 + $0x30] sm:$0xff] %v277
  %342 = vst [vmem:[%s2 + $0x38] sm:$0xff] %v278
  %343 = vst [vmem:[%s2 + $0x40] sm:$0xff] %v279
  %344 = vst [vmem:[%s2 + $0x48] sm:$0xff] %v280
  %345 = vst [vmem:[%s2 + $0x50] sm:$0xff] %v281
  %346 = vst [vmem:[%s2 + $0x58] sm:$0xff] %v282
  %347 = vst [vmem:[%s2 + $0x60] sm:$0xff] %v283
  %348 = vst [vmem:[%s2 + $0x68] sm:$0xff] %v284
  %349 = vst [vmem:[%s2 + $0x70] sm:$0xff] %v285
  %350 = vst [vmem:[%s2 + $0x78] sm:$0xff] %v286
  %351 = vst [vmem:[%s2 + $0x80] sm:$0xff] %v287
  %352 = vst [vmem:[%s2 + $0x88] sm:$0xff] %v288
  %353 = vst [vmem:[%s2 + $0x90] sm:$0xff] %v289
  %354 = vst [vmem:[%s2 + $0x98] sm:$0xff] %v290
  %355 = vst [vmem:[%s2 + $0xa0] sm:$0xff] %v291
  %356 = vst [vmem:[%s2 + $0xa8] sm:$0xff] %v292
  %357 = vst [vmem:[%s2 + $0xb0] sm:$0xff] %v293
  %358 = vst [vmem:[%s2 + $0xb8] sm:$0xff] %v294
  %359 = vst [vmem:[%s2 + $0xc0] sm:$0xff] %v295
  %360 = vst [vmem:[%s2 + $0xc8] sm:$0xff] %v296
  %361 = vst [vmem:[%s2 + $0xd0] sm:$0xff] %v297
  %362 = vst [vmem:[%s2 + $0xd8] sm:$0xff] %v298
  %363 = vst [vmem:[%s2 + $0xe0] sm:$0xff] %v299
  %364 = vst [vmem:[%s2 + $0xe8] sm:$0xff] %v300
  %365 = vst [vmem:[%s2 + $0xf0] sm:$0xff] %v301
  %366 = vst [vmem:[%s2 + $0xf8] sm:$0xff] %v302
  %367 = vst [vmem:[%s2 + $0x100] sm:$0xff] %v303
  %368 = vst [vmem:[%s2 + $0x108] sm:$0xff] %v304
  %369 = vst [vmem:[%s2 + $0x110] sm:$0xff] %v305
  %370 = vst [vmem:[%s2 + $0x118] sm:$0xff] %v306
  %371 = vst [vmem:[%s2 + $0x120] sm:$0xff] %v307
  %372 = vst [vmem:[%s2 + $0x128] sm:$0xff] %v308
  %373 = vst [vmem:[%s2 + $0x130] sm:$0xff] %v309
  %374 = vst [vmem:[%s2 + $0x138] sm:$0xff] %v310
  %375 = vst [vmem:[%s2 + $0x140] sm:$0xff] %v311
  %376 = vst [vmem:[%s2 + $0x148] sm:$0xff] %v312
  %377 = vst [vmem:[%s2 + $0x150] sm:$0xff] %v313
  %378 = vst [vmem:[%s2 + $0x158] sm:$0xff] %v314
  %379 = vst [vmem:[%s2 + $0x160] sm:$0xff] %v315
  %380 = vst [vmem:[%s2 + $0x168] sm:$0xff] %v316
  %381 = vst [vmem:[%s2 + $0x170] sm:$0xff] %v317
  %382 = vst [vmem:[%s2 + $0x178] sm:$0xff] %v318
  %383 = vst [vmem:[%s2 + $0x180] sm:$0xff] %v319
  %384 = vst [vmem:[%s2 + $0x188] sm:$0xff] %v320
  %385 = vst [vmem:[%s2 + $0x190] sm:$0xff] %v321
  %386 = vst [vmem:[%s2 + $0x198] sm:$0xff] %v322
  %387 = vst [vmem:[%s2 + $0x1a0] sm:$0xff] %v323
  %388 = vst [vmem:[%s2 + $0x1a8] sm:$0xff] %v324
  %389 = vst [vmem:[%s2 + $0x1b0] sm:$0xff] %v325
  %390 = vst [vmem:[%s2 + $0x1b8] sm:$0xff] %v326
  %391 = vst [vmem:[%s2 + $0x1c0] sm:$0xff] %v327
  %392 = vst [vmem:[%s2 + $0x1c8] sm:$0xff] %v328
  %393 = vst [vmem:[%s2 + $0x1d0] sm:$0xff] %v329
  %394 = vst [vmem:[%s2 + $0x1d8] sm:$0xff] %v330
  %395 = vst [vmem:[%s2 + $0x1e0] sm:$0xff] %v331
  %396 = vst [vmem:[%s2 + $0x1e8] sm:$0xff] %v332
  %397 = vst [vmem:[%s2 + $0x1f0] sm:$0xff] %v333
  %398 = vst [vmem:[%s2 + $0x1f8] sm:$0xff] %v334
  // Predicated region
  $region10: #{basic_conv2d_block.5} parent=0 // pred_check
    _
  $region11: #{basic_conv2d_block.5} parent=0 // pred_check_branch
    %400 = sbr.rel (0) target = $region13
  $region12: #{basic_conv2d_block.5} parent=0 // pred_region
    _
  $region13: #{basic_conv2d_block.5} parent=0 // pred_fallthru
    _
  // Predicated region
  $region14: #{basic_conv2d_block.5} parent=0 // pred_check
    _
  $region15: #{basic_conv2d_block.5} parent=0 // pred_check_branch
    %402 = sbr.rel (0) target = $region17
  $region16: #{basic_conv2d_block.5} parent=0 // pred_region
    _
  $region17: #{basic_conv2d_block.5} parent=0 // pred_fallthru
    _

// kernel: basic_conv2d_block.3
$region0: #{basic_conv2d_block.3}
  #allocation0 [shape = 'u32[]', space=smem, size = 0x4, offset = 0x4, fixed_abs, tag = 'smem constant byte address 0x4 - core index']
  #allocation1 [shape = 'u32[72,128]{1,0:T(1,128)}', space=vmem, size = 0x9000, scoped, tag = 'internal scratch']
  #allocation2 [shape = 'f32[18,18,4]{2,1,0:T(8,128)}', space=vmem, size = 0x36000, scoped, tag = 'scratch operand']
  %s0 = inlined_call_operand.vmem [shape: bf16[2,16,16,4], index: 0, kind: input, shape index: {}]
  %s1 = inlined_call_operand.vmem [shape: f32[2,4], index: 1, kind: input, shape index: {}]
  %s2 = inlined_call_operand.vmem [shape: bf16[36,128], index: 2, kind: input, shape index: {}]
  %s3 = inlined_call_operand.vmem [shape: bf16[2,256,128], index: 3, kind: output, shape index: {0}]
  %s4 = inlined_call_operand.vmem [shape: f32[2,2,128], index: 4, kind: output, shape index: {1}]
  %5 = xla_tuple %s3, %s4
  %s6 = sld [smem:[#allocation0]]
  $region53: #{basic_conv2d_block.3} parent=0
    _
  %s8 = ssub.s32 1, %s6
  %s9 = scalar_select 0, %s8, %s6
  loop: start=0, step=1, limit=4
  $region2: #{basic_conv2d_block.3} parent=0 // loop_pre_header
    _
  $region3: #{basic_conv2d_block.3} parent=0 // loop_header
    %s11 = sphi 0, %s15
    %p12 = scmp.ge.s32.totalorder %s11, 4
    %s21 = sphi 0, %s23
    %s24 = sphi 0, %s21
    %s25 = sphi 0, %s24
    %s41 = sphi 0, %s25
    %s45 = sphi 0, %s45
    %s47 = sphi 0, %s45
    %s48 = sphi 0, %s47
    %s62 = sphi 0, %s48
    %s66 = sphi 0, %s66
    %s68 = sphi 0, %s66
    %s69 = sphi 0, %s68
    %s83 = sphi 0, %s69
    %s89 = sphi 0, %s91
    %s92 = sphi 0, %s89
    %s93 = sphi 0, %s92
    %s109 = sphi 0, %s93
    %s115 = sphi 0, %s117
    %s118 = sphi 0, %s115
    %s119 = sphi 0, %s118
    %s135 = sphi 0, %s119
  $region4: #{basic_conv2d_block.3} parent=0 // loop_header_branch
    %14 = sbr.rel (%p12) target = $region8
  $region5: #{basic_conv2d_block.3} parent=0 // loop_body
    %s16 = ssub.s32 %s11, 1
    %s17 = ssub.s32 %s11, 2
    %s18 = sadd.s32 %s11, 1
    %s19 = ssub.s32 %s11, %s18
    %p20 = scmp.eq.s32.totalorder %s19, 0
    %s22 = sadd.s32 %s21, 1
    %s23 = scalar_select %p20, %s21, %s22
    %p26 = pneg %p20
    %p27 = scmp.eq.s32.totalorder %s11, 1
    %p28 = por %p26, %p27
    %p29 = scmp.ne.s32.totalorder %s21, %s24
    %p30 = scmp.eq.s32.totalorder %s11, 0
    %p31 = por %p29, %p30
    %p32 = scmp.ne.s32.totalorder %s21, %s24
    %p33 = scmp.eq.s32.totalorder %s16, 1
    %p34 = por %p32, %p33
    %p35 = scmp.ne.s32.totalorder %s24, %s25
    %p36 = scmp.eq.s32.totalorder %s16, 0
    %p37 = por %p35, %p36
    %p38 = scmp.ne.s32.totalorder %s24, %s25
    %p39 = scmp.eq.s32.totalorder %s17, 1
    %p40 = por %p38, %p39
    %p42 = scmp.ne.s32.totalorder %s25, %s41
    %p43 = scmp.eq.s32.totalorder %s17, 0
    %p44 = por %p42, %p43
    %s46 = sadd.s32 %s45, 1
    %p49 = scmp.eq.s32.totalorder %s11, 1
    %p50 = scmp.ne.s32.totalorder %s45, %s47
    %p51 = scmp.eq.s32.totalorder %s11, 0
    %p52 = por %p50, %p51
    %p53 = scmp.ne.s32.totalorder %s45, %s47
    %p54 = scmp.eq.s32.totalorder %s16, 1
    %p55 = por %p53, %p54
    %p56 = scmp.ne.s32.totalorder %s47, %s48
    %p57 = scmp.eq.s32.totalorder %s16, 0
    %p58 = por %p56, %p57
    %p59 = scmp.ne.s32.totalorder %s47, %s48
    %p60 = scmp.eq.s32.totalorder %s17, 1
    %p61 = por %p59, %p60
    %p63 = scmp.ne.s32.totalorder %s48, %s62
    %p64 = scmp.eq.s32.totalorder %s17, 0
    %p65 = por %p63, %p64
    %s67 = sadd.s32 %s66, 1
    %p70 = scmp.eq.s32.totalorder %s11, 1
    %p71 = scmp.ne.s32.totalorder %s66, %s68
    %p72 = scmp.eq.s32.totalorder %s11, 0
    %p73 = por %p71, %p72
    %p74 = scmp.ne.s32.totalorder %s66, %s68
    %p75 = scmp.eq.s32.totalorder %s16, 1
    %p76 = por %p74, %p75
    %p77 = scmp.ne.s32.totalorder %s68, %s69
    %p78 = scmp.eq.s32.totalorder %s16, 0
    %p79 = por %p77, %p78
    %p80 = scmp.ne.s32.totalorder %s68, %s69
    %p81 = scmp.eq.s32.totalorder %s17, 1
    %p82 = por %p80, %p81
    %p84 = scmp.ne.s32.totalorder %s69, %s83
    %p85 = scmp.eq.s32.totalorder %s17, 0
    %p86 = por %p84, %p85
    %s87 = ssub.s32 %s11, %s18
    %p88 = scmp.eq.s32.totalorder %s87, 0
    %s90 = sadd.s32 %s89, 1
    %s91 = scalar_select %p88, %s89, %s90
    %p94 = pneg %p88
    %p95 = scmp.eq.s32.totalorder %s11, 1
    %p96 = por %p94, %p95
    %p97 = scmp.ne.s32.totalorder %s89, %s92
    %p98 = scmp.eq.s32.totalorder %s11, 0
    %p99 = por %p97, %p98
    %p100 = scmp.ne.s32.totalorder %s89, %s92
    %p101 = scmp.eq.s32.totalorder %s16, 1
    %p102 = por %p100, %p101
    %p103 = scmp.ne.s32.totalorder %s92, %s93
    %p104 = scmp.eq.s32.totalorder %s16, 0
    %p105 = por %p103, %p104
    %p106 = scmp.ne.s32.totalorder %s92, %s93
    %p107 = scmp.eq.s32.totalorder %s17, 1
    %p108 = por %p106, %p107
    %p110 = scmp.ne.s32.totalorder %s93, %s109
    %p111 = scmp.eq.s32.totalorder %s17, 0
    %p112 = por %p110, %p111
    %s113 = ssub.s32 %s11, %s18
    %p114 = scmp.eq.s32.totalorder %s113, 0
    %s116 = sadd.s32 %s115, 1
    %s117 = scalar_select %p114, %s115, %s116
    %p120 = pneg %p114
    %p121 = scmp.eq.s32.totalorder %s11, 1
    %p122 = por %p120, %p121
    %p123 = scmp.ne.s32.totalorder %s115, %s118
    %p124 = scmp.eq.s32.totalorder %s11, 0
    %p125 = por %p123, %p124
    %p126 = scmp.ne.s32.totalorder %s115, %s118
    %p127 = scmp.eq.s32.totalorder %s16, 1
    %p128 = por %p126, %p127
    %p129 = scmp.ne.s32.totalorder %s118, %s119
    %p130 = scmp.eq.s32.totalorder %s16, 0
    %p131 = por %p129, %p130
    %p132 = scmp.ne.s32.totalorder %s118, %s119
    %p133 = scmp.eq.s32.totalorder %s17, 1
    %p134 = por %p132, %p133
    %p136 = scmp.ne.s32.totalorder %s119, %s135
    %p137 = scmp.eq.s32.totalorder %s17, 0
    %p138 = por %p136, %p137
    %p139 = scmp.le.s32.totalorder 1, %s11
    %p140 = scmp.lt.s32.totalorder %s11, 3
    %p141 = pnand %p139, %p140
    %p142 = pneg %p141
    // Predicated region
    $region9: #{basic_conv2d_block.3} parent=5 // pred_check
      _
    $region10: #{basic_conv2d_block.3} parent=5 // pred_check_branch
      %144 = sbr.rel (%p141) target = $region12
    $region11: #{basic_conv2d_block.3} parent=5 // pred_region
      %s145 = ssub.s32 %s11, 1
      // Predicated region
      $region13: #{basic_conv2d_block.3} parent=11 // pred_check
        %p146 = pneg %p58
      $region14: #{basic_conv2d_block.3} parent=11 // pred_check_branch
        %148 = sbr.rel (%p146) target = $region16
      $region15: #{basic_conv2d_block.3} parent=11 // pred_region
        _
      $region16: #{basic_conv2d_block.3} parent=11 // pred_fallthru
        _
      // Predicated region
      $region17: #{basic_conv2d_block.3} parent=11 // pred_check
        %p149 = pneg %p79
      $region18: #{basic_conv2d_block.3} parent=11 // pred_check_branch
        %151 = sbr.rel (%p149) target = $region20
      $region19: #{basic_conv2d_block.3} parent=11 // pred_region
        _
      $region20: #{basic_conv2d_block.3} parent=11 // pred_fallthru
        _
    $region12: #{basic_conv2d_block.3} parent=5 // pred_fallthru
      _
    %p152 = scmp.lt.s32.totalorder %s11, 2
    // Predicated region
    $region21: #{basic_conv2d_block.3} parent=5 // pred_check
      %p153 = pneg %p152
    $region22: #{basic_conv2d_block.3} parent=5 // pred_check_branch
      %155 = sbr.rel (%p153) target = $region24
    $region23: #{basic_conv2d_block.3} parent=5 // pred_region
      // Predicated region
      $region25: #{basic_conv2d_block.3} parent=23 // pred_check
        %p156 = pneg %p31
      $region26: #{basic_conv2d_block.3} parent=23 // pred_check_branch
        %158 = sbr.rel (%p156) target = $region28
      $region27: #{basic_conv2d_block.3} parent=23 // pred_region
        %p159 = scmp.lt.s32.totalorder %s11, 1
        %s160 = scalar_select %p159, %s11, 1
        %s161 = smul.addr %s160, 32
        %s162 = smul.addr %s161, 4
        %s163 = scalar_lea.vmem %s0, %s162
      $region28: #{basic_conv2d_block.3} parent=23 // pred_fallthru
        _
    $region24: #{basic_conv2d_block.3} parent=5 // pred_fallthru
      _
    %p164 = scmp.le.s32.totalorder 1, %s11
    %p165 = scmp.lt.s32.totalorder %s11, 3
    %p166 = pnand %p164, %p165
    %p167 = pneg %p166
    // Predicated region
    $region29: #{basic_conv2d_block.3} parent=5 // pred_check
      _
    $region30: #{basic_conv2d_block.3} parent=5 // pred_check_branch
      %169 = sbr.rel (%p166) target = $region32
    $region31: #{basic_conv2d_block.3} parent=5 // pred_region
      %s170 = ssub.s32 %s11, 1
      %p171 = scmp.lt.s32.totalorder %s16, 1
      %s172 = scalar_select %p171, %s16, 1
      %s173 = smul.addr %s172, 32
      %s174 = smul.addr %s173, 4
      %s175 = scalar_lea.vmem %s0, %s174
      %p176 = pneg %p37
      %p177 = pneg %p34
      %p178 = pneg %p58
      %p179 = pneg %p55
      %p180 = pneg %p79
      %p181 = pneg %p76
      %p182 = pneg %p105
      %p183 = pneg %p102
      %p184 = scmp.lt.s32.totalorder %s16, 1
      %s185 = scalar_select %p184, %s16, 1
      %s186 = smul.addr %s185, 32
      %s187 = smul.addr %s186, 4
      %s188 = scalar_lea.vmem %s3, %s187
      %p189 = pneg %p131
      %p190 = pneg %p128
      %p191 = scmp.lt.s32.totalorder %s16, 1
      %s192 = scalar_select %p191, %s16, 1
      %s193 = smul.addr %s192, 2
      %s194 = scalar_lea.vmem %s4, %s193
      %p195 = scmp.lt.s32.totalorder %s16, 1
      %s196 = scalar_select %p195, %s16, 1
      %s197 = smul.addr %s196, 32
      %s198 = smul.addr %s197, 4
      %s199 = scalar_lea.vmem %s0, %s198
      %p200 = scmp.lt.s32.totalorder %s16, 1
      %s201 = scalar_select %p200, %s16, 1
      %s202 = smul.addr %s201, 32
      %s203 = smul.addr %s202, 4
      %s204 = scalar_lea.vmem %s3, %s203
      %p205 = scmp.lt.s32.totalorder %s16, 1
      %s206 = scalar_select %p205, %s16, 1
      %s207 = smul.addr %s206, 2
      %s208 = scalar_lea.vmem %s4, %s207
      %v210 = vld [vmem:[%s199] sm:$0xf]
      %v211 = vld [vmem:[%s199 + $0x4] sm:$0xf]
      %v212 = vld [vmem:[%s199 + $0x8] sm:$0xf]
      %v213 = vld [vmem:[%s199 + $0xc] sm:$0xf]
      %v214 = vld [vmem:[%s199 + $0x10] sm:$0xf]
      %v215 = vld [vmem:[%s199 + $0x14] sm:$0xf]
      %v216 = vld [vmem:[%s199 + $0x18] sm:$0xf]
      %v217 = vld [vmem:[%s199 + $0x1c] sm:$0xf]
      %v218 = vld [vmem:[%s199 + $0x20] sm:$0xf]
      %v219 = vld [vmem:[%s199 + $0x24] sm:$0xf]
      %v220 = vld [vmem:[%s199 + $0x28] sm:$0xf]
      %v221 = vld [vmem:[%s199 + $0x2c] sm:$0xf]
      %v222 = vld [vmem:[%s199 + $0x30] sm:$0xf]
      %v223 = vld [vmem:[%s199 + $0x34] sm:$0xf]
      %v224 = vld [vmem:[%s199 + $0x38] sm:$0xf]
      %v225 = vld [vmem:[%s199 + $0x3c] sm:$0xf]
      %v226 = vld [vmem:[%s199 + $0x40] sm:$0xf]
      %v227 = vld [vmem:[%s199 + $0x44] sm:$0xf]
      %v228 = vld [vmem:[%s199 + $0x48] sm:$0xf]
      %v229 = vld [vmem:[%s199 + $0x4c] sm:$0xf]
      %v230 = vld [vmem:[%s199 + $0x50] sm:$0xf]
      %v231 = vld [vmem:[%s199 + $0x54] sm:$0xf]
      %v232 = vld [vmem:[%s199 + $0x58] sm:$0xf]
      %v233 = vld [vmem:[%s199 + $0x5c] sm:$0xf]
      %v234 = vld [vmem:[%s199 + $0x60] sm:$0xf]
      %v235 = vld [vmem:[%s199 + $0x64] sm:$0xf]
      %v236 = vld [vmem:[%s199 + $0x68] sm:$0xf]
      %v237 = vld [vmem:[%s199 + $0x6c] sm:$0xf]
      %v238 = vld [vmem:[%s199 + $0x70] sm:$0xf]
      %v239 = vld [vmem:[%s199 + $0x74] sm:$0xf]
      %v240 = vld [vmem:[%s199 + $0x78] sm:$0xf]
      %v241 = vld [vmem:[%s199 + $0x7c] sm:$0xf]
      %v242 = vunpack.c.l.bf16 %v210
      %v243 = vunpack.c.l.bf16 %v211
      %v244 = vunpack.c.l.bf16 %v212
      %v245 = vunpack.c.l.bf16 %v213
      %v246 = vunpack.c.l.bf16 %v214
      %v247 = vunpack.c.l.bf16 %v215
      %v248 = vunpack.c.l.bf16 %v216
      %v249 = vunpack.c.l.bf16 %v217
      %v250 = vunpack.c.l.bf16 %v218
      %v251 = vunpack.c.l.bf16 %v219
      %v252 = vunpack.c.l.bf16 %v220
      %v253 = vunpack.c.l.bf16 %v221
      %v254 = vunpack.c.l.bf16 %v222
      %v255 = vunpack.c.l.bf16 %v223
      %v256 = vunpack.c.l.bf16 %v224
      %v257 = vunpack.c.l.bf16 %v225
      %v258 = vunpack.c.l.bf16 %v226
      %v259 = vunpack.c.l.bf16 %v227
      %v260 = vunpack.c.l.bf16 %v228
      %v261 = vunpack.c.l.bf16 %v229
      %v262 = vunpack.c.l.bf16 %v230
      %v263 = vunpack.c.l.bf16 %v231
      %v264 = vunpack.c.l.bf16 %v232
      %v265 = vunpack.c.l.bf16 %v233
      %v266 = vunpack.c.l.bf16 %v234
      %v267 = vunpack.c.l.bf16 %v235
      %v268 = vunpack.c.l.bf16 %v236
      %v269 = vunpack.c.l.bf16 %v237
      %v270 = vunpack.c.l.bf16 %v238
      %v271 = vunpack.c.l.bf16 %v239
      %v272 = vunpack.c.l.bf16 %v240
      %v273 = vunpack.c.l.bf16 %v241
      %vm274 = vcmask 31744
      %275 = vst.msk [vmem:[#allocation2] sm:$0xff] %vm274, 0.0
      %276 = vst.msk [vmem:[#allocation2 + $0x8] sm:$0xff] %vm274, 0.0
      %vm277 = vcmask 25600
      %278 = vst.msk [vmem:[#allocation2 + $0x10] sm:$0x3] %vm277, 0.0
      %279 = vst.msk [vmem:[#allocation2 + $0x18] sm:$0xff] %vm274, 0.0
      %280 = vst.msk [vmem:[#allocation2 + $0x20] sm:$0xff] %vm274, 0.0
      %281 = vst.msk [vmem:[#allocation2 + $0x28] sm:$0x3] %vm277, 0.0
      %282 = vst.msk [vmem:[#allocation2 + $0x30] sm:$0xff] %vm274, 0.0
      %283 = vst.msk [vmem:[#allocation2 + $0x38] sm:$0xff] %vm274, 0.0
      %284 = vst.msk [vmem:[#allocation2 + $0x40] sm:$0x3] %vm277, 0.0
      %285 = vst.msk [vmem:[#allocation2 + $0x48] sm:$0xff] %vm274, 0.0
      %286 = vst.msk [vmem:[#allocation2 + $0x50] sm:$0xff] %vm274, 0.0
      %287 = vst.msk [vmem:[#allocation2 + $0x58] sm:$0x3] %vm277, 0.0
      %288 = vst.msk [vmem:[#allocation2 + $0x60] sm:$0xff] %vm274, 0.0
      %289 = vst.msk [vmem:[#allocation2 + $0x68] sm:$0xff] %vm274, 0.0
      %290 = vst.msk [vmem:[#allocation2 + $0x70] sm:$0x3] %vm277, 0.0
      %291 = vst.msk [vmem:[#allocation2 + $0x78] sm:$0xff] %vm274, 0.0
      %292 = vst.msk [vmem:[#allocation2 + $0x80] sm:$0xff] %vm274, 0.0
      %293 = vst.msk [vmem:[#allocation2 + $0x88] sm:$0x3] %vm277, 0.0
      %294 = vst.msk [vmem:[#allocation2 + $0x90] sm:$0xff] %vm274, 0.0
      %295 = vst.msk [vmem:[#allocation2 + $0x98] sm:$0xff] %vm274, 0.0
      %296 = vst.msk [vmem:[#allocation2 + $0xa0] sm:$0x3] %vm277, 0.0
      %297 = vst.msk [vmem:[#allocation2 + $0xa8] sm:$0xff] %vm274, 0.0
      %298 = vst.msk [vmem:[#allocation2 + $0xb0] sm:$0xff] %vm274, 0.0
      %299 = vst.msk [vmem:[#allocation2 + $0xb8] sm:$0x3] %vm277, 0.0
      %300 = vst.msk [vmem:[#allocation2 + $0xc0] sm:$0xff] %vm274, 0.0
      %301 = vst.msk [vmem:[#allocation2 + $0xc8] sm:$0xff] %vm274, 0.0
      %302 = vst.msk [vmem:[#allocation2 + $0xd0] sm:$0x3] %vm277, 0.0
      %303 = vst.msk [vmem:[#allocation2 + $0xd8] sm:$0xff] %vm274, 0.0
      %304 = vst.msk [vmem:[#allocation2 + $0xe0] sm:$0xff] %vm274, 0.0
      %305 = vst.msk [vmem:[#allocation2 + $0xe8] sm:$0x3] %vm277, 0.0
      %306 = vst.msk [vmem:[#allocation2 + $0xf0] sm:$0xff] %vm274, 0.0
      %307 = vst.msk [vmem:[#allocation2 + $0xf8] sm:$0xff] %vm274, 0.0
      %308 = vst.msk [vmem:[#allocation2 + $0x100] sm:$0x3] %vm277, 0.0
      %309 = vst.msk [vmem:[#allocation2 + $0x108] sm:$0xff] %vm274, 0.0
      %310 = vst.msk [vmem:[#allocation2 + $0x110] sm:$0xff] %vm274, 0.0
      %311 = vst.msk [vmem:[#allocation2 + $0x118] sm:$0x3] %vm277, 0.0
      %312 = vst.msk [vmem:[#allocation2 + $0x120] sm:$0xff] %vm274, 0.0
      %313 = vst.msk [vmem:[#allocation2 + $0x128] sm:$0xff] %vm274, 0.0
      %314 = vst.msk [vmem:[#allocation2 + $0x130] sm:$0x3] %vm277, 0.0
      %315 = vst.msk [vmem:[#allocation2 + $0x138] sm:$0xff] %vm274, 0.0
      %316 = vst.msk [vmem:[#allocation2 + $0x140] sm:$0xff] %vm274, 0.0
      %317 = vst.msk [vmem:[#allocation2 + $0x148] sm:$0x3] %vm277, 0.0
      %318 = vst.msk [vmem:[#allocation2 + $0x150] sm:$0xff] %vm274, 0.0
      %319 = vst.msk [vmem:[#allocation2 + $0x158] sm:$0xff] %vm274, 0.0
      %320 = vst.msk [vmem:[#allocation2 + $0x160] sm:$0x3] %vm277, 0.0
      %321 = vst.msk [vmem:[#allocation2 + $0x168] sm:$0xff] %vm274, 0.0
      %322 = vst.msk [vmem:[#allocation2 + $0x170] sm:$0xff] %vm274, 0.0
      %323 = vst.msk [vmem:[#allocation2 + $0x178] sm:$0x3] %vm277, 0.0
      %324 = vst.msk [vmem:[#allocation2 + $0x180] sm:$0xff] %vm274, 0.0
      %325 = vst.msk [vmem:[#allocation2 + $0x188] sm:$0xff] %vm274, 0.0
      %326 = vst.msk [vmem:[#allocation2 + $0x190] sm:$0x3] %vm277, 0.0
      %327 = vst.msk [vmem:[#allocation2 + $0x198] sm:$0xff] %vm274, 0.0
      %328 = vst.msk [vmem:[#allocation2 + $0x1a0] sm:$0xff] %vm274, 0.0
      %329 = vst.msk [vmem:[#allocation2 + $0x1a8] sm:$0x3] %vm277, 0.0
      %s330 = scalar_lea.vmem [#allocation2], 24
      %331 = vst.msk [vmem:[%s330 + $0x1] sm:$0xff] %vm274, %v242
      %332 = vst.msk [vmem:[%s330 + $0x9] sm:$0xff] %vm274, %v243
      %333 = vst.msk [vmem:[%s330 + $0x19] sm:$0xff] %vm274, %v244
      %334 = vst.msk [vmem:[%s330 + $0x21] sm:$0xff] %vm274, %v245
      %335 = vst.msk [vmem:[%s330 + $0x31] sm:$0xff] %vm274, %v246
      %336 = vst.msk [vmem:[%s330 + $0x39] sm:$0xff] %vm274, %v247
      %337 = vst.msk [vmem:[%s330 + $0x49] sm:$0xff] %vm274, %v248
      %338 = vst.msk [vmem:[%s330 + $0x51] sm:$0xff] %vm274, %v249
      %339 = vst.msk [vmem:[%s330 + $0x61] sm:$0xff] %vm274, %v250
      %340 = vst.msk [vmem:[%s330 + $0x69] sm:$0xff] %vm274, %v251
      %341 = vst.msk [vmem:[%s330 + $0x79] sm:$0xff] %vm274, %v252
      %342 = vst.msk [vmem:[%s330 + $0x81] sm:$0xff] %vm274, %v253
      %343 = vst.msk [vmem:[%s330 + $0x91] sm:$0xff] %vm274, %v254
      %344 = vst.msk [vmem:[%s330 + $0x99] sm:$0xff] %vm274, %v255
      %345 = vst.msk [vmem:[%s330 + $0xa9] sm:$0xff] %vm274, %v256
      %346 = vst.msk [vmem:[%s330 + $0xb1] sm:$0xff] %vm274, %v257
      %347 = vst.msk [vmem:[%s330 + $0xc1] sm:$0xff] %vm274, %v258
      %348 = vst.msk [vmem:[%s330 + $0xc9] sm:$0xff] %vm274, %v259
      %349 = vst.msk [vmem:[%s330 + $0xd9] sm:$0xff] %vm274, %v260
      %350 = vst.msk [vmem:[%s330 + $0xe1] sm:$0xff] %vm274, %v261
      %351 = vst.msk [vmem:[%s330 + $0xf1] sm:$0xff] %vm274, %v262
      %352 = vst.msk [vmem:[%s330 + $0xf9] sm:$0xff] %vm274, %v263
      %353 = vst.msk [vmem:[%s330 + $0x109] sm:$0xff] %vm274, %v264
      %354 = vst.msk [vmem:[%s330 + $0x111] sm:$0xff] %vm274, %v265
      %355 = vst.msk [vmem:[%s330 + $0x121] sm:$0xff] %vm274, %v266
      %356 = vst.msk [vmem:[%s330 + $0x129] sm:$0xff] %vm274, %v267
      %357 = vst.msk [vmem:[%s330 + $0x139] sm:$0xff] %vm274, %v268
      %358 = vst.msk [vmem:[%s330 + $0x141] sm:$0xff] %vm274, %v269
      %359 = vst.msk [vmem:[%s330 + $0x151] sm:$0xff] %vm274, %v270
      %360 = vst.msk [vmem:[%s330 + $0x159] sm:$0xff] %vm274, %v271
      %361 = vst.msk [vmem:[%s330 + $0x169] sm:$0xff] %vm274, %v272
      %362 = vst.msk [vmem:[%s330 + $0x171] sm:$0xff] %vm274, %v273
      %v363 = vld [vmem:[#allocation2] sm:$0xff]
      %v364 = vld [vmem:[#allocation2 + $0x8] sm:$0xff]
      %v365 = vld [vmem:[#allocation2 + $0x18] sm:$0xff]
      %v366 = vld [vmem:[#allocation2 + $0x20] sm:$0xff]
      %v367 = vld [vmem:[#allocation2 + $0x30] sm:$0xff]
      %v368 = vld [vmem:[#allocation2 + $0x38] sm:$0xff]
      %v369 = vld [vmem:[#allocation2 + $0x48] sm:$0xff]
      %v370 = vld [vmem:[#allocation2 + $0x50] sm:$0xff]
      %v371 = vld [vmem:[#allocation2 + $0x60] sm:$0xff]
      %v372 = vld [vmem:[#allocation2 + $0x68] sm:$0xff]
      %v373 = vld [vmem:[#allocation2 + $0x78] sm:$0xff]
      %v374 = vld [vmem:[#allocation2 + $0x80] sm:$0xff]
      %v375 = vld [vmem:[#allocation2 + $0x90] sm:$0xff]
      %v376 = vld [vmem:[#allocation2 + $0x98] sm:$0xff]
      %v377 = vld [vmem:[#allocation2 + $0xa8] sm:$0xff]
      %v378 = vld [vmem:[#allocation2 + $0xb0] sm:$0xff]
      %v379 = vld [vmem:[#allocation2 + $0xc0] sm:$0xff]
      %v380 = vld [vmem:[#allocation2 + $0xc8] sm:$0xff]
      %v381 = vld [vmem:[#allocation2 + $0xd8] sm:$0xff]
      %v382 = vld [vmem:[#allocation2 + $0xe0] sm:$0xff]
      %v383 = vld [vmem:[#allocation2 + $0xf0] sm:$0xff]
      %v384 = vld [vmem:[#allocation2 + $0xf8] sm:$0xff]
      %v385 = vld [vmem:[#allocation2 + $0x108] sm:$0xff]
      %v386 = vld [vmem:[#allocation2 + $0x110] sm:$0xff]
      %v387 = vld [vmem:[#allocation2 + $0x120] sm:$0xff]
      %v388 = vld [vmem:[#allocation2 + $0x128] sm:$0xff]
      %v389 = vld [vmem:[#allocation2 + $0x138] sm:$0xff]
      %v390 = vld [vmem:[#allocation2 + $0x140] sm:$0xff]
      %v391 = vld [vmem:[#allocation2 + $0x150] sm:$0xff]
      %v392 = vld [vmem:[#allocation2 + $0x158] sm:$0xff]
      %v393 = vld [vmem:[#allocation2 + $0x168] sm:$0xff]
      %v394 = vld [vmem:[#allocation2 + $0x170] sm:$0xff]
      %v395 = vld [vmem:[#allocation2 + $0x1] sm:$0xff]
      %v396 = vld [vmem:[#allocation2 + $0x9] sm:$0xff]
      %v397 = vld [vmem:[#allocation2 + $0x19] sm:$0xff]
      %v398 = vld [vmem:[#allocation2 + $0x21] sm:$0xff]
      %v399 = vld [vmem:[#allocation2 + $0x31] sm:$0xff]
      %v400 = vld [vmem:[#allocation2 + $0x39] sm:$0xff]
      %v401 = vld [vmem:[#allocation2 + $0x49] sm:$0xff]
      %v402 = vld [vmem:[#allocation2 + $0x51] sm:$0xff]
      %v403 = vld [vmem:[#allocation2 + $0x61] sm:$0xff]
      %v404 = vld [vmem:[#allocation2 + $0x69] sm:$0xff]
      %v405 = vld [vmem:[#allocation2 + $0x79] sm:$0xff]
      %v406 = vld [vmem:[#allocation2 + $0x81] sm:$0xff]
      %v407 = vld [vmem:[#allocation2 + $0x91] sm:$0xff]
      %v408 = vld [vmem:[#allocation2 + $0x99] sm:$0xff]
      %v409 = vld [vmem:[#allocation2 + $0xa9] sm:$0xff]
      %v410 = vld [vmem:[#allocation2 + $0xb1] sm:$0xff]
      %v411 = vld [vmem:[#allocation2 + $0xc1] sm:$0xff]
      %v412 = vld [vmem:[#allocation2 + $0xc9] sm:$0xff]
      %v413 = vld [vmem:[#allocation2 + $0xd9] sm:$0xff]
      %v414 = vld [vmem:[#allocation2 + $0xe1] sm:$0xff]
      %v415 = vld [vmem:[#allocation2 + $0xf1] sm:$0xff]
      %v416 = vld [vmem:[#allocation2 + $0xf9] sm:$0xff]
      %v417 = vld [vmem:[#allocation2 + $0x109] sm:$0xff]
      %v418 = vld [vmem:[#allocation2 + $0x111] sm:$0xff]
      %v419 = vld [vmem:[#allocation2 + $0x121] sm:$0xff]
      %v420 = vld [vmem:[#allocation2 + $0x129] sm:$0xff]
      %v421 = vld [vmem:[#allocation2 + $0x139] sm:$0xff]
      %v422 = vld [vmem:[#allocation2 + $0x141] sm:$0xff]
      %v423 = vld [vmem:[#allocation2 + $0x151] sm:$0xff]
      %v424 = vld [vmem:[#allocation2 + $0x159] sm:$0xff]
      %v425 = vld [vmem:[#allocation2 + $0x169] sm:$0xff]
      %v426 = vld [vmem:[#allocation2 + $0x171] sm:$0xff]
      %v427 = vld [vmem:[#allocation2 + $0x2] sm:$0xff]
      %v428 = vld [vmem:[#allocation2 + $0xa] sm:$0xff]
      %v429 = vld [vmem:[#allocation2 + $0x1a] sm:$0xff]
      %v430 = vld [vmem:[#allocation2 + $0x22] sm:$0xff]
      %v431 = vld [vmem:[#allocation2 + $0x32] sm:$0xff]
      %v432 = vld [vmem:[#allocation2 + $0x3a] sm:$0xff]
      %v433 = vld [vmem:[#allocation2 + $0x4a] sm:$0xff]
      %v434 = vld [vmem:[#allocation2 + $0x52] sm:$0xff]
      %v435 = vld [vmem:[#allocation2 + $0x62] sm:$0xff]
      %v436 = vld [vmem:[#allocation2 + $0x6a] sm:$0xff]
      %v437 = vld [vmem:[#allocation2 + $0x7a] sm:$0xff]
      %v438 = vld [vmem:[#allocation2 + $0x82] sm:$0xff]
      %v439 = vld [vmem:[#allocation2 + $0x92] sm:$0xff]
      %v440 = vld [vmem:[#allocation2 + $0x9a] sm:$0xff]
      %v441 = vld [vmem:[#allocation2 + $0xaa] sm:$0xff]
      %v442 = vld [vmem:[#allocation2 + $0xb2] sm:$0xff]
      %v443 = vld [vmem:[#allocation2 + $0xc2] sm:$0xff]
      %v444 = vld [vmem:[#allocation2 + $0xca] sm:$0xff]
      %v445 = vld [vmem:[#allocation2 + $0xda] sm:$0xff]
      %v446 = vld [vmem:[#allocation2 + $0xe2] sm:$0xff]
      %v447 = vld [vmem:[#allocation2 + $0xf2] sm:$0xff]
      %v448 = vld [vmem:[#allocation2 + $0xfa] sm:$0xff]
      %v449 = vld [vmem:[#allocation2 + $0x10a] sm:$0xff]
      %v450 = vld [vmem:[#allocation2 + $0x112] sm:$0xff]
      %v451 = vld [vmem:[#allocation2 + $0x122] sm:$0xff]
      %v452 = vld [vmem:[#allocation2 + $0x12a] sm:$0xff]
      %v453 = vld [vmem:[#allocation2 + $0x13a] sm:$0xff]
      %v454 = vld [vmem:[#allocation2 + $0x142] sm:$0xff]
      %v455 = vld [vmem:[#allocation2 + $0x152] sm:$0xff]
      %v456 = vld [vmem:[#allocation2 + $0x15a] sm:$0xff]
      %v457 = vld [vmem:[#allocation2 + $0x16a] sm:$0xff]
      %v458 = vld [vmem:[#allocation2 + $0x172] sm:$0xff]
      %v459 = vld [vmem:[%s330] sm:$0xff]
      %v460 = vld [vmem:[%s330 + $0x8] sm:$0xff]
      %v461 = vld [vmem:[%s330 + $0x18] sm:$0xff]
      %v462 = vld [vmem:[%s330 + $0x20] sm:$0xff]
      %v463 = vld [vmem:[%s330 + $0x30] sm:$0xff]
      %v464 = vld [vmem:[%s330 + $0x38] sm:$0xff]
      %v465 = vld [vmem:[%s330 + $0x48] sm:$0xff]
      %v466 = vld [vmem:[%s330 + $0x50] sm:$0xff]
      %v467 = vld [vmem:[%s330 + $0x60] sm:$0xff]
      %v468 = vld [vmem:[%s330 + $0x68] sm:$0xff]
      %v469 = vld [vmem:[%s330 + $0x78] sm:$0xff]
      %v470 = vld [vmem:[%s330 + $0x80] sm:$0xff]
      %v471 = vld [vmem:[%s330 + $0x90] sm:$0xff]
      %v472 = vld [vmem:[%s330 + $0x98] sm:$0xff]
      %v473 = vld [vmem:[%s330 + $0xa8] sm:$0xff]
      %v474 = vld [vmem:[%s330 + $0xb0] sm:$0xff]
      %v475 = vld [vmem:[%s330 + $0xc0] sm:$0xff]
      %v476 = vld [vmem:[%s330 + $0xc8] sm:$0xff]
      %v477 = vld [vmem:[%s330 + $0xd8] sm:$0xff]
      %v478 = vld [vmem:[%s330 + $0xe0] sm:$0xff]
      %v479 = vld [vmem:[%s330 + $0xf0] sm:$0xff]
      %v480 = vld [vmem:[%s330 + $0xf8] sm:$0xff]
      %v481 = vld [vmem:[%s330 + $0x108] sm:$0xff]
      %v482 = vld [vmem:[%s330 + $0x110] sm:$0xff]
      %v483 = vld [vmem:[%s330 + $0x120] sm:$0xff]
      %v484 = vld [vmem:[%s330 + $0x128] sm:$0xff]
      %v485 = vld [vmem:[%s330 + $0x138] sm:$0xff]
      %v486 = vld [vmem:[%s330 + $0x140] sm:$0xff]
      %v487 = vld [vmem:[%s330 + $0x150] sm:$0xff]
      %v488 = vld [vmem:[%s330 + $0x158] sm:$0xff]
      %v489 = vld [vmem:[%s330 + $0x168] sm:$0xff]
      %v490 = vld [vmem:[%s330 + $0x170] sm:$0xff]
      %v491 = vld [vmem:[%s330 + $0x1] sm:$0xff]
      %v492 = vld [vmem:[%s330 + $0x9] sm:$0xff]
      %v493 = vld [vmem:[%s330 + $0x19] sm:$0xff]
      %v494 = vld [vmem:[%s330 + $0x21] sm:$0xff]
      %v495 = vld [vmem:[%s330 + $0x31] sm:$0xff]
      %v496 = vld [vmem:[%s330 + $0x39] sm:$0xff]
      %v497 = vld [vmem:[%s330 + $0x49] sm:$0xff]
      %v498 = vld [vmem:[%s330 + $0x51] sm:$0xff]
      %v499 = vld [vmem:[%s330 + $0x61] sm:$0xff]
      %v500 = vld [vmem:[%s330 + $0x69] sm:$0xff]
      %v501 = vld [vmem:[%s330 + $0x79] sm:$0xff]
      %v502 = vld [vmem:[%s330 + $0x81] sm:$0xff]
      %v503 = vld [vmem:[%s330 + $0x91] sm:$0xff]
      %v504 = vld [vmem:[%s330 + $0x99] sm:$0xff]
      %v505 = vld [vmem:[%s330 + $0xa9] sm:$0xff]
      %v506 = vld [vmem:[%s330 + $0xb1] sm:$0xff]
      %v507 = vld [vmem:[%s330 + $0xc1] sm:$0xff]
      %v508 = vld [vmem:[%s330 + $0xc9] sm:$0xff]
      %v509 = vld [vmem:[%s330 + $0xd9] sm:$0xff]
      %v510 = vld [vmem:[%s330 + $0xe1] sm:$0xff]
      %v511 = vld [vmem:[%s330 + $0xf1] sm:$0xff]
      %v512 = vld [vmem:[%s330 + $0xf9] sm:$0xff]
      %v513 = vld [vmem:[%s330 + $0x109] sm:$0xff]
      %v514 = vld [vmem:[%s330 + $0x111] sm:$0xff]
      %v515 = vld [vmem:[%s330 + $0x121] sm:$0xff]
      %v516 = vld [vmem:[%s330 + $0x129] sm:$0xff]
      %v517 = vld [vmem:[%s330 + $0x139] sm:$0xff]
      %v518 = vld [vmem:[%s330 + $0x141] sm:$0xff]
      %v519 = vld [vmem:[%s330 + $0x151] sm:$0xff]
      %v520 = vld [vmem:[%s330 + $0x159] sm:$0xff]
      %v521 = vld [vmem:[%s330 + $0x169] sm:$0xff]
      %v522 = vld [vmem:[%s330 + $0x171] sm:$0xff]
      %v523 = vld [vmem:[%s330 + $0x2] sm:$0xff]
      %v524 = vld [vmem:[%s330 + $0xa] sm:$0xff]
      %v525 = vld [vmem:[%s330 + $0x1a] sm:$0xff]
      %v526 = vld [vmem:[%s330 + $0x22] sm:$0xff]
      %v527 = vld [vmem:[%s330 + $0x32] sm:$0xff]
      %v528 = vld [vmem:[%s330 + $0x3a] sm:$0xff]
      %v529 = vld [vmem:[%s330 + $0x4a] sm:$0xff]
      %v530 = vld [vmem:[%s330 + $0x52] sm:$0xff]
      %v531 = vld [vmem:[%s330 + $0x62] sm:$0xff]
      %v532 = vld [vmem:[%s330 + $0x6a] sm:$0xff]
      %v533 = vld [vmem:[%s330 + $0x7a] sm:$0xff]
      %v534 = vld [vmem:[%s330 + $0x82] sm:$0xff]
      %v535 = vld [vmem:[%s330 + $0x92] sm:$0xff]
      %v536 = vld [vmem:[%s330 + $0x9a] sm:$0xff]
      %v537 = vld [vmem:[%s330 + $0xaa] sm:$0xff]
      %v538 = vld [vmem:[%s330 + $0xb2] sm:$0xff]
      %v539 = vld [vmem:[%s330 + $0xc2] sm:$0xff]
      %v540 = vld [vmem:[%s330 + $0xca] sm:$0xff]
      %v541 = vld [vmem:[%s330 + $0xda] sm:$0xff]
      %v542 = vld [vmem:[%s330 + $0xe2] sm:$0xff]
      %v543 = vld [vmem:[%s330 + $0xf2] sm:$0xff]
      %v544 = vld [vmem:[%s330 + $0xfa] sm:$0xff]
      %v545 = vld [vmem:[%s330 + $0x10a] sm:$0xff]
      %v546 = vld [vmem:[%s330 + $0x112] sm:$0xff]
      %v547 = vld [vmem:[%s330 + $0x122] sm:$0xff]
      %v548 = vld [vmem:[%s330 + $0x12a] sm:$0xff]
      %v549 = vld [vmem:[%s330 + $0x13a] sm:$0xff]
      %v550 = vld [vmem:[%s330 + $0x142] sm:$0xff]
      %v551 = vld [vmem:[%s330 + $0x152] sm:$0xff]
      %v552 = vld [vmem:[%s330 + $0x15a] sm:$0xff]
      %v553 = vld [vmem:[%s330 + $0x16a] sm:$0xff]
      %v554 = vld [vmem:[%s330 + $0x172] sm:$0xff]
      %s555 = scalar_lea.vmem [#allocation2], 48
      %v556 = vld [vmem:[%s555] sm:$0xff]
      %v557 = vld [vmem:[%s555 + $0x8] sm:$0xff]
      %v558 = vld [vmem:[%s555 + $0x18] sm:$0xff]
      %v559 = vld [vmem:[%s555 + $0x20] sm:$0xff]
      %v560 = vld [vmem:[%s555 + $0x30] sm:$0xff]
      %v561 = vld [vmem:[%s555 + $0x38] sm:$0xff]
      %v562 = vld [vmem:[%s555 + $0x48] sm:$0xff]
      %v563 = vld [vmem:[%s555 + $0x50] sm:$0xff]
      %v564 = vld [vmem:[%s555 + $0x60] sm:$0xff]
      %v565 = vld [vmem:[%s555 + $0x68] sm:$0xff]
      %v566 = vld [vmem:[%s555 + $0x78] sm:$0xff]
      %v567 = vld [vmem:[%s555 + $0x80] sm:$0xff]
      %v568 = vld [vmem:[%s555 + $0x90] sm:$0xff]
      %v569 = vld [vmem:[%s555 + $0x98] sm:$0xff]
      %v570 = vld [vmem:[%s555 + $0xa8] sm:$0xff]
      %v571 = vld [vmem:[%s555 + $0xb0] sm:$0xff]
      %v572 = vld [vmem:[%s555 + $0xc0] sm:$0xff]
      %v573 = vld [vmem:[%s555 + $0xc8] sm:$0xff]
      %v574 = vld [vmem:[%s555 + $0xd8] sm:$0xff]
      %v575 = vld [vmem:[%s555 + $0xe0] sm:$0xff]
      %v576 = vld [vmem:[%s555 + $0xf0] sm:$0xff]
      %v577 = vld [vmem:[%s555 + $0xf8] sm:$0xff]
      %v578 = vld [vmem:[%s555 + $0x108] sm:$0xff]
      %v579 = vld [vmem:[%s555 + $0x110] sm:$0xff]
      %v580 = vld [vmem:[%s555 + $0x120] sm:$0xff]
      %v581 = vld [vmem:[%s555 + $0x128] sm:$0xff]
      %v582 = vld [vmem:[%s555 + $0x138] sm:$0xff]
      %v583 = vld [vmem:[%s555 + $0x140] sm:$0xff]
      %v584 = vld [vmem:[%s555 + $0x150] sm:$0xff]
      %v585 = vld [vmem:[%s555 + $0x158] sm:$0xff]
      %v586 = vld [vmem:[%s555 + $0x168] sm:$0xff]
      %v587 = vld [vmem:[%s555 + $0x170] sm:$0xff]
      %v588 = vld [vmem:[%s555 + $0x1] sm:$0xff]
      %v589 = vld [vmem:[%s555 + $0x9] sm:$0xff]
      %v590 = vld [vmem:[%s555 + $0x19] sm:$0xff]
      %v591 = vld [vmem:[%s555 + $0x21] sm:$0xff]
      %v592 = vld [vmem:[%s555 + $0x31] sm:$0xff]
      %v593 = vld [vmem:[%s555 + $0x39] sm:$0xff]
      %v594 = vld [vmem:[%s555 + $0x49] sm:$0xff]
      %v595 = vld [vmem:[%s555 + $0x51] sm:$0xff]
      %v596 = vld [vmem:[%s555 + $0x61] sm:$0xff]
      %v597 = vld [vmem:[%s555 + $0x69] sm:$0xff]
      %v598 = vld [vmem:[%s555 + $0x79] sm:$0xff]
      %v599 = vld [vmem:[%s555 + $0x81] sm:$0xff]
      %v600 = vld [vmem:[%s555 + $0x91] sm:$0xff]
      %v601 = vld [vmem:[%s555 + $0x99] sm:$0xff]
      %v602 = vld [vmem:[%s555 + $0xa9] sm:$0xff]
      %v603 = vld [vmem:[%s555 + $0xb1] sm:$0xff]
      %v604 = vld [vmem:[%s555 + $0xc1] sm:$0xff]
      %v605 = vld [vmem:[%s555 + $0xc9] sm:$0xff]
      %v606 = vld [vmem:[%s555 + $0xd9] sm:$0xff]
      %v607 = vld [vmem:[%s555 + $0xe1] sm:$0xff]
      %v608 = vld [vmem:[%s555 + $0xf1] sm:$0xff]
      %v609 = vld [vmem:[%s555 + $0xf9] sm:$0xff]
      %v610 = vld [vmem:[%s555 + $0x109] sm:$0xff]
      %v611 = vld [vmem:[%s555 + $0x111] sm:$0xff]
      %v612 = vld [vmem:[%s555 + $0x121] sm:$0xff]
      %v613 = vld [vmem:[%s555 + $0x129] sm:$0xff]
      %v614 = vld [vmem:[%s555 + $0x139] sm:$0xff]
      %v615 = vld [vmem:[%s555 + $0x141] sm:$0xff]
      %v616 = vld [vmem:[%s555 + $0x151] sm:$0xff]
      %v617 = vld [vmem:[%s555 + $0x159] sm:$0xff]
      %v618 = vld [vmem:[%s555 + $0x169] sm:$0xff]
      %v619 = vld [vmem:[%s555 + $0x171] sm:$0xff]
      %v620 = vld [vmem:[%s555 + $0x2] sm:$0xff]
      %v621 = vld [vmem:[%s555 + $0xa] sm:$0xff]
      %v622 = vld [vmem:[%s555 + $0x1a] sm:$0xff]
      %v623 = vld [vmem:[%s555 + $0x22] sm:$0xff]
      %v624 = vld [vmem:[%s555 + $0x32] sm:$0xff]
      %v625 = vld [vmem:[%s555 + $0x3a] sm:$0xff]
      %v626 = vld [vmem:[%s555 + $0x4a] sm:$0xff]
      %v627 = vld [vmem:[%s555 + $0x52] sm:$0xff]
      %v628 = vld [vmem:[%s555 + $0x62] sm:$0xff]
      %v629 = vld [vmem:[%s555 + $0x6a] sm:$0xff]
      %v630 = vld [vmem:[%s555 + $0x7a] sm:$0xff]
      %v631 = vld [vmem:[%s555 + $0x82] sm:$0xff]
      %v632 = vld [vmem:[%s555 + $0x92] sm:$0xff]
      %v633 = vld [vmem:[%s555 + $0x9a] sm:$0xff]
      %v634 = vld [vmem:[%s555 + $0xaa] sm:$0xff]
      %v635 = vld [vmem:[%s555 + $0xb2] sm:$0xff]
      %v636 = vld [vmem:[%s555 + $0xc2] sm:$0xff]
      %v637 = vld [vmem:[%s555 + $0xca] sm:$0xff]
      %v638 = vld [vmem:[%s555 + $0xda] sm:$0xff]
      %v639 = vld [vmem:[%s555 + $0xe2] sm:$0xff]
      %v640 = vld [vmem:[%s555 + $0xf2] sm:$0xff]
      %v641 = vld [vmem:[%s555 + $0xfa] sm:$0xff]
      %v642 = vld [vmem:[%s555 + $0x10a] sm:$0xff]
      %v643 = vld [vmem:[%s555 + $0x112] sm:$0xff]
      %v644 = vld [vmem:[%s555 + $0x122] sm:$0xff]
      %v645 = vld [vmem:[%s555 + $0x12a] sm:$0xff]
      %v646 = vld [vmem:[%s555 + $0x13a] sm:$0xff]
      %v647 = vld [vmem:[%s555 + $0x142] sm:$0xff]
      %v648 = vld [vmem:[%s555 + $0x152] sm:$0xff]
      %v649 = vld [vmem:[%s555 + $0x15a] sm:$0xff]
      %v650 = vld [vmem:[%s555 + $0x16a] sm:$0xff]
      %v651 = vld [vmem:[%s555 + $0x172] sm:$0xff]
      %684 = vrot.lane.b32.xlu0 %v395, 4
      %v685 = vpop.permute.xlu0 %684
      %686 = vrot.lane.b32.xlu0 %v396, 4
      %v687 = vpop.permute.xlu0 %686
      %688 = vrot.lane.b32.xlu0 %v397, 4
      %v689 = vpop.permute.xlu0 %688
      %690 = vrot.lane.b32.xlu0 %v398, 4
      %v691 = vpop.permute.xlu0 %690
      %692 = vrot.lane.b32.xlu0 %v399, 4
      %v693 = vpop.permute.xlu0 %692
      %694 = vrot.lane.b32.xlu0 %v400, 4
      %v695 = vpop.permute.xlu0 %694
      %696 = vrot.lane.b32.xlu0 %v401, 4
      %v697 = vpop.permute.xlu0 %696
      %698 = vrot.lane.b32.xlu0 %v402, 4
      %v699 = vpop.permute.xlu0 %698
      %700 = vrot.lane.b32.xlu0 %v403, 4
      %v701 = vpop.permute.xlu0 %700
      %702 = vrot.lane.b32.xlu0 %v404, 4
      %v703 = vpop.permute.xlu0 %702
      %704 = vrot.lane.b32.xlu0 %v405, 4
      %v705 = vpop.permute.xlu0 %704
      %706 = vrot.lane.b32.xlu0 %v406, 4
      %v707 = vpop.permute.xlu0 %706
      %708 = vrot.lane.b32.xlu0 %v407, 4
      %v709 = vpop.permute.xlu0 %708
      %710 = vrot.lane.b32.xlu0 %v408, 4
      %v711 = vpop.permute.xlu0 %710
      %712 = vrot.lane.b32.xlu0 %v409, 4
      %v713 = vpop.permute.xlu0 %712
      %714 = vrot.lane.b32.xlu0 %v410, 4
      %v715 = vpop.permute.xlu0 %714
      %716 = vrot.lane.b32.xlu0 %v411, 4
      %v717 = vpop.permute.xlu0 %716
      %718 = vrot.lane.b32.xlu0 %v412, 4
      %v719 = vpop.permute.xlu0 %718
      %720 = vrot.lane.b32.xlu0 %v413, 4
      %v721 = vpop.permute.xlu0 %720
      %722 = vrot.lane.b32.xlu0 %v414, 4
      %v723 = vpop.permute.xlu0 %722
      %724 = vrot.lane.b32.xlu0 %v415, 4
      %v725 = vpop.permute.xlu0 %724
      %726 = vrot.lane.b32.xlu0 %v416, 4
      %v727 = vpop.permute.xlu0 %726
      %728 = vrot.lane.b32.xlu0 %v417, 4
      %v729 = vpop.permute.xlu0 %728
      %730 = vrot.lane.b32.xlu0 %v418, 4
      %v731 = vpop.permute.xlu0 %730
      %732 = vrot.lane.b32.xlu0 %v419, 4
      %v733 = vpop.permute.xlu0 %732
      %734 = vrot.lane.b32.xlu0 %v420, 4
      %v735 = vpop.permute.xlu0 %734
      %736 = vrot.lane.b32.xlu0 %v421, 4
      %v737 = vpop.permute.xlu0 %736
      %738 = vrot.lane.b32.xlu0 %v422, 4
      %v739 = vpop.permute.xlu0 %738
      %740 = vrot.lane.b32.xlu0 %v423, 4
      %v741 = vpop.permute.xlu0 %740
      %742 = vrot.lane.b32.xlu0 %v424, 4
      %v743 = vpop.permute.xlu0 %742
      %744 = vrot.lane.b32.xlu0 %v425, 4
      %v745 = vpop.permute.xlu0 %744
      %746 = vrot.lane.b32.xlu0 %v426, 4
      %v747 = vpop.permute.xlu0 %746
      %812 = vrot.lane.b32.xlu0 %v427, 8
      %v813 = vpop.permute.xlu0 %812
      %814 = vrot.lane.b32.xlu0 %v428, 8
      %v815 = vpop.permute.xlu0 %814
      %816 = vrot.lane.b32.xlu0 %v429, 8
      %v817 = vpop.permute.xlu0 %816
      %818 = vrot.lane.b32.xlu0 %v430, 8
      %v819 = vpop.permute.xlu0 %818
      %820 = vrot.lane.b32.xlu0 %v431, 8
      %v821 = vpop.permute.xlu0 %820
      %822 = vrot.lane.b32.xlu0 %v432, 8
      %v823 = vpop.permute.xlu0 %822
      %824 = vrot.lane.b32.xlu0 %v433, 8
      %v825 = vpop.permute.xlu0 %824
      %826 = vrot.lane.b32.xlu0 %v434, 8
      %v827 = vpop.permute.xlu0 %826
      %828 = vrot.lane.b32.xlu0 %v435, 8
      %v829 = vpop.permute.xlu0 %828
      %830 = vrot.lane.b32.xlu0 %v436, 8
      %v831 = vpop.permute.xlu0 %830
      %832 = vrot.lane.b32.xlu0 %v437, 8
      %v833 = vpop.permute.xlu0 %832
      %834 = vrot.lane.b32.xlu0 %v438, 8
      %v835 = vpop.permute.xlu0 %834
      %836 = vrot.lane.b32.xlu0 %v439, 8
      %v837 = vpop.permute.xlu0 %836
      %838 = vrot.lane.b32.xlu0 %v440, 8
      %v839 = vpop.permute.xlu0 %838
      %840 = vrot.lane.b32.xlu0 %v441, 8
      %v841 = vpop.permute.xlu0 %840
      %842 = vrot.lane.b32.xlu0 %v442, 8
      %v843 = vpop.permute.xlu0 %842
      %844 = vrot.lane.b32.xlu0 %v443, 8
      %v845 = vpop.permute.xlu0 %844
      %846 = vrot.lane.b32.xlu0 %v444, 8
      %v847 = vpop.permute.xlu0 %846
      %848 = vrot.lane.b32.xlu0 %v445, 8
      %v849 = vpop.permute.xlu0 %848
      %850 = vrot.lane.b32.xlu0 %v446, 8
      %v851 = vpop.permute.xlu0 %850
      %852 = vrot.lane.b32.xlu0 %v447, 8
      %v853 = vpop.permute.xlu0 %852
      %854 = vrot.lane.b32.xlu0 %v448, 8
      %v855 = vpop.permute.xlu0 %854
      %856 = vrot.lane.b32.xlu0 %v449, 8
      %v857 = vpop.permute.xlu0 %856
      %858 = vrot.lane.b32.xlu0 %v450, 8
      %v859 = vpop.permute.xlu0 %858
      %860 = vrot.lane.b32.xlu0 %v451, 8
      %v861 = vpop.permute.xlu0 %860
      %862 = vrot.lane.b32.xlu0 %v452, 8
      %v863 = vpop.permute.xlu0 %862
      %864 = vrot.lane.b32.xlu0 %v453, 8
      %v865 = vpop.permute.xlu0 %864
      %866 = vrot.lane.b32.xlu0 %v454, 8
      %v867 = vpop.permute.xlu0 %866
      %868 = vrot.lane.b32.xlu0 %v455, 8
      %v869 = vpop.permute.xlu0 %868
      %870 = vrot.lane.b32.xlu0 %v456, 8
      %v871 = vpop.permute.xlu0 %870
      %872 = vrot.lane.b32.xlu0 %v457, 8
      %v873 = vpop.permute.xlu0 %872
      %874 = vrot.lane.b32.xlu0 %v458, 8
      %v875 = vpop.permute.xlu0 %874
      %940 = vrot.lane.b32.xlu0 %v459, 12
      %v941 = vpop.permute.xlu0 %940
      %942 = vrot.lane.b32.xlu0 %v460, 12
      %v943 = vpop.permute.xlu0 %942
      %944 = vrot.lane.b32.xlu0 %v461, 12
      %v945 = vpop.permute.xlu0 %944
      %946 = vrot.lane.b32.xlu0 %v462, 12
      %v947 = vpop.permute.xlu0 %946
      %948 = vrot.lane.b32.xlu0 %v463, 12
      %v949 = vpop.permute.xlu0 %948
      %950 = vrot.lane.b32.xlu0 %v464, 12
      %v951 = vpop.permute.xlu0 %950
      %952 = vrot.lane.b32.xlu0 %v465, 12
      %v953 = vpop.permute.xlu0 %952
      %954 = vrot.lane.b32.xlu0 %v466, 12
      %v955 = vpop.permute.xlu0 %954
      %956 = vrot.lane.b32.xlu0 %v467, 12
      %v957 = vpop.permute.xlu0 %956
      %958 = vrot.lane.b32.xlu0 %v468, 12
      %v959 = vpop.permute.xlu0 %958
      %960 = vrot.lane.b32.xlu0 %v469, 12
      %v961 = vpop.permute.xlu0 %960
      %962 = vrot.lane.b32.xlu0 %v470, 12
      %v963 = vpop.permute.xlu0 %962
      %964 = vrot.lane.b32.xlu0 %v471, 12
      %v965 = vpop.permute.xlu0 %964
      %966 = vrot.lane.b32.xlu0 %v472, 12
      %v967 = vpop.permute.xlu0 %966
      %968 = vrot.lane.b32.xlu0 %v473, 12
      %v969 = vpop.permute.xlu0 %968
      %970 = vrot.lane.b32.xlu0 %v474, 12
      %v971 = vpop.permute.xlu0 %970
      %972 = vrot.lane.b32.xlu0 %v475, 12
      %v973 = vpop.permute.xlu0 %972
      %974 = vrot.lane.b32.xlu0 %v476, 12
      %v975 = vpop.permute.xlu0 %974
      %976 = vrot.lane.b32.xlu0 %v477, 12
      %v977 = vpop.permute.xlu0 %976
      %978 = vrot.lane.b32.xlu0 %v478, 12
      %v979 = vpop.permute.xlu0 %978
      %980 = vrot.lane.b32.xlu0 %v479, 12
      %v981 = vpop.permute.xlu0 %980
      %982 = vrot.lane.b32.xlu0 %v480, 12
      %v983 = vpop.permute.xlu0 %982
      %984 = vrot.lane.b32.xlu0 %v481, 12
      %v985 = vpop.permute.xlu0 %984
      %986 = vrot.lane.b32.xlu0 %v482, 12
      %v987 = vpop.permute.xlu0 %986
      %988 = vrot.lane.b32.xlu0 %v483, 12
      %v989 = vpop.permute.xlu0 %988
      %990 = vrot.lane.b32.xlu0 %v484, 12
      %v991 = vpop.permute.xlu0 %990
      %992 = vrot.lane.b32.xlu0 %v485, 12
      %v993 = vpop.permute.xlu0 %992
      %994 = vrot.lane.b32.xlu0 %v486, 12
      %v995 = vpop.permute.xlu0 %994
      %996 = vrot.lane.b32.xlu0 %v487, 12
      %v997 = vpop.permute.xlu0 %996
      %998 = vrot.lane.b32.xlu0 %v488, 12
      %v999 = vpop.permute.xlu0 %998
      %1000 = vrot.lane.b32.xlu0 %v489, 12
      %v1001 = vpop.permute.xlu0 %1000
      %1002 = vrot.lane.b32.xlu0 %v490, 12
      %v1003 = vpop.permute.xlu0 %1002
      %1068 = vrot.lane.b32.xlu0 %v491, 16
      %v1069 = vpop.permute.xlu0 %1068
      %1070 = vrot.lane.b32.xlu0 %v492, 16
      %v1071 = vpop.permute.xlu0 %1070
      %1072 = vrot.lane.b32.xlu0 %v493, 16
      %v1073 = vpop.permute.xlu0 %1072
      %1074 = vrot.lane.b32.xlu0 %v494, 16
      %v1075 = vpop.permute.xlu0 %1074
      %1076 = vrot.lane.b32.xlu0 %v495, 16
      %v1077 = vpop.permute.xlu0 %1076
      %1078 = vrot.lane.b32.xlu0 %v496, 16
      %v1079 = vpop.permute.xlu0 %1078
      %1080 = vrot.lane.b32.xlu0 %v497, 16
      %v1081 = vpop.permute.xlu0 %1080
      %1082 = vrot.lane.b32.xlu0 %v498, 16
      %v1083 = vpop.permute.xlu0 %1082
      %1084 = vrot.lane.b32.xlu0 %v499, 16
      %v1085 = vpop.permute.xlu0 %1084
      %1086 = vrot.lane.b32.xlu0 %v500, 16
      %v1087 = vpop.permute.xlu0 %1086
      %1088 = vrot.lane.b32.xlu0 %v501, 16
      %v1089 = vpop.permute.xlu0 %1088
      %1090 = vrot.lane.b32.xlu0 %v502, 16
      %v1091 = vpop.permute.xlu0 %1090
      %1092 = vrot.lane.b32.xlu0 %v503, 16
      %v1093 = vpop.permute.xlu0 %1092
      %1094 = vrot.lane.b32.xlu0 %v504, 16
      %v1095 = vpop.permute.xlu0 %1094
      %1096 = vrot.lane.b32.xlu0 %v505, 16
      %v1097 = vpop.permute.xlu0 %1096
      %1098 = vrot.lane.b32.xlu0 %v506, 16
      %v1099 = vpop.permute.xlu0 %1098
      %1100 = vrot.lane.b32.xlu0 %v507, 16
      %v1101 = vpop.permute.xlu0 %1100
      %1102 = vrot.lane.b32.xlu0 %v508, 16
      %v1103 = vpop.permute.xlu0 %1102
      %1104 = vrot.lane.b32.xlu0 %v509, 16
      %v1105 = vpop.permute.xlu0 %1104
      %1106 = vrot.lane.b32.xlu0 %v510, 16
      %v1107 = vpop.permute.xlu0 %1106
      %1108 = vrot.lane.b32.xlu0 %v511, 16
      %v1109 = vpop.permute.xlu0 %1108
      %1110 = vrot.lane.b32.xlu0 %v512, 16
      %v1111 = vpop.permute.xlu0 %1110
      %1112 = vrot.lane.b32.xlu0 %v513, 16
      %v1113 = vpop.permute.xlu0 %1112
      %1114 = vrot.lane.b32.xlu0 %v514, 16
      %v1115 = vpop.permute.xlu0 %1114
      %1116 = vrot.lane.b32.xlu0 %v515, 16
      %v1117 = vpop.permute.xlu0 %1116
      %1118 = vrot.lane.b32.xlu0 %v516, 16
      %v1119 = vpop.permute.xlu0 %1118
      %1120 = vrot.lane.b32.xlu0 %v517, 16
      %v1121 = vpop.permute.xlu0 %1120
      %1122 = vrot.lane.b32.xlu0 %v518, 16
      %v1123 = vpop.permute.xlu0 %1122
      %1124 = vrot.lane.b32.xlu0 %v519, 16
      %v1125 = vpop.permute.xlu0 %1124
      %1126 = vrot.lane.b32.xlu0 %v520, 16
      %v1127 = vpop.permute.xlu0 %1126
      %1128 = vrot.lane.b32.xlu0 %v521, 16
      %v1129 = vpop.permute.xlu0 %1128
      %1130 = vrot.lane.b32.xlu0 %v522, 16
      %v1131 = vpop.permute.xlu0 %1130
      %1196 = vrot.lane.b32.xlu0 %v523, 20
      %v1197 = vpop.permute.xlu0 %1196
      %1198 = vrot.lane.b32.xlu0 %v524, 20
      %v1199 = vpop.permute.xlu0 %1198
      %1200 = vrot.lane.b32.xlu0 %v525, 20
      %v1201 = vpop.permute.xlu0 %1200
      %1202 = vrot.lane.b32.xlu0 %v526, 20
      %v1203 = vpop.permute.xlu0 %1202
      %1204 = vrot.lane.b32.xlu0 %v527, 20
      %v1205 = vpop.permute.xlu0 %1204
      %1206 = vrot.lane.b32.xlu0 %v528, 20
      %v1207 = vpop.permute.xlu0 %1206
      %1208 = vrot.lane.b32.xlu0 %v529, 20
      %v1209 = vpop.permute.xlu0 %1208
      %1210 = vrot.lane.b32.xlu0 %v530, 20
      %v1211 = vpop.permute.xlu0 %1210
      %1212 = vrot.lane.b32.xlu0 %v531, 20
      %v1213 = vpop.permute.xlu0 %1212
      %1214 = vrot.lane.b32.xlu0 %v532, 20
      %v1215 = vpop.permute.xlu0 %1214
      %1216 = vrot.lane.b32.xlu0 %v533, 20
      %v1217 = vpop.permute.xlu0 %1216
      %1218 = vrot.lane.b32.xlu0 %v534, 20
      %v1219 = vpop.permute.xlu0 %1218
      %1220 = vrot.lane.b32.xlu0 %v535, 20
      %v1221 = vpop.permute.xlu0 %1220
      %1222 = vrot.lane.b32.xlu0 %v536, 20
      %v1223 = vpop.permute.xlu0 %1222
      %1224 = vrot.lane.b32.xlu0 %v537, 20
      %v1225 = vpop.permute.xlu0 %1224
      %1226 = vrot.lane.b32.xlu0 %v538, 20
      %v1227 = vpop.permute.xlu0 %1226
      %1228 = vrot.lane.b32.xlu0 %v539, 20
      %v1229 = vpop.permute.xlu0 %1228
      %1230 = vrot.lane.b32.xlu0 %v540, 20
      %v1231 = vpop.permute.xlu0 %1230
      %1232 = vrot.lane.b32.xlu0 %v541, 20
      %v1233 = vpop.permute.xlu0 %1232
      %1234 = vrot.lane.b32.xlu0 %v542, 20
      %v1235 = vpop.permute.xlu0 %1234
      %1236 = vrot.lane.b32.xlu0 %v543, 20
      %v1237 = vpop.permute.xlu0 %1236
      %1238 = vrot.lane.b32.xlu0 %v544, 20
      %v1239 = vpop.permute.xlu0 %1238
      %1240 = vrot.lane.b32.xlu0 %v545, 20
      %v1241 = vpop.permute.xlu0 %1240
      %1242 = vrot.lane.b32.xlu0 %v546, 20
      %v1243 = vpop.permute.xlu0 %1242
      %1244 = vrot.lane.b32.xlu0 %v547, 20
      %v1245 = vpop.permute.xlu0 %1244
      %1246 = vrot.lane.b32.xlu0 %v548, 20
      %v1247 = vpop.permute.xlu0 %1246
      %1248 = vrot.lane.b32.xlu0 %v549, 20
      %v1249 = vpop.permute.xlu0 %1248
      %1250 = vrot.lane.b32.xlu0 %v550, 20
      %v1251 = vpop.permute.xlu0 %1250
      %1252 = vrot.lane.b32.xlu0 %v551, 20
      %v1253 = vpop.permute.xlu0 %1252
      %1254 = vrot.lane.b32.xlu0 %v552, 20
      %v1255 = vpop.permute.xlu0 %1254
      %1256 = vrot.lane.b32.xlu0 %v553, 20
      %v1257 = vpop.permute.xlu0 %1256
      %1258 = vrot.lane.b32.xlu0 %v554, 20
      %v1259 = vpop.permute.xlu0 %1258
      %1324 = vrot.lane.b32.xlu0 %v556, 24
      %v1325 = vpop.permute.xlu0 %1324
      %1326 = vrot.lane.b32.xlu0 %v557, 24
      %v1327 = vpop.permute.xlu0 %1326
      %1328 = vrot.lane.b32.xlu0 %v558, 24
      %v1329 = vpop.permute.xlu0 %1328
      %1330 = vrot.lane.b32.xlu0 %v559, 24
      %v1331 = vpop.permute.xlu0 %1330
      %1332 = vrot.lane.b32.xlu0 %v560, 24
      %v1333 = vpop.permute.xlu0 %1332
      %1334 = vrot.lane.b32.xlu0 %v561, 24
      %v1335 = vpop.permute.xlu0 %1334
      %1336 = vrot.lane.b32.xlu0 %v562, 24
      %v1337 = vpop.permute.xlu0 %1336
      %1338 = vrot.lane.b32.xlu0 %v563, 24
      %v1339 = vpop.permute.xlu0 %1338
      %1340 = vrot.lane.b32.xlu0 %v564, 24
      %v1341 = vpop.permute.xlu0 %1340
      %1342 = vrot.lane.b32.xlu0 %v565, 24
      %v1343 = vpop.permute.xlu0 %1342
      %1344 = vrot.lane.b32.xlu0 %v566, 24
      %v1345 = vpop.permute.xlu0 %1344
      %1346 = vrot.lane.b32.xlu0 %v567, 24
      %v1347 = vpop.permute.xlu0 %1346
      %1348 = vrot.lane.b32.xlu0 %v568, 24
      %v1349 = vpop.permute.xlu0 %1348
      %1350 = vrot.lane.b32.xlu0 %v569, 24
      %v1351 = vpop.permute.xlu0 %1350
      %1352 = vrot.lane.b32.xlu0 %v570, 24
      %v1353 = vpop.permute.xlu0 %1352
      %1354 = vrot.lane.b32.xlu0 %v571, 24
      %v1355 = vpop.permute.xlu0 %1354
      %1356 = vrot.lane.b32.xlu0 %v572, 24
      %v1357 = vpop.permute.xlu0 %1356
      %1358 = vrot.lane.b32.xlu0 %v573, 24
      %v1359 = vpop.permute.xlu0 %1358
      %1360 = vrot.lane.b32.xlu0 %v574, 24
      %v1361 = vpop.permute.xlu0 %1360
      %1362 = vrot.lane.b32.xlu0 %v575, 24
      %v1363 = vpop.permute.xlu0 %1362
      %1364 = vrot.lane.b32.xlu0 %v576, 24
      %v1365 = vpop.permute.xlu0 %1364
      %1366 = vrot.lane.b32.xlu0 %v577, 24
      %v1367 = vpop.permute.xlu0 %1366
      %1368 = vrot.lane.b32.xlu0 %v578, 24
      %v1369 = vpop.permute.xlu0 %1368
      %1370 = vrot.lane.b32.xlu0 %v579, 24
      %v1371 = vpop.permute.xlu0 %1370
      %1372 = vrot.lane.b32.xlu0 %v580, 24
      %v1373 = vpop.permute.xlu0 %1372
      %1374 = vrot.lane.b32.xlu0 %v581, 24
      %v1375 = vpop.permute.xlu0 %1374
      %1376 = vrot.lane.b32.xlu0 %v582, 24
      %v1377 = vpop.permute.xlu0 %1376
      %1378 = vrot.lane.b32.xlu0 %v583, 24
      %v1379 = vpop.permute.xlu0 %1378
      %1380 = vrot.lane.b32.xlu0 %v584, 24
      %v1381 = vpop.permute.xlu0 %1380
      %1382 = vrot.lane.b32.xlu0 %v585, 24
      %v1383 = vpop.permute.xlu0 %1382
      %1384 = vrot.lane.b32.xlu0 %v586, 24
      %v1385 = vpop.permute.xlu0 %1384
      %1386 = vrot.lane.b32.xlu0 %v587, 24
      %v1387 = vpop.permute.xlu0 %1386
      %1452 = vrot.lane.b32.xlu0 %v588, 28
      %v1453 = vpop.permute.xlu0 %1452
      %1454 = vrot.lane.b32.xlu0 %v589, 28
      %v1455 = vpop.permute.xlu0 %1454
      %1456 = vrot.lane.b32.xlu0 %v590, 28
      %v1457 = vpop.permute.xlu0 %1456
      %1458 = vrot.lane.b32.xlu0 %v591, 28
      %v1459 = vpop.permute.xlu0 %1458
      %1460 = vrot.lane.b32.xlu0 %v592, 28
      %v1461 = vpop.permute.xlu0 %1460
      %1462 = vrot.lane.b32.xlu0 %v593, 28
      %v1463 = vpop.permute.xlu0 %1462
      %1464 = vrot.lane.b32.xlu0 %v594, 28
      %v1465 = vpop.permute.xlu0 %1464
      %1466 = vrot.lane.b32.xlu0 %v595, 28
      %v1467 = vpop.permute.xlu0 %1466
      %1468 = vrot.lane.b32.xlu0 %v596, 28
      %v1469 = vpop.permute.xlu0 %1468
      %1470 = vrot.lane.b32.xlu0 %v597, 28
      %v1471 = vpop.permute.xlu0 %1470
      %1472 = vrot.lane.b32.xlu0 %v598, 28
      %v1473 = vpop.permute.xlu0 %1472
      %1474 = vrot.lane.b32.xlu0 %v599, 28
      %v1475 = vpop.permute.xlu0 %1474
      %1476 = vrot.lane.b32.xlu0 %v600, 28
      %v1477 = vpop.permute.xlu0 %1476
      %1478 = vrot.lane.b32.xlu0 %v601, 28
      %v1479 = vpop.permute.xlu0 %1478
      %1480 = vrot.lane.b32.xlu0 %v602, 28
      %v1481 = vpop.permute.xlu0 %1480
      %1482 = vrot.lane.b32.xlu0 %v603, 28
      %v1483 = vpop.permute.xlu0 %1482
      %1484 = vrot.lane.b32.xlu0 %v604, 28
      %v1485 = vpop.permute.xlu0 %1484
      %1486 = vrot.lane.b32.xlu0 %v605, 28
      %v1487 = vpop.permute.xlu0 %1486
      %1488 = vrot.lane.b32.xlu0 %v606, 28
      %v1489 = vpop.permute.xlu0 %1488
      %1490 = vrot.lane.b32.xlu0 %v607, 28
      %v1491 = vpop.permute.xlu0 %1490
      %1492 = vrot.lane.b32.xlu0 %v608, 28
      %v1493 = vpop.permute.xlu0 %1492
      %1494 = vrot.lane.b32.xlu0 %v609, 28
      %v1495 = vpop.permute.xlu0 %1494
      %1496 = vrot.lane.b32.xlu0 %v610, 28
      %v1497 = vpop.permute.xlu0 %1496
      %1498 = vrot.lane.b32.xlu0 %v611, 28
      %v1499 = vpop.permute.xlu0 %1498
      %1500 = vrot.lane.b32.xlu0 %v612, 28
      %v1501 = vpop.permute.xlu0 %1500
      %1502 = vrot.lane.b32.xlu0 %v613, 28
      %v1503 = vpop.permute.xlu0 %1502
      %1504 = vrot.lane.b32.xlu0 %v614, 28
      %v1505 = vpop.permute.xlu0 %1504
      %1506 = vrot.lane.b32.xlu0 %v615, 28
      %v1507 = vpop.permute.xlu0 %1506
      %1508 = vrot.lane.b32.xlu0 %v616, 28
      %v1509 = vpop.permute.xlu0 %1508
      %1510 = vrot.lane.b32.xlu0 %v617, 28
      %v1511 = vpop.permute.xlu0 %1510
      %1512 = vrot.lane.b32.xlu0 %v618, 28
      %v1513 = vpop.permute.xlu0 %1512
      %1514 = vrot.lane.b32.xlu0 %v619, 28
      %v1515 = vpop.permute.xlu0 %1514
      %1580 = vrot.lane.b32.xlu0 %v620, 32
      %v1581 = vpop.permute.xlu0 %1580
      %1582 = vrot.lane.b32.xlu0 %v621, 32
      %v1583 = vpop.permute.xlu0 %1582
      %1584 = vrot.lane.b32.xlu0 %v622, 32
      %v1585 = vpop.permute.xlu0 %1584
      %1586 = vrot.lane.b32.xlu0 %v623, 32
      %v1587 = vpop.permute.xlu0 %1586
      %1588 = vrot.lane.b32.xlu0 %v624, 32
      %v1589 = vpop.permute.xlu0 %1588
      %1590 = vrot.lane.b32.xlu0 %v625, 32
      %v1591 = vpop.permute.xlu0 %1590
      %1592 = vrot.lane.b32.xlu0 %v626, 32
      %v1593 = vpop.permute.xlu0 %1592
      %1594 = vrot.lane.b32.xlu0 %v627, 32
      %v1595 = vpop.permute.xlu0 %1594
      %1596 = vrot.lane.b32.xlu0 %v628, 32
      %v1597 = vpop.permute.xlu0 %1596
      %1598 = vrot.lane.b32.xlu0 %v629, 32
      %v1599 = vpop.permute.xlu0 %1598
      %1600 = vrot.lane.b32.xlu0 %v630, 32
      %v1601 = vpop.permute.xlu0 %1600
      %1602 = vrot.lane.b32.xlu0 %v631, 32
      %v1603 = vpop.permute.xlu0 %1602
      %1604 = vrot.lane.b32.xlu0 %v632, 32
      %v1605 = vpop.permute.xlu0 %1604
      %1606 = vrot.lane.b32.xlu0 %v633, 32
      %v1607 = vpop.permute.xlu0 %1606
      %1608 = vrot.lane.b32.xlu0 %v634, 32
      %v1609 = vpop.permute.xlu0 %1608
      %1610 = vrot.lane.b32.xlu0 %v635, 32
      %v1611 = vpop.permute.xlu0 %1610
      %1612 = vrot.lane.b32.xlu0 %v636, 32
      %v1613 = vpop.permute.xlu0 %1612
      %1614 = vrot.lane.b32.xlu0 %v637, 32
      %v1615 = vpop.permute.xlu0 %1614
      %1616 = vrot.lane.b32.xlu0 %v638, 32
      %v1617 = vpop.permute.xlu0 %1616
      %1618 = vrot.lane.b32.xlu0 %v639, 32
      %v1619 = vpop.permute.xlu0 %1618
      %1620 = vrot.lane.b32.xlu0 %v640, 32
      %v1621 = vpop.permute.xlu0 %1620
      %1622 = vrot.lane.b32.xlu0 %v641, 32
      %v1623 = vpop.permute.xlu0 %1622
      %1624 = vrot.lane.b32.xlu0 %v642, 32
      %v1625 = vpop.permute.xlu0 %1624
      %1626 = vrot.lane.b32.xlu0 %v643, 32
      %v1627 = vpop.permute.xlu0 %1626
      %1628 = vrot.lane.b32.xlu0 %v644, 32
      %v1629 = vpop.permute.xlu0 %1628
      %1630 = vrot.lane.b32.xlu0 %v645, 32
      %v1631 = vpop.permute.xlu0 %1630
      %1632 = vrot.lane.b32.xlu0 %v646, 32
      %v1633 = vpop.permute.xlu0 %1632
      %1634 = vrot.lane.b32.xlu0 %v647, 32
      %v1635 = vpop.permute.xlu0 %1634
      %1636 = vrot.lane.b32.xlu0 %v648, 32
      %v1637 = vpop.permute.xlu0 %1636
      %1638 = vrot.lane.b32.xlu0 %v649, 32
      %v1639 = vpop.permute.xlu0 %1638
      %1640 = vrot.lane.b32.xlu0 %v650, 32
      %v1641 = vpop.permute.xlu0 %1640
      %1642 = vrot.lane.b32.xlu0 %v651, 32
      %v1643 = vpop.permute.xlu0 %1642
      %v1676 = vsel %vm274, %v363, %v685
      %v1677 = vsel %vm274, %v364, %v687
      %v1678 = vsel %vm274, %v365, %v689
      %v1679 = vsel %vm274, %v366, %v691
      %v1680 = vsel %vm274, %v367, %v693
      %v1681 = vsel %vm274, %v368, %v695
      %v1682 = vsel %vm274, %v369, %v697
      %v1683 = vsel %vm274, %v370, %v699
      %v1684 = vsel %vm274, %v371, %v701
      %v1685 = vsel %vm274, %v372, %v703
      %v1686 = vsel %vm274, %v373, %v705
      %v1687 = vsel %vm274, %v374, %v707
      %v1688 = vsel %vm274, %v375, %v709
      %v1689 = vsel %vm274, %v376, %v711
      %v1690 = vsel %vm274, %v377, %v713
      %v1691 = vsel %vm274, %v378, %v715
      %v1692 = vsel %vm274, %v379, %v717
      %v1693 = vsel %vm274, %v380, %v719
      %v1694 = vsel %vm274, %v381, %v721
      %v1695 = vsel %vm274, %v382, %v723
      %v1696 = vsel %vm274, %v383, %v725
      %v1697 = vsel %vm274, %v384, %v727
      %v1698 = vsel %vm274, %v385, %v729
      %v1699 = vsel %vm274, %v386, %v731
      %v1700 = vsel %vm274, %v387, %v733
      %v1701 = vsel %vm274, %v388, %v735
      %v1702 = vsel %vm274, %v389, %v737
      %v1703 = vsel %vm274, %v390, %v739
      %v1704 = vsel %vm274, %v391, %v741
      %v1705 = vsel %vm274, %v392, %v743
      %v1706 = vsel %vm274, %v393, %v745
      %v1707 = vsel %vm274, %v394, %v747
      %vm1708 = vcmask 64512
      %v1709 = vsel %vm1708, %v1676, %v813
      %v1710 = vsel %vm1708, %v1677, %v815
      %v1711 = vsel %vm1708, %v1678, %v817
      %v1712 = vsel %vm1708, %v1679, %v819
      %v1713 = vsel %vm1708, %v1680, %v821
      %v1714 = vsel %vm1708, %v1681, %v823
      %v1715 = vsel %vm1708, %v1682, %v825
      %v1716 = vsel %vm1708, %v1683, %v827
      %v1717 = vsel %vm1708, %v1684, %v829
      %v1718 = vsel %vm1708, %v1685, %v831
      %v1719 = vsel %vm1708, %v1686, %v833
      %v1720 = vsel %vm1708, %v1687, %v835
      %v1721 = vsel %vm1708, %v1688, %v837
      %v1722 = vsel %vm1708, %v1689, %v839
      %v1723 = vsel %vm1708, %v1690, %v841
      %v1724 = vsel %vm1708, %v1691, %v843
      %v1725 = vsel %vm1708, %v1692, %v845
      %v1726 = vsel %vm1708, %v1693, %v847
      %v1727 = vsel %vm1708, %v1694, %v849
      %v1728 = vsel %vm1708, %v1695, %v851
      %v1729 = vsel %vm1708, %v1696, %v853
      %v1730 = vsel %vm1708, %v1697, %v855
      %v1731 = vsel %vm1708, %v1698, %v857
      %v1732 = vsel %vm1708, %v1699, %v859
      %v1733 = vsel %vm1708, %v1700, %v861
      %v1734 = vsel %vm1708, %v1701, %v863
      %v1735 = vsel %vm1708, %v1702, %v865
      %v1736 = vsel %vm1708, %v1703, %v867
      %v1737 = vsel %vm1708, %v1704, %v869
      %v1738 = vsel %vm1708, %v1705, %v871
      %v1739 = vsel %vm1708, %v1706, %v873
      %v1740 = vsel %vm1708, %v1707, %v875
      %vm1741 = vcmask 97280
      %v1742 = vsel %vm1741, %v1709, %v941
      %v1743 = vsel %vm1741, %v1710, %v943
      %v1744 = vsel %vm1741, %v1711, %v945
      %v1745 = vsel %vm1741, %v1712, %v947
      %v1746 = vsel %vm1741, %v1713, %v949
      %v1747 = vsel %vm1741, %v1714, %v951
      %v1748 = vsel %vm1741, %v1715, %v953
      %v1749 = vsel %vm1741, %v1716, %v955
      %v1750 = vsel %vm1741, %v1717, %v957
      %v1751 = vsel %vm1741, %v1718, %v959
      %v1752 = vsel %vm1741, %v1719, %v961
      %v1753 = vsel %vm1741, %v1720, %v963
      %v1754 = vsel %vm1741, %v1721, %v965
      %v1755 = vsel %vm1741, %v1722, %v967
      %v1756 = vsel %vm1741, %v1723, %v969
      %v1757 = vsel %vm1741, %v1724, %v971
      %v1758 = vsel %vm1741, %v1725, %v973
      %v1759 = vsel %vm1741, %v1726, %v975
      %v1760 = vsel %vm1741, %v1727, %v977
      %v1761 = vsel %vm1741, %v1728, %v979
      %v1762 = vsel %vm1741, %v1729, %v981
      %v1763 = vsel %vm1741, %v1730, %v983
      %v1764 = vsel %vm1741, %v1731, %v985
      %v1765 = vsel %vm1741, %v1732, %v987
      %v1766 = vsel %vm1741, %v1733, %v989
      %v1767 = vsel %vm1741, %v1734, %v991
      %v1768 = vsel %vm1741, %v1735, %v993
      %v1769 = vsel %vm1741, %v1736, %v995
      %v1770 = vsel %vm1741, %v1737, %v997
      %v1771 = vsel %vm1741, %v1738, %v999
      %v1772 = vsel %vm1741, %v1739, %v1001
      %v1773 = vsel %vm1741, %v1740, %v1003
      %vm1774 = vcmask 130048
      %v1775 = vsel %vm1774, %v1742, %v1069
      %v1776 = vsel %vm1774, %v1743, %v1071
      %v1777 = vsel %vm1774, %v1744, %v1073
      %v1778 = vsel %vm1774, %v1745, %v1075
      %v1779 = vsel %vm1774, %v1746, %v1077
      %v1780 = vsel %vm1774, %v1747, %v1079
      %v1781 = vsel %vm1774, %v1748, %v1081
      %v1782 = vsel %vm1774, %v1749, %v1083
      %v1783 = vsel %vm1774, %v1750, %v1085
      %v1784 = vsel %vm1774, %v1751, %v1087
      %v1785 = vsel %vm1774, %v1752, %v1089
      %v1786 = vsel %vm1774, %v1753, %v1091
      %v1787 = vsel %vm1774, %v1754, %v1093
      %v1788 = vsel %vm1774, %v1755, %v1095
      %v1789 = vsel %vm1774, %v1756, %v1097
      %v1790 = vsel %vm1774, %v1757, %v1099
      %v1791 = vsel %vm1774, %v1758, %v1101
      %v1792 = vsel %vm1774, %v1759, %v1103
      %v1793 = vsel %vm1774, %v1760, %v1105
      %v1794 = vsel %vm1774, %v1761, %v1107
      %v1795 = vsel %vm1774, %v1762, %v1109
      %v1796 = vsel %vm1774, %v1763, %v1111
      %v1797 = vsel %vm1774, %v1764, %v1113
      %v1798 = vsel %vm1774, %v1765, %v1115
      %v1799 = vsel %vm1774, %v1766, %v1117
      %v1800 = vsel %vm1774, %v1767, %v1119
      %v1801 = vsel %vm1774, %v1768, %v1121
      %v1802 = vsel %vm1774, %v1769, %v1123
      %v1803 = vsel %vm1774, %v1770, %v1125
      %v1804 = vsel %vm1774, %v1771, %v1127
      %v1805 = vsel %vm1774, %v1772, %v1129
      %v1806 = vsel %vm1774, %v1773, %v1131
      %vm1807 = vcmask 162816
      %v1808 = vsel %vm1807, %v1775, %v1197
      %v1809 = vsel %vm1807, %v1776, %v1199
      %v1810 = vsel %vm1807, %v1777, %v1201
      %v1811 = vsel %vm1807, %v1778, %v1203
      %v1812 = vsel %vm1807, %v1779, %v1205
      %v1813 = vsel %vm1807, %v1780, %v1207
      %v1814 = vsel %vm1807, %v1781, %v1209
      %v1815 = vsel %vm1807, %v1782, %v1211
      %v1816 = vsel %vm1807, %v1783, %v1213
      %v1817 = vsel %vm1807, %v1784, %v1215
      %v1818 = vsel %vm1807, %v1785, %v1217
      %v1819 = vsel %vm1807, %v1786, %v1219
      %v1820 = vsel %vm1807, %v1787, %v1221
      %v1821 = vsel %vm1807, %v1788, %v1223
      %v1822 = vsel %vm1807, %v1789, %v1225
      %v1823 = vsel %vm1807, %v1790, %v1227
      %v1824 = vsel %vm1807, %v1791, %v1229
      %v1825 = vsel %vm1807, %v1792, %v1231
      %v1826 = vsel %vm1807, %v1793, %v1233
      %v1827 = vsel %vm1807, %v1794, %v1235
      %v1828 = vsel %vm1807, %v1795, %v1237
      %v1829 = vsel %vm1807, %v1796, %v1239
      %v1830 = vsel %vm1807, %v1797, %v1241
      %v1831 = vsel %vm1807, %v1798, %v1243
      %v1832 = vsel %vm1807, %v1799, %v1245
      %v1833 = vsel %vm1807, %v1800, %v1247
      %v1834 = vsel %vm1807, %v1801, %v1249
      %v1835 = vsel %vm1807, %v1802, %v1251
      %v1836 = vsel %vm1807, %v1803, %v1253
      %v1837 = vsel %vm1807, %v1804, %v1255
      %v1838 = vsel %vm1807, %v1805, %v1257
      %v1839 = vsel %vm1807, %v1806, %v1259
      %vm1840 = vcmask 195584
      %v1841 = vsel %vm1840, %v1808, %v1325
      %v1842 = vsel %vm1840, %v1809, %v1327
      %v1843 = vsel %vm1840, %v1810, %v1329
      %v1844 = vsel %vm1840, %v1811, %v1331
      %v1845 = vsel %vm1840, %v1812, %v1333
      %v1846 = vsel %vm1840, %v1813, %v1335
      %v1847 = vsel %vm1840, %v1814, %v1337
      %v1848 = vsel %vm1840, %v1815, %v1339
      %v1849 = vsel %vm1840, %v1816, %v1341
      %v1850 = vsel %vm1840, %v1817, %v1343
      %v1851 = vsel %vm1840, %v1818, %v1345
      %v1852 = vsel %vm1840, %v1819, %v1347
      %v1853 = vsel %vm1840, %v1820, %v1349
      %v1854 = vsel %vm1840, %v1821, %v1351
      %v1855 = vsel %vm1840, %v1822, %v1353
      %v1856 = vsel %vm1840, %v1823, %v1355
      %v1857 = vsel %vm1840, %v1824, %v1357
      %v1858 = vsel %vm1840, %v1825, %v1359
      %v1859 = vsel %vm1840, %v1826, %v1361
      %v1860 = vsel %vm1840, %v1827, %v1363
      %v1861 = vsel %vm1840, %v1828, %v1365
      %v1862 = vsel %vm1840, %v1829, %v1367
      %v1863 = vsel %vm1840, %v1830, %v1369
      %v1864 = vsel %vm1840, %v1831, %v1371
      %v1865 = vsel %vm1840, %v1832, %v1373
      %v1866 = vsel %vm1840, %v1833, %v1375
      %v1867 = vsel %vm1840, %v1834, %v1377
      %v1868 = vsel %vm1840, %v1835, %v1379
      %v1869 = vsel %vm1840, %v1836, %v1381
      %v1870 = vsel %vm1840, %v1837, %v1383
      %v1871 = vsel %vm1840, %v1838, %v1385
      %v1872 = vsel %vm1840, %v1839, %v1387
      %vm1873 = vcmask 228352
      %v1874 = vsel %vm1873, %v1841, %v1453
      %v1875 = vsel %vm1873, %v1842, %v1455
      %v1876 = vsel %vm1873, %v1843, %v1457
      %v1877 = vsel %vm1873, %v1844, %v1459
      %v1878 = vsel %vm1873, %v1845, %v1461
      %v1879 = vsel %vm1873, %v1846, %v1463
      %v1880 = vsel %vm1873, %v1847, %v1465
      %v1881 = vsel %vm1873, %v1848, %v1467
      %v1882 = vsel %vm1873, %v1849, %v1469
      %v1883 = vsel %vm1873, %v1850, %v1471
      %v1884 = vsel %vm1873, %v1851, %v1473
      %v1885 = vsel %vm1873, %v1852, %v1475
      %v1886 = vsel %vm1873, %v1853, %v1477
      %v1887 = vsel %vm1873, %v1854, %v1479
      %v1888 = vsel %vm1873, %v1855, %v1481
      %v1889 = vsel %vm1873, %v1856, %v1483
      %v1890 = vsel %vm1873, %v1857, %v1485
      %v1891 = vsel %vm1873, %v1858, %v1487
      %v1892 = vsel %vm1873, %v1859, %v1489
      %v1893 = vsel %vm1873, %v1860, %v1491
      %v1894 = vsel %vm1873, %v1861, %v1493
      %v1895 = vsel %vm1873, %v1862, %v1495
      %v1896 = vsel %vm1873, %v1863, %v1497
      %v1897 = vsel %vm1873, %v1864, %v1499
      %v1898 = vsel %vm1873, %v1865, %v1501
      %v1899 = vsel %vm1873, %v1866, %v1503
      %v1900 = vsel %vm1873, %v1867, %v1505
      %v1901 = vsel %vm1873, %v1868, %v1507
      %v1902 = vsel %vm1873, %v1869, %v1509
      %v1903 = vsel %vm1873, %v1870, %v1511
      %v1904 = vsel %vm1873, %v1871, %v1513
      %v1905 = vsel %vm1873, %v1872, %v1515
      %vm1906 = vcmask 261120
      %v1907 = vsel %vm1906, %v1874, %v1581
      %v1908 = vsel %vm1906, %v1875, %v1583
      %v1909 = vsel %vm1906, %v1876, %v1585
      %v1910 = vsel %vm1906, %v1877, %v1587
      %v1911 = vsel %vm1906, %v1878, %v1589
      %v1912 = vsel %vm1906, %v1879, %v1591
      %v1913 = vsel %vm1906, %v1880, %v1593
      %v1914 = vsel %vm1906, %v1881, %v1595
      %v1915 = vsel %vm1906, %v1882, %v1597
      %v1916 = vsel %vm1906, %v1883, %v1599
      %v1917 = vsel %vm1906, %v1884, %v1601
      %v1918 = vsel %vm1906, %v1885, %v1603
      %v1919 = vsel %vm1906, %v1886, %v1605
      %v1920 = vsel %vm1906, %v1887, %v1607
      %v1921 = vsel %vm1906, %v1888, %v1609
      %v1922 = vsel %vm1906, %v1889, %v1611
      %v1923 = vsel %vm1906, %v1890, %v1613
      %v1924 = vsel %vm1906, %v1891, %v1615
      %v1925 = vsel %vm1906, %v1892, %v1617
      %v1926 = vsel %vm1906, %v1893, %v1619
      %v1927 = vsel %vm1906, %v1894, %v1621
      %v1928 = vsel %vm1906, %v1895, %v1623
      %v1929 = vsel %vm1906, %v1896, %v1625
      %v1930 = vsel %vm1906, %v1897, %v1627
      %v1931 = vsel %vm1906, %v1898, %v1629
      %v1932 = vsel %vm1906, %v1899, %v1631
      %v1933 = vsel %vm1906, %v1900, %v1633
      %v1934 = vsel %vm1906, %v1901, %v1635
      %v1935 = vsel %vm1906, %v1902, %v1637
      %v1936 = vsel %vm1906, %v1903, %v1639
      %v1937 = vsel %vm1906, %v1904, %v1641
      %v1938 = vsel %vm1906, %v1905, %v1643
      %v1939 = vpack.c.bf16 %v1908, %v1907
      %v1940 = vpack.c.bf16 %v1910, %v1909
      %v1941 = vpack.c.bf16 %v1912, %v1911
      %v1942 = vpack.c.bf16 %v1914, %v1913
      %v1943 = vpack.c.bf16 %v1916, %v1915
      %v1944 = vpack.c.bf16 %v1918, %v1917
      %v1945 = vpack.c.bf16 %v1920, %v1919
      %v1946 = vpack.c.bf16 %v1922, %v1921
      %v1947 = vpack.c.bf16 %v1924, %v1923
      %v1948 = vpack.c.bf16 %v1926, %v1925
      %v1949 = vpack.c.bf16 %v1928, %v1927
      %v1950 = vpack.c.bf16 %v1930, %v1929
      %v1951 = vpack.c.bf16 %v1932, %v1931
      %v1952 = vpack.c.bf16 %v1934, %v1933
      %v1953 = vpack.c.bf16 %v1936, %v1935
      %v1954 = vpack.c.bf16 %v1938, %v1937
      %v1955 = vld [vmem:[%s2] sm:$0xf]
      %v1956 = vld [vmem:[%s2 + $0x4] sm:$0xf]
      %v1957 = vld [vmem:[%s2 + $0x8] sm:$0xf]
      %v1958 = vld [vmem:[%s2 + $0xc] sm:$0xf]
      %v1959 = vld [vmem:[%s2 + $0x10] sm:$0x3]
      %v1965 = vunpack.c.l.b16 %v1955
      %v1966 = vunpack.c.l.b16 %v1956
      %v1967 = vunpack.c.l.b16 %v1957
      %v1968 = vunpack.c.l.b16 %v1958
      %v1969 = vunpack.c.l.b16 %v1959
      %v1970 = vpack.c.b16 %v1966, %v1965
      %v1971 = vpack.c.b16 %v1968, %v1967
      %v1972 = vpack.c.b16 %v1969, %v1969
      %vm1975 = vcmask 293888
      %v1977 = vsel %vm1975, %v1939, 0
      %v1980 = vsel %vm1975, %v1940, 0
      %v1983 = vsel %vm1975, %v1941, 0
      %v1986 = vsel %vm1975, %v1942, 0
      %v1989 = vsel %vm1975, %v1943, 0
      %v1992 = vsel %vm1975, %v1944, 0
      %v1995 = vsel %vm1975, %v1945, 0
      %v1998 = vsel %vm1975, %v1946, 0
      %v2001 = vsel %vm1975, %v1947, 0
      %v2004 = vsel %vm1975, %v1948, 0
      %v2007 = vsel %vm1975, %v1949, 0
      %v2010 = vsel %vm1975, %v1950, 0
      %v2013 = vsel %vm1975, %v1951, 0
      %v2016 = vsel %vm1975, %v1952, 0
      %v2019 = vsel %vm1975, %v1953, 0
      %v2022 = vsel %vm1975, %v1954, 0
      %vm2024 = vcmask 1041408
      %v2026 = vsel %vm2024, %v1972, 0
      %2028 = vmatpush.bf16.msra.mxu0 0
      %2029 = vmatpush.bf16.msra.mxu0 0
      %2030 = vmatpush.bf16.msra.mxu0 0
      %2031 = vmatpush.bf16.msra.mxu0 0
      %2032 = vmatpush.bf16.msra.mxu0 0
      %2033 = vmatpush.bf16.msra.mxu0 %v2026
      %2034 = vmatpush.bf16.msra.mxu0 %v1971
      %2035 = vmatpush.bf16.msra.mxu0 %v1970
      %2036 = vmatmul.bf16.gmra.mxu0 %v1977
      %v2037 = vpop.f32.mrf.mxu0
      %v2038 = vadd.f32 0.0, %v2037
      %v2039 = vpop.f32.mrf.mxu0
      %v2040 = vadd.f32 0.0, %v2039
      %2041 = vmatmul.bf16.gmra.mxu0 %v1980
      %v2042 = vpop.f32.mrf.mxu0
      %v2043 = vadd.f32 0.0, %v2042
      %v2044 = vpop.f32.mrf.mxu0
      %v2045 = vadd.f32 0.0, %v2044
      %2046 = vmatmul.bf16.gmra.mxu0 %v1983
      %v2047 = vpop.f32.mrf.mxu0
      %v2048 = vadd.f32 0.0, %v2047
      %v2049 = vpop.f32.mrf.mxu0
      %v2050 = vadd.f32 0.0, %v2049
      %2051 = vmatmul.bf16.gmra.mxu0 %v1986
      %v2052 = vpop.f32.mrf.mxu0
      %v2053 = vadd.f32 0.0, %v2052
      %v2054 = vpop.f32.mrf.mxu0
      %v2055 = vadd.f32 0.0, %v2054
      %2056 = vmatmul.bf16.gmra.mxu0 %v1989
      %v2057 = vpop.f32.mrf.mxu0
      %v2058 = vadd.f32 0.0, %v2057
      %v2059 = vpop.f32.mrf.mxu0
      %v2060 = vadd.f32 0.0, %v2059
      %2061 = vmatmul.bf16.gmra.mxu0 %v1992
      %v2062 = vpop.f32.mrf.mxu0
      %v2063 = vadd.f32 0.0, %v2062
      %v2064 = vpop.f32.mrf.mxu0
      %v2065 = vadd.f32 0.0, %v2064
      %2066 = vmatmul.bf16.gmra.mxu0 %v1995
      %v2067 = vpop.f32.mrf.mxu0
      %v2068 = vadd.f32 0.0, %v2067
      %v2069 = vpop.f32.mrf.mxu0
      %v2070 = vadd.f32 0.0, %v2069
      %2071 = vmatmul.bf16.gmra.mxu0 %v1998
      %v2072 = vpop.f32.mrf.mxu0
      %v2073 = vadd.f32 0.0, %v2072
      %v2074 = vpop.f32.mrf.mxu0
      %v2075 = vadd.f32 0.0, %v2074
      %2076 = vmatmul.bf16.gmra.mxu0 %v2001
      %v2077 = vpop.f32.mrf.mxu0
      %v2078 = vadd.f32 0.0, %v2077
      %v2079 = vpop.f32.mrf.mxu0
      %v2080 = vadd.f32 0.0, %v2079
      %2081 = vmatmul.bf16.gmra.mxu0 %v2004
      %v2082 = vpop.f32.mrf.mxu0
      %v2083 = vadd.f32 0.0, %v2082
      %v2084 = vpop.f32.mrf.mxu0
      %v2085 = vadd.f32 0.0, %v2084
      %2086 = vmatmul.bf16.gmra.mxu0 %v2007
      %v2087 = vpop.f32.mrf.mxu0
      %v2088 = vadd.f32 0.0, %v2087
      %v2089 = vpop.f32.mrf.mxu0
      %v2090 = vadd.f32 0.0, %v2089
      %2091 = vmatmul.bf16.gmra.mxu0 %v2010
      %v2092 = vpop.f32.mrf.mxu0
      %v2093 = vadd.f32 0.0, %v2092
      %v2094 = vpop.f32.mrf.mxu0
      %v2095 = vadd.f32 0.0, %v2094
      %2096 = vmatmul.bf16.gmra.mxu0 %v2013
      %v2097 = vpop.f32.mrf.mxu0
      %v2098 = vadd.f32 0.0, %v2097
      %v2099 = vpop.f32.mrf.mxu0
      %v2100 = vadd.f32 0.0, %v2099
      %2101 = vmatmul.bf16.gmra.mxu0 %v2016
      %v2102 = vpop.f32.mrf.mxu0
      %v2103 = vadd.f32 0.0, %v2102
      %v2104 = vpop.f32.mrf.mxu0
      %v2105 = vadd.f32 0.0, %v2104
      %2106 = vmatmul.bf16.gmra.mxu0 %v2019
      %v2107 = vpop.f32.mrf.mxu0
      %v2108 = vadd.f32 0.0, %v2107
      %v2109 = vpop.f32.mrf.mxu0
      %v2110 = vadd.f32 0.0, %v2109
      %2111 = vmatmul.bf16.gmra.mxu0 %v2022
      %v2112 = vpop.f32.mrf.mxu0
      %v2113 = vadd.f32 0.0, %v2112
      %v2114 = vpop.f32.mrf.mxu0
      %v2115 = vadd.f32 0.0, %v2114
      %2116 = vdwg.mxu0
      %v2117 = vpack.c.bf16 %v2038, %v2038
      %v2118 = vpack.c.bf16 %v2040, %v2040
      %v2119 = vpack.c.bf16 %v2043, %v2043
      %v2120 = vpack.c.bf16 %v2045, %v2045
      %v2121 = vpack.c.bf16 %v2048, %v2048
      %v2122 = vpack.c.bf16 %v2050, %v2050
      %v2123 = vpack.c.bf16 %v2053, %v2053
      %v2124 = vpack.c.bf16 %v2055, %v2055
      %v2125 = vpack.c.bf16 %v2058, %v2058
      %v2126 = vpack.c.bf16 %v2060, %v2060
      %v2127 = vpack.c.bf16 %v2063, %v2063
      %v2128 = vpack.c.bf16 %v2065, %v2065
      %v2129 = vpack.c.bf16 %v2068, %v2068
      %v2130 = vpack.c.bf16 %v2070, %v2070
      %v2131 = vpack.c.bf16 %v2073, %v2073
      %v2132 = vpack.c.bf16 %v2075, %v2075
      %v2133 = vpack.c.bf16 %v2078, %v2078
      %v2134 = vpack.c.bf16 %v2080, %v2080
      %v2135 = vpack.c.bf16 %v2083, %v2083
      %v2136 = vpack.c.bf16 %v2085, %v2085
      %v2137 = vpack.c.bf16 %v2088, %v2088
      %v2138 = vpack.c.bf16 %v2090, %v2090
      %v2139 = vpack.c.bf16 %v2093, %v2093
      %v2140 = vpack.c.bf16 %v2095, %v2095
      %v2141 = vpack.c.bf16 %v2098, %v2098
      %v2142 = vpack.c.bf16 %v2100, %v2100
      %v2143 = vpack.c.bf16 %v2103, %v2103
      %v2144 = vpack.c.bf16 %v2105, %v2105
      %v2145 = vpack.c.bf16 %v2108, %v2108
      %v2146 = vpack.c.bf16 %v2110, %v2110
      %v2147 = vpack.c.bf16 %v2113, %v2113
      %v2148 = vpack.c.bf16 %v2115, %v2115
      %2149 = vst [vmem:[%s204] sm:$0xf] %v2117
      %2150 = vst [vmem:[%s204 + $0x4] sm:$0xf] %v2118
      %2151 = vst [vmem:[%s204 + $0x8] sm:$0xf] %v2119
      %2152 = vst [vmem:[%s204 + $0xc] sm:$0xf] %v2120
      %2153 = vst [vmem:[%s204 + $0x10] sm:$0xf] %v2121
      %2154 = vst [vmem:[%s204 + $0x14] sm:$0xf] %v2122
      %2155 = vst [vmem:[%s204 + $0x18] sm:$0xf] %v2123
      %2156 = vst [vmem:[%s204 + $0x1c] sm:$0xf] %v2124
      %2157 = vst [vmem:[%s204 + $0x20] sm:$0xf] %v2125
      %2158 = vst [vmem:[%s204 + $0x24] sm:$0xf] %v2126
      %2159 = vst [vmem:[%s204 + $0x28] sm:$0xf] %v2127
      %2160 = vst [vmem:[%s204 + $0x2c] sm:$0xf] %v2128
      %2161 = vst [vmem:[%s204 + $0x30] sm:$0xf] %v2129
      %2162 = vst [vmem:[%s204 + $0x34] sm:$0xf] %v2130
      %2163 = vst [vmem:[%s204 + $0x38] sm:$0xf] %v2131
      %2164 = vst [vmem:[%s204 + $0x3c] sm:$0xf] %v2132
      %2165 = vst [vmem:[%s204 + $0x40] sm:$0xf] %v2133
      %2166 = vst [vmem:[%s204 + $0x44] sm:$0xf] %v2134
      %2167 = vst [vmem:[%s204 + $0x48] sm:$0xf] %v2135
      %2168 = vst [vmem:[%s204 + $0x4c] sm:$0xf] %v2136
      %2169 = vst [vmem:[%s204 + $0x50] sm:$0xf] %v2137
      %2170 = vst [vmem:[%s204 + $0x54] sm:$0xf] %v2138
      %2171 = vst [vmem:[%s204 + $0x58] sm:$0xf] %v2139
      %2172 = vst [vmem:[%s204 + $0x5c] sm:$0xf] %v2140
      %2173 = vst [vmem:[%s204 + $0x60] sm:$0xf] %v2141
      %2174 = vst [vmem:[%s204 + $0x64] sm:$0xf] %v2142
      %2175 = vst [vmem:[%s204 + $0x68] sm:$0xf] %v2143
      %2176 = vst [vmem:[%s204 + $0x6c] sm:$0xf] %v2144
      %2177 = vst [vmem:[%s204 + $0x70] sm:$0xf] %v2145
      %2178 = vst [vmem:[%s204 + $0x74] sm:$0xf] %v2146
      %2179 = vst [vmem:[%s204 + $0x78] sm:$0xf] %v2147
      %2180 = vst [vmem:[%s204 + $0x7c] sm:$0xf] %v2148
      %v2181 = vadd.f32 %v2038, %v2040
      %v2182 = vadd.f32 %v2181, %v2043
      %v2183 = vadd.f32 %v2182, %v2045
      %v2184 = vadd.f32 %v2183, %v2048
      %v2185 = vadd.f32 %v2184, %v2050
      %v2186 = vadd.f32 %v2185, %v2053
      %v2187 = vadd.f32 %v2186, %v2055
      %v2188 = vadd.f32 %v2187, %v2058
      %v2189 = vadd.f32 %v2188, %v2060
      %v2190 = vadd.f32 %v2189, %v2063
      %v2191 = vadd.f32 %v2190, %v2065
      %v2192 = vadd.f32 %v2191, %v2068
      %v2193 = vadd.f32 %v2192, %v2070
      %v2194 = vadd.f32 %v2193, %v2073
      %v2195 = vadd.f32 %v2194, %v2075
      %v2196 = vadd.f32 %v2195, %v2078
      %v2197 = vadd.f32 %v2196, %v2080
      %v2198 = vadd.f32 %v2197, %v2083
      %v2199 = vadd.f32 %v2198, %v2085
      %v2200 = vadd.f32 %v2199, %v2088
      %v2201 = vadd.f32 %v2200, %v2090
      %v2202 = vadd.f32 %v2201, %v2093
      %v2203 = vadd.f32 %v2202, %v2095
      %v2204 = vadd.f32 %v2203, %v2098
      %v2205 = vadd.f32 %v2204, %v2100
      %v2206 = vadd.f32 %v2205, %v2103
      %v2207 = vadd.f32 %v2206, %v2105
      %v2208 = vadd.f32 %v2207, %v2108
      %v2209 = vadd.f32 %v2208, %v2110
      %v2210 = vadd.f32 %v2209, %v2113
      %v2211 = vadd.f32 %v2210, %v2115
      %v2212 = vrot.slane %v2211, 4
      %v2213 = vadd.f32 %v2211, %v2212
      %v2214 = vrot.slane %v2213, 2
      %v2215 = vadd.f32 %v2213, %v2214
      %v2216 = vrot.slane %v2215, 1
      %v2217 = vadd.f32 %v2215, %v2216
      %v2218 = vmul.f32 %v2038, %v2038
      %v2219 = vmul.f32 %v2040, %v2040
      %v2220 = vmul.f32 %v2043, %v2043
      %v2221 = vmul.f32 %v2045, %v2045
      %v2222 = vmul.f32 %v2048, %v2048
      %v2223 = vmul.f32 %v2050, %v2050
      %v2224 = vmul.f32 %v2053, %v2053
      %v2225 = vmul.f32 %v2055, %v2055
      %v2226 = vmul.f32 %v2058, %v2058
      %v2227 = vmul.f32 %v2060, %v2060
      %v2228 = vmul.f32 %v2063, %v2063
      %v2229 = vmul.f32 %v2065, %v2065
      %v2230 = vmul.f32 %v2068, %v2068
      %v2231 = vmul.f32 %v2070, %v2070
      %v2232 = vmul.f32 %v2073, %v2073
      %v2233 = vmul.f32 %v2075, %v2075
      %v2234 = vmul.f32 %v2078, %v2078
      %v2235 = vmul.f32 %v2080, %v2080
      %v2236 = vmul.f32 %v2083, %v2083
      %v2237 = vmul.f32 %v2085, %v2085
      %v2238 = vmul.f32 %v2088, %v2088
      %v2239 = vmul.f32 %v2090, %v2090
      %v2240 = vmul.f32 %v2093, %v2093
      %v2241 = vmul.f32 %v2095, %v2095
      %v2242 = vmul.f32 %v2098, %v2098
      %v2243 = vmul.f32 %v2100, %v2100
      %v2244 = vmul.f32 %v2103, %v2103
      %v2245 = vmul.f32 %v2105, %v2105
      %v2246 = vmul.f32 %v2108, %v2108
      %v2247 = vmul.f32 %v2110, %v2110
      %v2248 = vmul.f32 %v2113, %v2113
      %v2249 = vmul.f32 %v2115, %v2115
      %v2250 = vadd.f32 %v2218, %v2219
      %v2251 = vadd.f32 %v2250, %v2220
      %v2252 = vadd.f32 %v2251, %v2221
      %v2253 = vadd.f32 %v2252, %v2222
      %v2254 = vadd.f32 %v2253, %v2223
      %v2255 = vadd.f32 %v2254, %v2224
      %v2256 = vadd.f32 %v2255, %v2225
      %v2257 = vadd.f32 %v2256, %v2226
      %v2258 = vadd.f32 %v2257, %v2227
      %v2259 = vadd.f32 %v2258, %v2228
      %v2260 = vadd.f32 %v2259, %v2229
      %v2261 = vadd.f32 %v2260, %v2230
      %v2262 = vadd.f32 %v2261, %v2231
      %v2263 = vadd.f32 %v2262, %v2232
      %v2264 = vadd.f32 %v2263, %v2233
      %v2265 = vadd.f32 %v2264, %v2234
      %v2266 = vadd.f32 %v2265, %v2235
      %v2267 = vadd.f32 %v2266, %v2236
      %v2268 = vadd.f32 %v2267, %v2237
      %v2269 = vadd.f32 %v2268, %v2238
      %v2270 = vadd.f32 %v2269, %v2239
      %v2271 = vadd.f32 %v2270, %v2240
      %v2272 = vadd.f32 %v2271, %v2241
      %v2273 = vadd.f32 %v2272, %v2242
      %v2274 = vadd.f32 %v2273, %v2243
      %v2275 = vadd.f32 %v2274, %v2244
      %v2276 = vadd.f32 %v2275, %v2245
      %v2277 = vadd.f32 %v2276, %v2246
      %v2278 = vadd.f32 %v2277, %v2247
      %v2279 = vadd.f32 %v2278, %v2248
      %v2280 = vadd.f32 %v2279, %v2249
      %v2281 = vrot.slane %v2280, 4
      %v2282 = vadd.f32 %v2280, %v2281
      %v2283 = vrot.slane %v2282, 2
      %v2284 = vadd.f32 %v2282, %v2283
      %v2285 = vrot.slane %v2284, 1
      %v2286 = vadd.f32 %v2284, %v2285
      %vm2287 = vcmask 1040384
      %v2288 = vsel %vm2287, %v2217, %v2286
      %2289 = vst [vmem:[%s208] sm:$0x3] %v2288
      %p2290 = scmp.lt.s32.totalorder %s16, 1
      %s2291 = scalar_select %p2290, %s16, 1
      %s2292 = smul.addr %s2291, 32
      %s2293 = smul.addr %s2292, 4
      %s2294 = scalar_lea.vmem %s3, %s2293
      %p2295 = scmp.lt.s32.totalorder %s16, 1
      %s2296 = scalar_select %p2295, %s16, 1
      %s2297 = smul.addr %s2296, 2
      %s2298 = scalar_lea.vmem %s4, %s2297
      // Predicated region
      $region33: #{basic_conv2d_block.3} parent=31 // pred_check
        %p2299 = pneg %p102
      $region34: #{basic_conv2d_block.3} parent=31 // pred_check_branch
        %2301 = sbr.rel (%p2299) target = $region36
      $region35: #{basic_conv2d_block.3} parent=31 // pred_region
        _
      $region36: #{basic_conv2d_block.3} parent=31 // pred_fallthru
        _
      // Predicated region
      $region37: #{basic_conv2d_block.3} parent=31 // pred_check
        %p2302 = pneg %p128
      $region38: #{basic_conv2d_block.3} parent=31 // pred_check_branch
        %2304 = sbr.rel (%p2302) target = $region40
      $region39: #{basic_conv2d_block.3} parent=31 // pred_region
        _
      $region40: #{basic_conv2d_block.3} parent=31 // pred_fallthru
        _
    $region32: #{basic_conv2d_block.3} parent=5 // pred_fallthru
      _
    %p2305 = scmp.le.s32.totalorder 2, %s11
    // Predicated region
    $region41: #{basic_conv2d_block.3} parent=5 // pred_check
      %p2306 = pneg %p2305
    $region42: #{basic_conv2d_block.3} parent=5 // pred_check_branch
      %2308 = sbr.rel (%p2306) target = $region44
    $region43: #{basic_conv2d_block.3} parent=5 // pred_region
      %s2309 = ssub.s32 %s11, 2
      // Predicated region
      $region45: #{basic_conv2d_block.3} parent=43 // pred_check
        %p2310 = pneg %p108
      $region46: #{basic_conv2d_block.3} parent=43 // pred_check_branch
        %2312 = sbr.rel (%p2310) target = $region48
      $region47: #{basic_conv2d_block.3} parent=43 // pred_region
        %p2313 = scmp.lt.s32.totalorder %s17, 1
        %s2314 = scalar_select %p2313, %s17, 1
        %s2315 = smul.addr %s2314, 32
        %s2316 = smul.addr %s2315, 4
        %s2317 = scalar_lea.vmem %s3, %s2316
      $region48: #{basic_conv2d_block.3} parent=43 // pred_fallthru
        _
      // Predicated region
      $region49: #{basic_conv2d_block.3} parent=43 // pred_check
        %p2318 = pneg %p134
      $region50: #{basic_conv2d_block.3} parent=43 // pred_check_branch
        %2320 = sbr.rel (%p2318) target = $region52
      $region51: #{basic_conv2d_block.3} parent=43 // pred_region
        %p2321 = scmp.lt.s32.totalorder %s17, 1
        %s2322 = scalar_select %p2321, %s17, 1
        %s2323 = smul.addr %s2322, 2
        %s2324 = scalar_lea.vmem %s4, %s2323
      $region52: #{basic_conv2d_block.3} parent=43 // pred_fallthru
        _
    $region44: #{basic_conv2d_block.3} parent=5 // pred_fallthru
      _
  $region6: #{basic_conv2d_block.3} parent=0 // loop_footer
    %s15 = sadd.s32 1, %s11
  $region7: #{basic_conv2d_block.3} parent=0 // loop_footer_branch
    %10 = sbr.rel target = $region3
  $region8: #{basic_conv2d_block.3} parent=0 // loop_exit
    _

// kernel: basic_conv2d_block.4
$region0: #{basic_conv2d_block.4}
  #allocation0 [shape = 'u32[]', space=smem, size = 0x4, offset = 0x4, fixed_abs, tag = 'smem constant byte address 0x4 - core index']
  #allocation1 [shape = 'u32[72,128]{1,0:T(1,128)}', space=vmem, size = 0x9000, scoped, tag = 'internal scratch']
  #allocation2 [shape = 'f32[18,18,128]{2,1,0:T(8,128)}', space=vmem, size = 0x36000, scoped, tag = 'scratch operand']
  %s0 = inlined_call_operand.vmem [shape: bf16[2,16,16,128], index: 0, kind: input, shape index: {}]
  %s1 = inlined_call_operand.vmem [shape: f32[2,128], index: 1, kind: input, shape index: {}]
  %s2 = inlined_call_operand.vmem [shape: bf16[1152,128], index: 2, kind: input, shape index: {}]
  %s3 = inlined_call_operand.vmem [shape: bf16[2,256,128], index: 3, kind: output, shape index: {0}]
  %s4 = inlined_call_operand.vmem [shape: f32[2,2,128], index: 4, kind: output, shape index: {1}]
  %5 = xla_tuple %s3, %s4
  %s6 = sld [smem:[#allocation0]]
  $region53: #{basic_conv2d_block.4} parent=0
    _
  %s8 = ssub.s32 1, %s6
  %s9 = scalar_select 0, %s8, %s6
  loop: start=0, step=1, limit=4
  $region2: #{basic_conv2d_block.4} parent=0 // loop_pre_header
    _
  $region3: #{basic_conv2d_block.4} parent=0 // loop_header
    %s11 = sphi 0, %s15
    %p12 = scmp.ge.s32.totalorder %s11, 4
    %s21 = sphi 0, %s23
    %s24 = sphi 0, %s21
    %s25 = sphi 0, %s24
    %s41 = sphi 0, %s25
    %s45 = sphi 0, %s45
    %s47 = sphi 0, %s45
    %s48 = sphi 0, %s47
    %s62 = sphi 0, %s48
    %s66 = sphi 0, %s66
    %s68 = sphi 0, %s66
    %s69 = sphi 0, %s68
    %s83 = sphi 0, %s69
    %s89 = sphi 0, %s91
    %s92 = sphi 0, %s89
    %s93 = sphi 0, %s92
    %s109 = sphi 0, %s93
    %s115 = sphi 0, %s117
    %s118 = sphi 0, %s115
    %s119 = sphi 0, %s118
    %s135 = sphi 0, %s119
  $region4: #{basic_conv2d_block.4} parent=0 // loop_header_branch
    %14 = sbr.rel (%p12) target = $region8
  $region5: #{basic_conv2d_block.4} parent=0 // loop_body
    %s16 = ssub.s32 %s11, 1
    %s17 = ssub.s32 %s11, 2
    %s18 = sadd.s32 %s11, 1
    %s19 = ssub.s32 %s11, %s18
    %p20 = scmp.eq.s32.totalorder %s19, 0
    %s22 = sadd.s32 %s21, 1
    %s23 = scalar_select %p20, %s21, %s22
    %p26 = pneg %p20
    %p27 = scmp.eq.s32.totalorder %s11, 1
    %p28 = por %p26, %p27
    %p29 = scmp.ne.s32.totalorder %s21, %s24
    %p30 = scmp.eq.s32.totalorder %s11, 0
    %p31 = por %p29, %p30
    %p32 = scmp.ne.s32.totalorder %s21, %s24
    %p33 = scmp.eq.s32.totalorder %s16, 1
    %p34 = por %p32, %p33
    %p35 = scmp.ne.s32.totalorder %s24, %s25
    %p36 = scmp.eq.s32.totalorder %s16, 0
    %p37 = por %p35, %p36
    %p38 = scmp.ne.s32.totalorder %s24, %s25
    %p39 = scmp.eq.s32.totalorder %s17, 1
    %p40 = por %p38, %p39
    %p42 = scmp.ne.s32.totalorder %s25, %s41
    %p43 = scmp.eq.s32.totalorder %s17, 0
    %p44 = por %p42, %p43
    %s46 = sadd.s32 %s45, 1
    %p49 = scmp.eq.s32.totalorder %s11, 1
    %p50 = scmp.ne.s32.totalorder %s45, %s47
    %p51 = scmp.eq.s32.totalorder %s11, 0
    %p52 = por %p50, %p51
    %p53 = scmp.ne.s32.totalorder %s45, %s47
    %p54 = scmp.eq.s32.totalorder %s16, 1
    %p55 = por %p53, %p54
    %p56 = scmp.ne.s32.totalorder %s47, %s48
    %p57 = scmp.eq.s32.totalorder %s16, 0
    %p58 = por %p56, %p57
    %p59 = scmp.ne.s32.totalorder %s47, %s48
    %p60 = scmp.eq.s32.totalorder %s17, 1
    %p61 = por %p59, %p60
    %p63 = scmp.ne.s32.totalorder %s48, %s62
    %p64 = scmp.eq.s32.totalorder %s17, 0
    %p65 = por %p63, %p64
    %s67 = sadd.s32 %s66, 1
    %p70 = scmp.eq.s32.totalorder %s11, 1
    %p71 = scmp.ne.s32.totalorder %s66, %s68
    %p72 = scmp.eq.s32.totalorder %s11, 0
    %p73 = por %p71, %p72
    %p74 = scmp.ne.s32.totalorder %s66, %s68
    %p75 = scmp.eq.s32.totalorder %s16, 1
    %p76 = por %p74, %p75
    %p77 = scmp.ne.s32.totalorder %s68, %s69
    %p78 = scmp.eq.s32.totalorder %s16, 0
    %p79 = por %p77, %p78
    %p80 = scmp.ne.s32.totalorder %s68, %s69
    %p81 = scmp.eq.s32.totalorder %s17, 1
    %p82 = por %p80, %p81
    %p84 = scmp.ne.s32.totalorder %s69, %s83
    %p85 = scmp.eq.s32.totalorder %s17, 0
    %p86 = por %p84, %p85
    %s87 = ssub.s32 %s11, %s18
    %p88 = scmp.eq.s32.totalorder %s87, 0
    %s90 = sadd.s32 %s89, 1
    %s91 = scalar_select %p88, %s89, %s90
    %p94 = pneg %p88
    %p95 = scmp.eq.s32.totalorder %s11, 1
    %p96 = por %p94, %p95
    %p97 = scmp.ne.s32.totalorder %s89, %s92
    %p98 = scmp.eq.s32.totalorder %s11, 0
    %p99 = por %p97, %p98
    %p100 = scmp.ne.s32.totalorder %s89, %s92
    %p101 = scmp.eq.s32.totalorder %s16, 1
    %p102 = por %p100, %p101
    %p103 = scmp.ne.s32.totalorder %s92, %s93
    %p104 = scmp.eq.s32.totalorder %s16, 0
    %p105 = por %p103, %p104
    %p106 = scmp.ne.s32.totalorder %s92, %s93
    %p107 = scmp.eq.s32.totalorder %s17, 1
    %p108 = por %p106, %p107
    %p110 = scmp.ne.s32.totalorder %s93, %s109
    %p111 = scmp.eq.s32.totalorder %s17, 0
    %p112 = por %p110, %p111
    %s113 = ssub.s32 %s11, %s18
    %p114 = scmp.eq.s32.totalorder %s113, 0
    %s116 = sadd.s32 %s115, 1
    %s117 = scalar_select %p114, %s115, %s116
    %p120 = pneg %p114
    %p121 = scmp.eq.s32.totalorder %s11, 1
    %p122 = por %p120, %p121
    %p123 = scmp.ne.s32.totalorder %s115, %s118
    %p124 = scmp.eq.s32.totalorder %s11, 0
    %p125 = por %p123, %p124
    %p126 = scmp.ne.s32.totalorder %s115, %s118
    %p127 = scmp.eq.s32.totalorder %s16, 1
    %p128 = por %p126, %p127
    %p129 = scmp.ne.s32.totalorder %s118, %s119
    %p130 = scmp.eq.s32.totalorder %s16, 0
    %p131 = por %p129, %p130
    %p132 = scmp.ne.s32.totalorder %s118, %s119
    %p133 = scmp.eq.s32.totalorder %s17, 1
    %p134 = por %p132, %p133
    %p136 = scmp.ne.s32.totalorder %s119, %s135
    %p137 = scmp.eq.s32.totalorder %s17, 0
    %p138 = por %p136, %p137
    %p139 = scmp.le.s32.totalorder 1, %s11
    %p140 = scmp.lt.s32.totalorder %s11, 3
    %p141 = pnand %p139, %p140
    %p142 = pneg %p141
    // Predicated region
    $region9: #{basic_conv2d_block.4} parent=5 // pred_check
      _
    $region10: #{basic_conv2d_block.4} parent=5 // pred_check_branch
      %144 = sbr.rel (%p141) target = $region12
    $region11: #{basic_conv2d_block.4} parent=5 // pred_region
      %s145 = ssub.s32 %s11, 1
      // Predicated region
      $region13: #{basic_conv2d_block.4} parent=11 // pred_check
        %p146 = pneg %p58
      $region14: #{basic_conv2d_block.4} parent=11 // pred_check_branch
        %148 = sbr.rel (%p146) target = $region16
      $region15: #{basic_conv2d_block.4} parent=11 // pred_region
        _
      $region16: #{basic_conv2d_block.4} parent=11 // pred_fallthru
        _
      // Predicated region
      $region17: #{basic_conv2d_block.4} parent=11 // pred_check
        %p149 = pneg %p79
      $region18: #{basic_conv2d_block.4} parent=11 // pred_check_branch
        %151 = sbr.rel (%p149) target = $region20
      $region19: #{basic_conv2d_block.4} parent=11 // pred_region
        _
      $region20: #{basic_conv2d_block.4} parent=11 // pred_fallthru
        _
    $region12: #{basic_conv2d_block.4} parent=5 // pred_fallthru
      _
    %p152 = scmp.lt.s32.totalorder %s11, 2
    // Predicated region
    $region21: #{basic_conv2d_block.4} parent=5 // pred_check
      %p153 = pneg %p152
    $region22: #{basic_conv2d_block.4} parent=5 // pred_check_branch
      %155 = sbr.rel (%p153) target = $region24
    $region23: #{basic_conv2d_block.4} parent=5 // pred_region
      // Predicated region
      $region25: #{basic_conv2d_block.4} parent=23 // pred_check
        %p156 = pneg %p31
      $region26: #{basic_conv2d_block.4} parent=23 // pred_check_branch
        %158 = sbr.rel (%p156) target = $region28
      $region27: #{basic_conv2d_block.4} parent=23 // pred_region
        %p159 = scmp.lt.s32.totalorder %s11, 1
        %s160 = scalar_select %p159, %s11, 1
        %s161 = smul.addr %s160, 32
        %s162 = smul.addr %s161, 4
        %s163 = scalar_lea.vmem %s0, %s162
      $region28: #{basic_conv2d_block.4} parent=23 // pred_fallthru
        _
    $region24: #{basic_conv2d_block.4} parent=5 // pred_fallthru
      _
    %p164 = scmp.le.s32.totalorder 1, %s11
    %p165 = scmp.lt.s32.totalorder %s11, 3
    %p166 = pnand %p164, %p165
    %p167 = pneg %p166
    // Predicated region
    $region29: #{basic_conv2d_block.4} parent=5 // pred_check
      _
    $region30: #{basic_conv2d_block.4} parent=5 // pred_check_branch
      %169 = sbr.rel (%p166) target = $region32
    $region31: #{basic_conv2d_block.4} parent=5 // pred_region
      %s170 = ssub.s32 %s11, 1
      %p171 = scmp.lt.s32.totalorder %s16, 1
      %s172 = scalar_select %p171, %s16, 1
      %s173 = smul.addr %s172, 32
      %s174 = smul.addr %s173, 4
      %s175 = scalar_lea.vmem %s0, %s174
      %p176 = pneg %p37
      %p177 = pneg %p34
      %p178 = pneg %p58
      %p179 = pneg %p55
      %p180 = pneg %p79
      %p181 = pneg %p76
      %p182 = pneg %p105
      %p183 = pneg %p102
      %p184 = scmp.lt.s32.totalorder %s16, 1
      %s185 = scalar_select %p184, %s16, 1
      %s186 = smul.addr %s185, 32
      %s187 = smul.addr %s186, 4
      %s188 = scalar_lea.vmem %s3, %s187
      %p189 = pneg %p131
      %p190 = pneg %p128
      %p191 = scmp.lt.s32.totalorder %s16, 1
      %s192 = scalar_select %p191, %s16, 1
      %s193 = smul.addr %s192, 2
      %s194 = scalar_lea.vmem %s4, %s193
      %p195 = scmp.lt.s32.totalorder %s16, 1
      %s196 = scalar_select %p195, %s16, 1
      %s197 = smul.addr %s196, 32
      %s198 = smul.addr %s197, 4
      %s199 = scalar_lea.vmem %s0, %s198
      %p200 = scmp.lt.s32.totalorder %s16, 1
      %s201 = scalar_select %p200, %s16, 1
      %s202 = smul.addr %s201, 32
      %s203 = smul.addr %s202, 4
      %s204 = scalar_lea.vmem %s3, %s203
      %p205 = scmp.lt.s32.totalorder %s16, 1
      %s206 = scalar_select %p205, %s16, 1
      %s207 = smul.addr %s206, 2
      %s208 = scalar_lea.vmem %s4, %s207
      %v209 = vld [vmem:[%s199] sm:$0xf]
      %v210 = vld [vmem:[%s199 + $0x4] sm:$0xf]
      %v211 = vld [vmem:[%s199 + $0x8] sm:$0xf]
      %v212 = vld [vmem:[%s199 + $0xc] sm:$0xf]
      %v213 = vld [vmem:[%s199 + $0x10] sm:$0xf]
      %v214 = vld [vmem:[%s199 + $0x14] sm:$0xf]
      %v215 = vld [vmem:[%s199 + $0x18] sm:$0xf]
      %v216 = vld [vmem:[%s199 + $0x1c] sm:$0xf]
      %v217 = vld [vmem:[%s199 + $0x20] sm:$0xf]
      %v218 = vld [vmem:[%s199 + $0x24] sm:$0xf]
      %v219 = vld [vmem:[%s199 + $0x28] sm:$0xf]
      %v220 = vld [vmem:[%s199 + $0x2c] sm:$0xf]
      %v221 = vld [vmem:[%s199 + $0x30] sm:$0xf]
      %v222 = vld [vmem:[%s199 + $0x34] sm:$0xf]
      %v223 = vld [vmem:[%s199 + $0x38] sm:$0xf]
      %v224 = vld [vmem:[%s199 + $0x3c] sm:$0xf]
      %v225 = vld [vmem:[%s199 + $0x40] sm:$0xf]
      %v226 = vld [vmem:[%s199 + $0x44] sm:$0xf]
      %v227 = vld [vmem:[%s199 + $0x48] sm:$0xf]
      %v228 = vld [vmem:[%s199 + $0x4c] sm:$0xf]
      %v229 = vld [vmem:[%s199 + $0x50] sm:$0xf]
      %v230 = vld [vmem:[%s199 + $0x54] sm:$0xf]
      %v231 = vld [vmem:[%s199 + $0x58] sm:$0xf]
      %v232 = vld [vmem:[%s199 + $0x5c] sm:$0xf]
      %v233 = vld [vmem:[%s199 + $0x60] sm:$0xf]
      %v234 = vld [vmem:[%s199 + $0x64] sm:$0xf]
      %v235 = vld [vmem:[%s199 + $0x68] sm:$0xf]
      %v236 = vld [vmem:[%s199 + $0x6c] sm:$0xf]
      %v237 = vld [vmem:[%s199 + $0x70] sm:$0xf]
      %v238 = vld [vmem:[%s199 + $0x74] sm:$0xf]
      %v239 = vld [vmem:[%s199 + $0x78] sm:$0xf]
      %v240 = vld [vmem:[%s199 + $0x7c] sm:$0xf]
      %v241 = vunpack.c.l.bf16 %v209
      %v242 = vunpack.c.l.bf16 %v210
      %v243 = vunpack.c.l.bf16 %v211
      %v244 = vunpack.c.l.bf16 %v212
      %v245 = vunpack.c.l.bf16 %v213
      %v246 = vunpack.c.l.bf16 %v214
      %v247 = vunpack.c.l.bf16 %v215
      %v248 = vunpack.c.l.bf16 %v216
      %v249 = vunpack.c.l.bf16 %v217
      %v250 = vunpack.c.l.bf16 %v218
      %v251 = vunpack.c.l.bf16 %v219
      %v252 = vunpack.c.l.bf16 %v220
      %v253 = vunpack.c.l.bf16 %v221
      %v254 = vunpack.c.l.bf16 %v222
      %v255 = vunpack.c.l.bf16 %v223
      %v256 = vunpack.c.l.bf16 %v224
      %v257 = vunpack.c.l.bf16 %v225
      %v258 = vunpack.c.l.bf16 %v226
      %v259 = vunpack.c.l.bf16 %v227
      %v260 = vunpack.c.l.bf16 %v228
      %v261 = vunpack.c.l.bf16 %v229
      %v262 = vunpack.c.l.bf16 %v230
      %v263 = vunpack.c.l.bf16 %v231
      %v264 = vunpack.c.l.bf16 %v232
      %v265 = vunpack.c.l.bf16 %v233
      %v266 = vunpack.c.l.bf16 %v234
      %v267 = vunpack.c.l.bf16 %v235
      %v268 = vunpack.c.l.bf16 %v236
      %v269 = vunpack.c.l.bf16 %v237
      %v270 = vunpack.c.l.bf16 %v238
      %v271 = vunpack.c.l.bf16 %v239
      %v272 = vunpack.c.l.bf16 %v240
      %v273 = vld [vmem:[%s1] sm:$0x1]
      %v274 = vld [vmem:[%s1 + $0x1] sm:$0x1]
      %v275 = vperm.slane %v273, 0
      %v276 = vmul.f32 %v241, %v275
      %v277 = vmul.f32 %v242, %v275
      %v278 = vmul.f32 %v243, %v275
      %v279 = vmul.f32 %v244, %v275
      %v280 = vmul.f32 %v245, %v275
      %v281 = vmul.f32 %v246, %v275
      %v282 = vmul.f32 %v247, %v275
      %v283 = vmul.f32 %v248, %v275
      %v284 = vmul.f32 %v249, %v275
      %v285 = vmul.f32 %v250, %v275
      %v286 = vmul.f32 %v251, %v275
      %v287 = vmul.f32 %v252, %v275
      %v288 = vmul.f32 %v253, %v275
      %v289 = vmul.f32 %v254, %v275
      %v290 = vmul.f32 %v255, %v275
      %v291 = vmul.f32 %v256, %v275
      %v292 = vmul.f32 %v257, %v275
      %v293 = vmul.f32 %v258, %v275
      %v294 = vmul.f32 %v259, %v275
      %v295 = vmul.f32 %v260, %v275
      %v296 = vmul.f32 %v261, %v275
      %v297 = vmul.f32 %v262, %v275
      %v298 = vmul.f32 %v263, %v275
      %v299 = vmul.f32 %v264, %v275
      %v300 = vmul.f32 %v265, %v275
      %v301 = vmul.f32 %v266, %v275
      %v302 = vmul.f32 %v267, %v275
      %v303 = vmul.f32 %v268, %v275
      %v304 = vmul.f32 %v269, %v275
      %v305 = vmul.f32 %v270, %v275
      %v306 = vmul.f32 %v271, %v275
      %v307 = vmul.f32 %v272, %v275
      %v308 = vperm.slane %v274, 0
      %v309 = vadd.f32 %v276, %v308
      %v310 = vadd.f32 %v277, %v308
      %v311 = vadd.f32 %v278, %v308
      %v312 = vadd.f32 %v279, %v308
      %v313 = vadd.f32 %v280, %v308
      %v314 = vadd.f32 %v281, %v308
      %v315 = vadd.f32 %v282, %v308
      %v316 = vadd.f32 %v283, %v308
      %v317 = vadd.f32 %v284, %v308
      %v318 = vadd.f32 %v285, %v308
      %v319 = vadd.f32 %v286, %v308
      %v320 = vadd.f32 %v287, %v308
      %v321 = vadd.f32 %v288, %v308
      %v322 = vadd.f32 %v289, %v308
      %v323 = vadd.f32 %v290, %v308
      %v324 = vadd.f32 %v291, %v308
      %v325 = vadd.f32 %v292, %v308
      %v326 = vadd.f32 %v293, %v308
      %v327 = vadd.f32 %v294, %v308
      %v328 = vadd.f32 %v295, %v308
      %v329 = vadd.f32 %v296, %v308
      %v330 = vadd.f32 %v297, %v308
      %v331 = vadd.f32 %v298, %v308
      %v332 = vadd.f32 %v299, %v308
      %v333 = vadd.f32 %v300, %v308
      %v334 = vadd.f32 %v301, %v308
      %v335 = vadd.f32 %v302, %v308
      %v336 = vadd.f32 %v303, %v308
      %v337 = vadd.f32 %v304, %v308
      %v338 = vadd.f32 %v305, %v308
      %v339 = vadd.f32 %v306, %v308
      %v340 = vadd.f32 %v307, %v308
      %v341 = vmax.f32 %v309, 0.0
      %v342 = vmax.f32 %v310, 0.0
      %v343 = vmax.f32 %v311, 0.0
      %v344 = vmax.f32 %v312, 0.0
      %v345 = vmax.f32 %v313, 0.0
      %v346 = vmax.f32 %v314, 0.0
      %v347 = vmax.f32 %v315, 0.0
      %v348 = vmax.f32 %v316, 0.0
      %v349 = vmax.f32 %v317, 0.0
      %v350 = vmax.f32 %v318, 0.0
      %v351 = vmax.f32 %v319, 0.0
      %v352 = vmax.f32 %v320, 0.0
      %v353 = vmax.f32 %v321, 0.0
      %v354 = vmax.f32 %v322, 0.0
      %v355 = vmax.f32 %v323, 0.0
      %v356 = vmax.f32 %v324, 0.0
      %v357 = vmax.f32 %v325, 0.0
      %v358 = vmax.f32 %v326, 0.0
      %v359 = vmax.f32 %v327, 0.0
      %v360 = vmax.f32 %v328, 0.0
      %v361 = vmax.f32 %v329, 0.0
      %v362 = vmax.f32 %v330, 0.0
      %v363 = vmax.f32 %v331, 0.0
      %v364 = vmax.f32 %v332, 0.0
      %v365 = vmax.f32 %v333, 0.0
      %v366 = vmax.f32 %v334, 0.0
      %v367 = vmax.f32 %v335, 0.0
      %v368 = vmax.f32 %v336, 0.0
      %v369 = vmax.f32 %v337, 0.0
      %v370 = vmax.f32 %v338, 0.0
      %v371 = vmax.f32 %v339, 0.0
      %v372 = vmax.f32 %v340, 0.0
      %373 = vst [vmem:[#allocation2] sm:$0xff] 0.0
      %374 = vst [vmem:[#allocation2 + $0x8] sm:$0xff] 0.0
      %375 = vst [vmem:[#allocation2 + $0x10] sm:$0x3] 0.0
      %376 = vst [vmem:[#allocation2 + $0x18] sm:$0xff] 0.0
      %377 = vst [vmem:[#allocation2 + $0x20] sm:$0xff] 0.0
      %378 = vst [vmem:[#allocation2 + $0x28] sm:$0x3] 0.0
      %379 = vst [vmem:[#allocation2 + $0x30] sm:$0xff] 0.0
      %380 = vst [vmem:[#allocation2 + $0x38] sm:$0xff] 0.0
      %381 = vst [vmem:[#allocation2 + $0x40] sm:$0x3] 0.0
      %382 = vst [vmem:[#allocation2 + $0x48] sm:$0xff] 0.0
      %383 = vst [vmem:[#allocation2 + $0x50] sm:$0xff] 0.0
      %384 = vst [vmem:[#allocation2 + $0x58] sm:$0x3] 0.0
      %385 = vst [vmem:[#allocation2 + $0x60] sm:$0xff] 0.0
      %386 = vst [vmem:[#allocation2 + $0x68] sm:$0xff] 0.0
      %387 = vst [vmem:[#allocation2 + $0x70] sm:$0x3] 0.0
      %388 = vst [vmem:[#allocation2 + $0x78] sm:$0xff] 0.0
      %389 = vst [vmem:[#allocation2 + $0x80] sm:$0xff] 0.0
      %390 = vst [vmem:[#allocation2 + $0x88] sm:$0x3] 0.0
      %391 = vst [vmem:[#allocation2 + $0x90] sm:$0xff] 0.0
      %392 = vst [vmem:[#allocation2 + $0x98] sm:$0xff] 0.0
      %393 = vst [vmem:[#allocation2 + $0xa0] sm:$0x3] 0.0
      %394 = vst [vmem:[#allocation2 + $0xa8] sm:$0xff] 0.0
      %395 = vst [vmem:[#allocation2 + $0xb0] sm:$0xff] 0.0
      %396 = vst [vmem:[#allocation2 + $0xb8] sm:$0x3] 0.0
      %397 = vst [vmem:[#allocation2 + $0xc0] sm:$0xff] 0.0
      %398 = vst [vmem:[#allocation2 + $0xc8] sm:$0xff] 0.0
      %399 = vst [vmem:[#allocation2 + $0xd0] sm:$0x3] 0.0
      %400 = vst [vmem:[#allocation2 + $0xd8] sm:$0xff] 0.0
      %401 = vst [vmem:[#allocation2 + $0xe0] sm:$0xff] 0.0
      %402 = vst [vmem:[#allocation2 + $0xe8] sm:$0x3] 0.0
      %403 = vst [vmem:[#allocation2 + $0xf0] sm:$0xff] 0.0
      %404 = vst [vmem:[#allocation2 + $0xf8] sm:$0xff] 0.0
      %405 = vst [vmem:[#allocation2 + $0x100] sm:$0x3] 0.0
      %406 = vst [vmem:[#allocation2 + $0x108] sm:$0xff] 0.0
      %407 = vst [vmem:[#allocation2 + $0x110] sm:$0xff] 0.0
      %408 = vst [vmem:[#allocation2 + $0x118] sm:$0x3] 0.0
      %409 = vst [vmem:[#allocation2 + $0x120] sm:$0xff] 0.0
      %410 = vst [vmem:[#allocation2 + $0x128] sm:$0xff] 0.0
      %411 = vst [vmem:[#allocation2 + $0x130] sm:$0x3] 0.0
      %412 = vst [vmem:[#allocation2 + $0x138] sm:$0xff] 0.0
      %413 = vst [vmem:[#allocation2 + $0x140] sm:$0xff] 0.0
      %414 = vst [vmem:[#allocation2 + $0x148] sm:$0x3] 0.0
      %415 = vst [vmem:[#allocation2 + $0x150] sm:$0xff] 0.0
      %416 = vst [vmem:[#allocation2 + $0x158] sm:$0xff] 0.0
      %417 = vst [vmem:[#allocation2 + $0x160] sm:$0x3] 0.0
      %418 = vst [vmem:[#allocation2 + $0x168] sm:$0xff] 0.0
      %419 = vst [vmem:[#allocation2 + $0x170] sm:$0xff] 0.0
      %420 = vst [vmem:[#allocation2 + $0x178] sm:$0x3] 0.0
      %421 = vst [vmem:[#allocation2 + $0x180] sm:$0xff] 0.0
      %422 = vst [vmem:[#allocation2 + $0x188] sm:$0xff] 0.0
      %423 = vst [vmem:[#allocation2 + $0x190] sm:$0x3] 0.0
      %424 = vst [vmem:[#allocation2 + $0x198] sm:$0xff] 0.0
      %425 = vst [vmem:[#allocation2 + $0x1a0] sm:$0xff] 0.0
      %426 = vst [vmem:[#allocation2 + $0x1a8] sm:$0x3] 0.0
      %s427 = scalar_lea.vmem [#allocation2], 24
      %428 = vst [vmem:[%s427 + $0x1] sm:$0xff] %v341
      %429 = vst [vmem:[%s427 + $0x9] sm:$0xff] %v342
      %430 = vst [vmem:[%s427 + $0x19] sm:$0xff] %v343
      %431 = vst [vmem:[%s427 + $0x21] sm:$0xff] %v344
      %432 = vst [vmem:[%s427 + $0x31] sm:$0xff] %v345
      %433 = vst [vmem:[%s427 + $0x39] sm:$0xff] %v346
      %434 = vst [vmem:[%s427 + $0x49] sm:$0xff] %v347
      %435 = vst [vmem:[%s427 + $0x51] sm:$0xff] %v348
      %436 = vst [vmem:[%s427 + $0x61] sm:$0xff] %v349
      %437 = vst [vmem:[%s427 + $0x69] sm:$0xff] %v350
      %438 = vst [vmem:[%s427 + $0x79] sm:$0xff] %v351
      %439 = vst [vmem:[%s427 + $0x81] sm:$0xff] %v352
      %440 = vst [vmem:[%s427 + $0x91] sm:$0xff] %v353
      %441 = vst [vmem:[%s427 + $0x99] sm:$0xff] %v354
      %442 = vst [vmem:[%s427 + $0xa9] sm:$0xff] %v355
      %443 = vst [vmem:[%s427 + $0xb1] sm:$0xff] %v356
      %444 = vst [vmem:[%s427 + $0xc1] sm:$0xff] %v357
      %445 = vst [vmem:[%s427 + $0xc9] sm:$0xff] %v358
      %446 = vst [vmem:[%s427 + $0xd9] sm:$0xff] %v359
      %447 = vst [vmem:[%s427 + $0xe1] sm:$0xff] %v360
      %448 = vst [vmem:[%s427 + $0xf1] sm:$0xff] %v361
      %449 = vst [vmem:[%s427 + $0xf9] sm:$0xff] %v362
      %450 = vst [vmem:[%s427 + $0x109] sm:$0xff] %v363
      %451 = vst [vmem:[%s427 + $0x111] sm:$0xff] %v364
      %452 = vst [vmem:[%s427 + $0x121] sm:$0xff] %v365
      %453 = vst [vmem:[%s427 + $0x129] sm:$0xff] %v366
      %454 = vst [vmem:[%s427 + $0x139] sm:$0xff] %v367
      %455 = vst [vmem:[%s427 + $0x141] sm:$0xff] %v368
      %456 = vst [vmem:[%s427 + $0x151] sm:$0xff] %v369
      %457 = vst [vmem:[%s427 + $0x159] sm:$0xff] %v370
      %458 = vst [vmem:[%s427 + $0x169] sm:$0xff] %v371
      %459 = vst [vmem:[%s427 + $0x171] sm:$0xff] %v372
      %v460 = vld [vmem:[#allocation2] sm:$0xff]
      %v461 = vld [vmem:[#allocation2 + $0x8] sm:$0xff]
      %v462 = vld [vmem:[#allocation2 + $0x18] sm:$0xff]
      %v463 = vld [vmem:[#allocation2 + $0x20] sm:$0xff]
      %v464 = vld [vmem:[#allocation2 + $0x30] sm:$0xff]
      %v465 = vld [vmem:[#allocation2 + $0x38] sm:$0xff]
      %v466 = vld [vmem:[#allocation2 + $0x48] sm:$0xff]
      %v467 = vld [vmem:[#allocation2 + $0x50] sm:$0xff]
      %v468 = vld [vmem:[#allocation2 + $0x60] sm:$0xff]
      %v469 = vld [vmem:[#allocation2 + $0x68] sm:$0xff]
      %v470 = vld [vmem:[#allocation2 + $0x78] sm:$0xff]
      %v471 = vld [vmem:[#allocation2 + $0x80] sm:$0xff]
      %v472 = vld [vmem:[#allocation2 + $0x90] sm:$0xff]
      %v473 = vld [vmem:[#allocation2 + $0x98] sm:$0xff]
      %v474 = vld [vmem:[#allocation2 + $0xa8] sm:$0xff]
      %v475 = vld [vmem:[#allocation2 + $0xb0] sm:$0xff]
      %v476 = vld [vmem:[#allocation2 + $0xc0] sm:$0xff]
      %v477 = vld [vmem:[#allocation2 + $0xc8] sm:$0xff]
      %v478 = vld [vmem:[#allocation2 + $0xd8] sm:$0xff]
      %v479 = vld [vmem:[#allocation2 + $0xe0] sm:$0xff]
      %v480 = vld [vmem:[#allocation2 + $0xf0] sm:$0xff]
      %v481 = vld [vmem:[#allocation2 + $0xf8] sm:$0xff]
      %v482 = vld [vmem:[#allocation2 + $0x108] sm:$0xff]
      %v483 = vld [vmem:[#allocation2 + $0x110] sm:$0xff]
      %v484 = vld [vmem:[#allocation2 + $0x120] sm:$0xff]
      %v485 = vld [vmem:[#allocation2 + $0x128] sm:$0xff]
      %v486 = vld [vmem:[#allocation2 + $0x138] sm:$0xff]
      %v487 = vld [vmem:[#allocation2 + $0x140] sm:$0xff]
      %v488 = vld [vmem:[#allocation2 + $0x150] sm:$0xff]
      %v489 = vld [vmem:[#allocation2 + $0x158] sm:$0xff]
      %v490 = vld [vmem:[#allocation2 + $0x168] sm:$0xff]
      %v491 = vld [vmem:[#allocation2 + $0x170] sm:$0xff]
      %v492 = vld [vmem:[#allocation2 + $0x1] sm:$0xff]
      %v493 = vld [vmem:[#allocation2 + $0x9] sm:$0xff]
      %v494 = vld [vmem:[#allocation2 + $0x19] sm:$0xff]
      %v495 = vld [vmem:[#allocation2 + $0x21] sm:$0xff]
      %v496 = vld [vmem:[#allocation2 + $0x31] sm:$0xff]
      %v497 = vld [vmem:[#allocation2 + $0x39] sm:$0xff]
      %v498 = vld [vmem:[#allocation2 + $0x49] sm:$0xff]
      %v499 = vld [vmem:[#allocation2 + $0x51] sm:$0xff]
      %v500 = vld [vmem:[#allocation2 + $0x61] sm:$0xff]
      %v501 = vld [vmem:[#allocation2 + $0x69] sm:$0xff]
      %v502 = vld [vmem:[#allocation2 + $0x79] sm:$0xff]
      %v503 = vld [vmem:[#allocation2 + $0x81] sm:$0xff]
      %v504 = vld [vmem:[#allocation2 + $0x91] sm:$0xff]
      %v505 = vld [vmem:[#allocation2 + $0x99] sm:$0xff]
      %v506 = vld [vmem:[#allocation2 + $0xa9] sm:$0xff]
      %v507 = vld [vmem:[#allocation2 + $0xb1] sm:$0xff]
      %v508 = vld [vmem:[#allocation2 + $0xc1] sm:$0xff]
      %v509 = vld [vmem:[#allocation2 + $0xc9] sm:$0xff]
      %v510 = vld [vmem:[#allocation2 + $0xd9] sm:$0xff]
      %v511 = vld [vmem:[#allocation2 + $0xe1] sm:$0xff]
      %v512 = vld [vmem:[#allocation2 + $0xf1] sm:$0xff]
      %v513 = vld [vmem:[#allocation2 + $0xf9] sm:$0xff]
      %v514 = vld [vmem:[#allocation2 + $0x109] sm:$0xff]
      %v515 = vld [vmem:[#allocation2 + $0x111] sm:$0xff]
      %v516 = vld [vmem:[#allocation2 + $0x121] sm:$0xff]
      %v517 = vld [vmem:[#allocation2 + $0x129] sm:$0xff]
      %v518 = vld [vmem:[#allocation2 + $0x139] sm:$0xff]
      %v519 = vld [vmem:[#allocation2 + $0x141] sm:$0xff]
      %v520 = vld [vmem:[#allocation2 + $0x151] sm:$0xff]
      %v521 = vld [vmem:[#allocation2 + $0x159] sm:$0xff]
      %v522 = vld [vmem:[#allocation2 + $0x169] sm:$0xff]
      %v523 = vld [vmem:[#allocation2 + $0x171] sm:$0xff]
      %v524 = vld [vmem:[#allocation2 + $0x2] sm:$0xff]
      %v525 = vld [vmem:[#allocation2 + $0xa] sm:$0xff]
      %v526 = vld [vmem:[#allocation2 + $0x1a] sm:$0xff]
      %v527 = vld [vmem:[#allocation2 + $0x22] sm:$0xff]
      %v528 = vld [vmem:[#allocation2 + $0x32] sm:$0xff]
      %v529 = vld [vmem:[#allocation2 + $0x3a] sm:$0xff]
      %v530 = vld [vmem:[#allocation2 + $0x4a] sm:$0xff]
      %v531 = vld [vmem:[#allocation2 + $0x52] sm:$0xff]
      %v532 = vld [vmem:[#allocation2 + $0x62] sm:$0xff]
      %v533 = vld [vmem:[#allocation2 + $0x6a] sm:$0xff]
      %v534 = vld [vmem:[#allocation2 + $0x7a] sm:$0xff]
      %v535 = vld [vmem:[#allocation2 + $0x82] sm:$0xff]
      %v536 = vld [vmem:[#allocation2 + $0x92] sm:$0xff]
      %v537 = vld [vmem:[#allocation2 + $0x9a] sm:$0xff]
      %v538 = vld [vmem:[#allocation2 + $0xaa] sm:$0xff]
      %v539 = vld [vmem:[#allocation2 + $0xb2] sm:$0xff]
      %v540 = vld [vmem:[#allocation2 + $0xc2] sm:$0xff]
      %v541 = vld [vmem:[#allocation2 + $0xca] sm:$0xff]
      %v542 = vld [vmem:[#allocation2 + $0xda] sm:$0xff]
      %v543 = vld [vmem:[#allocation2 + $0xe2] sm:$0xff]
      %v544 = vld [vmem:[#allocation2 + $0xf2] sm:$0xff]
      %v545 = vld [vmem:[#allocation2 + $0xfa] sm:$0xff]
      %v546 = vld [vmem:[#allocation2 + $0x10a] sm:$0xff]
      %v547 = vld [vmem:[#allocation2 + $0x112] sm:$0xff]
      %v548 = vld [vmem:[#allocation2 + $0x122] sm:$0xff]
      %v549 = vld [vmem:[#allocation2 + $0x12a] sm:$0xff]
      %v550 = vld [vmem:[#allocation2 + $0x13a] sm:$0xff]
      %v551 = vld [vmem:[#allocation2 + $0x142] sm:$0xff]
      %v552 = vld [vmem:[#allocation2 + $0x152] sm:$0xff]
      %v553 = vld [vmem:[#allocation2 + $0x15a] sm:$0xff]
      %v554 = vld [vmem:[#allocation2 + $0x16a] sm:$0xff]
      %v555 = vld [vmem:[#allocation2 + $0x172] sm:$0xff]
      %v556 = vld [vmem:[%s427] sm:$0xff]
      %v557 = vld [vmem:[%s427 + $0x8] sm:$0xff]
      %v558 = vld [vmem:[%s427 + $0x18] sm:$0xff]
      %v559 = vld [vmem:[%s427 + $0x20] sm:$0xff]
      %v560 = vld [vmem:[%s427 + $0x30] sm:$0xff]
      %v561 = vld [vmem:[%s427 + $0x38] sm:$0xff]
      %v562 = vld [vmem:[%s427 + $0x48] sm:$0xff]
      %v563 = vld [vmem:[%s427 + $0x50] sm:$0xff]
      %v564 = vld [vmem:[%s427 + $0x60] sm:$0xff]
      %v565 = vld [vmem:[%s427 + $0x68] sm:$0xff]
      %v566 = vld [vmem:[%s427 + $0x78] sm:$0xff]
      %v567 = vld [vmem:[%s427 + $0x80] sm:$0xff]
      %v568 = vld [vmem:[%s427 + $0x90] sm:$0xff]
      %v569 = vld [vmem:[%s427 + $0x98] sm:$0xff]
      %v570 = vld [vmem:[%s427 + $0xa8] sm:$0xff]
      %v571 = vld [vmem:[%s427 + $0xb0] sm:$0xff]
      %v572 = vld [vmem:[%s427 + $0xc0] sm:$0xff]
      %v573 = vld [vmem:[%s427 + $0xc8] sm:$0xff]
      %v574 = vld [vmem:[%s427 + $0xd8] sm:$0xff]
      %v575 = vld [vmem:[%s427 + $0xe0] sm:$0xff]
      %v576 = vld [vmem:[%s427 + $0xf0] sm:$0xff]
      %v577 = vld [vmem:[%s427 + $0xf8] sm:$0xff]
      %v578 = vld [vmem:[%s427 + $0x108] sm:$0xff]
      %v579 = vld [vmem:[%s427 + $0x110] sm:$0xff]
      %v580 = vld [vmem:[%s427 + $0x120] sm:$0xff]
      %v581 = vld [vmem:[%s427 + $0x128] sm:$0xff]
      %v582 = vld [vmem:[%s427 + $0x138] sm:$0xff]
      %v583 = vld [vmem:[%s427 + $0x140] sm:$0xff]
      %v584 = vld [vmem:[%s427 + $0x150] sm:$0xff]
      %v585 = vld [vmem:[%s427 + $0x158] sm:$0xff]
      %v586 = vld [vmem:[%s427 + $0x168] sm:$0xff]
      %v587 = vld [vmem:[%s427 + $0x170] sm:$0xff]
      %v588 = vld [vmem:[%s427 + $0x1] sm:$0xff]
      %v589 = vld [vmem:[%s427 + $0x9] sm:$0xff]
      %v590 = vld [vmem:[%s427 + $0x19] sm:$0xff]
      %v591 = vld [vmem:[%s427 + $0x21] sm:$0xff]
      %v592 = vld [vmem:[%s427 + $0x31] sm:$0xff]
      %v593 = vld [vmem:[%s427 + $0x39] sm:$0xff]
      %v594 = vld [vmem:[%s427 + $0x49] sm:$0xff]
      %v595 = vld [vmem:[%s427 + $0x51] sm:$0xff]
      %v596 = vld [vmem:[%s427 + $0x61] sm:$0xff]
      %v597 = vld [vmem:[%s427 + $0x69] sm:$0xff]
      %v598 = vld [vmem:[%s427 + $0x79] sm:$0xff]
      %v599 = vld [vmem:[%s427 + $0x81] sm:$0xff]
      %v600 = vld [vmem:[%s427 + $0x91] sm:$0xff]
      %v601 = vld [vmem:[%s427 + $0x99] sm:$0xff]
      %v602 = vld [vmem:[%s427 + $0xa9] sm:$0xff]
      %v603 = vld [vmem:[%s427 + $0xb1] sm:$0xff]
      %v604 = vld [vmem:[%s427 + $0xc1] sm:$0xff]
      %v605 = vld [vmem:[%s427 + $0xc9] sm:$0xff]
      %v606 = vld [vmem:[%s427 + $0xd9] sm:$0xff]
      %v607 = vld [vmem:[%s427 + $0xe1] sm:$0xff]
      %v608 = vld [vmem:[%s427 + $0xf1] sm:$0xff]
      %v609 = vld [vmem:[%s427 + $0xf9] sm:$0xff]
      %v610 = vld [vmem:[%s427 + $0x109] sm:$0xff]
      %v611 = vld [vmem:[%s427 + $0x111] sm:$0xff]
      %v612 = vld [vmem:[%s427 + $0x121] sm:$0xff]
      %v613 = vld [vmem:[%s427 + $0x129] sm:$0xff]
      %v614 = vld [vmem:[%s427 + $0x139] sm:$0xff]
      %v615 = vld [vmem:[%s427 + $0x141] sm:$0xff]
      %v616 = vld [vmem:[%s427 + $0x151] sm:$0xff]
      %v617 = vld [vmem:[%s427 + $0x159] sm:$0xff]
      %v618 = vld [vmem:[%s427 + $0x169] sm:$0xff]
      %v619 = vld [vmem:[%s427 + $0x171] sm:$0xff]
      %v620 = vld [vmem:[%s427 + $0x2] sm:$0xff]
      %v621 = vld [vmem:[%s427 + $0xa] sm:$0xff]
      %v622 = vld [vmem:[%s427 + $0x1a] sm:$0xff]
      %v623 = vld [vmem:[%s427 + $0x22] sm:$0xff]
      %v624 = vld [vmem:[%s427 + $0x32] sm:$0xff]
      %v625 = vld [vmem:[%s427 + $0x3a] sm:$0xff]
      %v626 = vld [vmem:[%s427 + $0x4a] sm:$0xff]
      %v627 = vld [vmem:[%s427 + $0x52] sm:$0xff]
      %v628 = vld [vmem:[%s427 + $0x62] sm:$0xff]
      %v629 = vld [vmem:[%s427 + $0x6a] sm:$0xff]
      %v630 = vld [vmem:[%s427 + $0x7a] sm:$0xff]
      %v631 = vld [vmem:[%s427 + $0x82] sm:$0xff]
      %v632 = vld [vmem:[%s427 + $0x92] sm:$0xff]
      %v633 = vld [vmem:[%s427 + $0x9a] sm:$0xff]
      %v634 = vld [vmem:[%s427 + $0xaa] sm:$0xff]
      %v635 = vld [vmem:[%s427 + $0xb2] sm:$0xff]
      %v636 = vld [vmem:[%s427 + $0xc2] sm:$0xff]
      %v637 = vld [vmem:[%s427 + $0xca] sm:$0xff]
      %v638 = vld [vmem:[%s427 + $0xda] sm:$0xff]
      %v639 = vld [vmem:[%s427 + $0xe2] sm:$0xff]
      %v640 = vld [vmem:[%s427 + $0xf2] sm:$0xff]
      %v641 = vld [vmem:[%s427 + $0xfa] sm:$0xff]
      %v642 = vld [vmem:[%s427 + $0x10a] sm:$0xff]
      %v643 = vld [vmem:[%s427 + $0x112] sm:$0xff]
      %v644 = vld [vmem:[%s427 + $0x122] sm:$0xff]
      %v645 = vld [vmem:[%s427 + $0x12a] sm:$0xff]
      %v646 = vld [vmem:[%s427 + $0x13a] sm:$0xff]
      %v647 = vld [vmem:[%s427 + $0x142] sm:$0xff]
      %v648 = vld [vmem:[%s427 + $0x152] sm:$0xff]
      %v649 = vld [vmem:[%s427 + $0x15a] sm:$0xff]
      %v650 = vld [vmem:[%s427 + $0x16a] sm:$0xff]
      %v651 = vld [vmem:[%s427 + $0x172] sm:$0xff]
      %s652 = scalar_lea.vmem [#allocation2], 48
      %v653 = vld [vmem:[%s652] sm:$0xff]
      %v654 = vld [vmem:[%s652 + $0x8] sm:$0xff]
      %v655 = vld [vmem:[%s652 + $0x18] sm:$0xff]
      %v656 = vld [vmem:[%s652 + $0x20] sm:$0xff]
      %v657 = vld [vmem:[%s652 + $0x30] sm:$0xff]
      %v658 = vld [vmem:[%s652 + $0x38] sm:$0xff]
      %v659 = vld [vmem:[%s652 + $0x48] sm:$0xff]
      %v660 = vld [vmem:[%s652 + $0x50] sm:$0xff]
      %v661 = vld [vmem:[%s652 + $0x60] sm:$0xff]
      %v662 = vld [vmem:[%s652 + $0x68] sm:$0xff]
      %v663 = vld [vmem:[%s652 + $0x78] sm:$0xff]
      %v664 = vld [vmem:[%s652 + $0x80] sm:$0xff]
      %v665 = vld [vmem:[%s652 + $0x90] sm:$0xff]
      %v666 = vld [vmem:[%s652 + $0x98] sm:$0xff]
      %v667 = vld [vmem:[%s652 + $0xa8] sm:$0xff]
      %v668 = vld [vmem:[%s652 + $0xb0] sm:$0xff]
      %v669 = vld [vmem:[%s652 + $0xc0] sm:$0xff]
      %v670 = vld [vmem:[%s652 + $0xc8] sm:$0xff]
      %v671 = vld [vmem:[%s652 + $0xd8] sm:$0xff]
      %v672 = vld [vmem:[%s652 + $0xe0] sm:$0xff]
      %v673 = vld [vmem:[%s652 + $0xf0] sm:$0xff]
      %v674 = vld [vmem:[%s652 + $0xf8] sm:$0xff]
      %v675 = vld [vmem:[%s652 + $0x108] sm:$0xff]
      %v676 = vld [vmem:[%s652 + $0x110] sm:$0xff]
      %v677 = vld [vmem:[%s652 + $0x120] sm:$0xff]
      %v678 = vld [vmem:[%s652 + $0x128] sm:$0xff]
      %v679 = vld [vmem:[%s652 + $0x138] sm:$0xff]
      %v680 = vld [vmem:[%s652 + $0x140] sm:$0xff]
      %v681 = vld [vmem:[%s652 + $0x150] sm:$0xff]
      %v682 = vld [vmem:[%s652 + $0x158] sm:$0xff]
      %v683 = vld [vmem:[%s652 + $0x168] sm:$0xff]
      %v684 = vld [vmem:[%s652 + $0x170] sm:$0xff]
      %v685 = vld [vmem:[%s652 + $0x1] sm:$0xff]
      %v686 = vld [vmem:[%s652 + $0x9] sm:$0xff]
      %v687 = vld [vmem:[%s652 + $0x19] sm:$0xff]
      %v688 = vld [vmem:[%s652 + $0x21] sm:$0xff]
      %v689 = vld [vmem:[%s652 + $0x31] sm:$0xff]
      %v690 = vld [vmem:[%s652 + $0x39] sm:$0xff]
      %v691 = vld [vmem:[%s652 + $0x49] sm:$0xff]
      %v692 = vld [vmem:[%s652 + $0x51] sm:$0xff]
      %v693 = vld [vmem:[%s652 + $0x61] sm:$0xff]
      %v694 = vld [vmem:[%s652 + $0x69] sm:$0xff]
      %v695 = vld [vmem:[%s652 + $0x79] sm:$0xff]
      %v696 = vld [vmem:[%s652 + $0x81] sm:$0xff]
      %v697 = vld [vmem:[%s652 + $0x91] sm:$0xff]
      %v698 = vld [vmem:[%s652 + $0x99] sm:$0xff]
      %v699 = vld [vmem:[%s652 + $0xa9] sm:$0xff]
      %v700 = vld [vmem:[%s652 + $0xb1] sm:$0xff]
      %v701 = vld [vmem:[%s652 + $0xc1] sm:$0xff]
      %v702 = vld [vmem:[%s652 + $0xc9] sm:$0xff]
      %v703 = vld [vmem:[%s652 + $0xd9] sm:$0xff]
      %v704 = vld [vmem:[%s652 + $0xe1] sm:$0xff]
      %v705 = vld [vmem:[%s652 + $0xf1] sm:$0xff]
      %v706 = vld [vmem:[%s652 + $0xf9] sm:$0xff]
      %v707 = vld [vmem:[%s652 + $0x109] sm:$0xff]
      %v708 = vld [vmem:[%s652 + $0x111] sm:$0xff]
      %v709 = vld [vmem:[%s652 + $0x121] sm:$0xff]
      %v710 = vld [vmem:[%s652 + $0x129] sm:$0xff]
      %v711 = vld [vmem:[%s652 + $0x139] sm:$0xff]
      %v712 = vld [vmem:[%s652 + $0x141] sm:$0xff]
      %v713 = vld [vmem:[%s652 + $0x151] sm:$0xff]
      %v714 = vld [vmem:[%s652 + $0x159] sm:$0xff]
      %v715 = vld [vmem:[%s652 + $0x169] sm:$0xff]
      %v716 = vld [vmem:[%s652 + $0x171] sm:$0xff]
      %v717 = vld [vmem:[%s652 + $0x2] sm:$0xff]
      %v718 = vld [vmem:[%s652 + $0xa] sm:$0xff]
      %v719 = vld [vmem:[%s652 + $0x1a] sm:$0xff]
      %v720 = vld [vmem:[%s652 + $0x22] sm:$0xff]
      %v721 = vld [vmem:[%s652 + $0x32] sm:$0xff]
      %v722 = vld [vmem:[%s652 + $0x3a] sm:$0xff]
      %v723 = vld [vmem:[%s652 + $0x4a] sm:$0xff]
      %v724 = vld [vmem:[%s652 + $0x52] sm:$0xff]
      %v725 = vld [vmem:[%s652 + $0x62] sm:$0xff]
      %v726 = vld [vmem:[%s652 + $0x6a] sm:$0xff]
      %v727 = vld [vmem:[%s652 + $0x7a] sm:$0xff]
      %v728 = vld [vmem:[%s652 + $0x82] sm:$0xff]
      %v729 = vld [vmem:[%s652 + $0x92] sm:$0xff]
      %v730 = vld [vmem:[%s652 + $0x9a] sm:$0xff]
      %v731 = vld [vmem:[%s652 + $0xaa] sm:$0xff]
      %v732 = vld [vmem:[%s652 + $0xb2] sm:$0xff]
      %v733 = vld [vmem:[%s652 + $0xc2] sm:$0xff]
      %v734 = vld [vmem:[%s652 + $0xca] sm:$0xff]
      %v735 = vld [vmem:[%s652 + $0xda] sm:$0xff]
      %v736 = vld [vmem:[%s652 + $0xe2] sm:$0xff]
      %v737 = vld [vmem:[%s652 + $0xf2] sm:$0xff]
      %v738 = vld [vmem:[%s652 + $0xfa] sm:$0xff]
      %v739 = vld [vmem:[%s652 + $0x10a] sm:$0xff]
      %v740 = vld [vmem:[%s652 + $0x112] sm:$0xff]
      %v741 = vld [vmem:[%s652 + $0x122] sm:$0xff]
      %v742 = vld [vmem:[%s652 + $0x12a] sm:$0xff]
      %v743 = vld [vmem:[%s652 + $0x13a] sm:$0xff]
      %v744 = vld [vmem:[%s652 + $0x142] sm:$0xff]
      %v745 = vld [vmem:[%s652 + $0x152] sm:$0xff]
      %v746 = vld [vmem:[%s652 + $0x15a] sm:$0xff]
      %v747 = vld [vmem:[%s652 + $0x16a] sm:$0xff]
      %v748 = vld [vmem:[%s652 + $0x172] sm:$0xff]
      %v749 = vpack.c.bf16 %v461, %v460
      %v750 = vpack.c.bf16 %v493, %v492
      %v751 = vpack.c.bf16 %v525, %v524
      %v752 = vpack.c.bf16 %v557, %v556
      %v753 = vpack.c.bf16 %v589, %v588
      %v754 = vpack.c.bf16 %v621, %v620
      %v755 = vpack.c.bf16 %v654, %v653
      %v756 = vpack.c.bf16 %v686, %v685
      %v757 = vpack.c.bf16 %v718, %v717
      %v758 = vpack.c.bf16 %v463, %v462
      %v759 = vpack.c.bf16 %v495, %v494
      %v760 = vpack.c.bf16 %v527, %v526
      %v761 = vpack.c.bf16 %v559, %v558
      %v762 = vpack.c.bf16 %v591, %v590
      %v763 = vpack.c.bf16 %v623, %v622
      %v764 = vpack.c.bf16 %v656, %v655
      %v765 = vpack.c.bf16 %v688, %v687
      %v766 = vpack.c.bf16 %v720, %v719
      %v767 = vpack.c.bf16 %v465, %v464
      %v768 = vpack.c.bf16 %v497, %v496
      %v769 = vpack.c.bf16 %v529, %v528
      %v770 = vpack.c.bf16 %v561, %v560
      %v771 = vpack.c.bf16 %v593, %v592
      %v772 = vpack.c.bf16 %v625, %v624
      %v773 = vpack.c.bf16 %v658, %v657
      %v774 = vpack.c.bf16 %v690, %v689
      %v775 = vpack.c.bf16 %v722, %v721
      %v776 = vpack.c.bf16 %v467, %v466
      %v777 = vpack.c.bf16 %v499, %v498
      %v778 = vpack.c.bf16 %v531, %v530
      %v779 = vpack.c.bf16 %v563, %v562
      %v780 = vpack.c.bf16 %v595, %v594
      %v781 = vpack.c.bf16 %v627, %v626
      %v782 = vpack.c.bf16 %v660, %v659
      %v783 = vpack.c.bf16 %v692, %v691
      %v784 = vpack.c.bf16 %v724, %v723
      %v785 = vpack.c.bf16 %v469, %v468
      %v786 = vpack.c.bf16 %v501, %v500
      %v787 = vpack.c.bf16 %v533, %v532
      %v788 = vpack.c.bf16 %v565, %v564
      %v789 = vpack.c.bf16 %v597, %v596
      %v790 = vpack.c.bf16 %v629, %v628
      %v791 = vpack.c.bf16 %v662, %v661
      %v792 = vpack.c.bf16 %v694, %v693
      %v793 = vpack.c.bf16 %v726, %v725
      %v794 = vpack.c.bf16 %v471, %v470
      %v795 = vpack.c.bf16 %v503, %v502
      %v796 = vpack.c.bf16 %v535, %v534
      %v797 = vpack.c.bf16 %v567, %v566
      %v798 = vpack.c.bf16 %v599, %v598
      %v799 = vpack.c.bf16 %v631, %v630
      %v800 = vpack.c.bf16 %v664, %v663
      %v801 = vpack.c.bf16 %v696, %v695
      %v802 = vpack.c.bf16 %v728, %v727
      %v803 = vpack.c.bf16 %v473, %v472
      %v804 = vpack.c.bf16 %v505, %v504
      %v805 = vpack.c.bf16 %v537, %v536
      %v806 = vpack.c.bf16 %v569, %v568
      %v807 = vpack.c.bf16 %v601, %v600
      %v808 = vpack.c.bf16 %v633, %v632
      %v809 = vpack.c.bf16 %v666, %v665
      %v810 = vpack.c.bf16 %v698, %v697
      %v811 = vpack.c.bf16 %v730, %v729
      %v812 = vpack.c.bf16 %v475, %v474
      %v813 = vpack.c.bf16 %v507, %v506
      %v814 = vpack.c.bf16 %v539, %v538
      %v815 = vpack.c.bf16 %v571, %v570
      %v816 = vpack.c.bf16 %v603, %v602
      %v817 = vpack.c.bf16 %v635, %v634
      %v818 = vpack.c.bf16 %v668, %v667
      %v819 = vpack.c.bf16 %v700, %v699
      %v820 = vpack.c.bf16 %v732, %v731
      %v821 = vpack.c.bf16 %v477, %v476
      %v822 = vpack.c.bf16 %v509, %v508
      %v823 = vpack.c.bf16 %v541, %v540
      %v824 = vpack.c.bf16 %v573, %v572
      %v825 = vpack.c.bf16 %v605, %v604
      %v826 = vpack.c.bf16 %v637, %v636
      %v827 = vpack.c.bf16 %v670, %v669
      %v828 = vpack.c.bf16 %v702, %v701
      %v829 = vpack.c.bf16 %v734, %v733
      %v830 = vpack.c.bf16 %v479, %v478
      %v831 = vpack.c.bf16 %v511, %v510
      %v832 = vpack.c.bf16 %v543, %v542
      %v833 = vpack.c.bf16 %v575, %v574
      %v834 = vpack.c.bf16 %v607, %v606
      %v835 = vpack.c.bf16 %v639, %v638
      %v836 = vpack.c.bf16 %v672, %v671
      %v837 = vpack.c.bf16 %v704, %v703
      %v838 = vpack.c.bf16 %v736, %v735
      %v839 = vpack.c.bf16 %v481, %v480
      %v840 = vpack.c.bf16 %v513, %v512
      %v841 = vpack.c.bf16 %v545, %v544
      %v842 = vpack.c.bf16 %v577, %v576
      %v843 = vpack.c.bf16 %v609, %v608
      %v844 = vpack.c.bf16 %v641, %v640
      %v845 = vpack.c.bf16 %v674, %v673
      %v846 = vpack.c.bf16 %v706, %v705
      %v847 = vpack.c.bf16 %v738, %v737
      %v848 = vpack.c.bf16 %v483, %v482
      %v849 = vpack.c.bf16 %v515, %v514
      %v850 = vpack.c.bf16 %v547, %v546
      %v851 = vpack.c.bf16 %v579, %v578
      %v852 = vpack.c.bf16 %v611, %v610
      %v853 = vpack.c.bf16 %v643, %v642
      %v854 = vpack.c.bf16 %v676, %v675
      %v855 = vpack.c.bf16 %v708, %v707
      %v856 = vpack.c.bf16 %v740, %v739
      %v857 = vpack.c.bf16 %v485, %v484
      %v858 = vpack.c.bf16 %v517, %v516
      %v859 = vpack.c.bf16 %v549, %v548
      %v860 = vpack.c.bf16 %v581, %v580
      %v861 = vpack.c.bf16 %v613, %v612
      %v862 = vpack.c.bf16 %v645, %v644
      %v863 = vpack.c.bf16 %v678, %v677
      %v864 = vpack.c.bf16 %v710, %v709
      %v865 = vpack.c.bf16 %v742, %v741
      %v866 = vpack.c.bf16 %v487, %v486
      %v867 = vpack.c.bf16 %v519, %v518
      %v868 = vpack.c.bf16 %v551, %v550
      %v869 = vpack.c.bf16 %v583, %v582
      %v870 = vpack.c.bf16 %v615, %v614
      %v871 = vpack.c.bf16 %v647, %v646
      %v872 = vpack.c.bf16 %v680, %v679
      %v873 = vpack.c.bf16 %v712, %v711
      %v874 = vpack.c.bf16 %v744, %v743
      %v875 = vpack.c.bf16 %v489, %v488
      %v876 = vpack.c.bf16 %v521, %v520
      %v877 = vpack.c.bf16 %v553, %v552
      %v878 = vpack.c.bf16 %v585, %v584
      %v879 = vpack.c.bf16 %v617, %v616
      %v880 = vpack.c.bf16 %v649, %v648
      %v881 = vpack.c.bf16 %v682, %v681
      %v882 = vpack.c.bf16 %v714, %v713
      %v883 = vpack.c.bf16 %v746, %v745
      %v884 = vpack.c.bf16 %v491, %v490
      %v885 = vpack.c.bf16 %v523, %v522
      %v886 = vpack.c.bf16 %v555, %v554
      %v887 = vpack.c.bf16 %v587, %v586
      %v888 = vpack.c.bf16 %v619, %v618
      %v889 = vpack.c.bf16 %v651, %v650
      %v890 = vpack.c.bf16 %v684, %v683
      %v891 = vpack.c.bf16 %v716, %v715
      %v892 = vpack.c.bf16 %v748, %v747
      %v893 = vld [vmem:[%s2] sm:$0xf]
      %v894 = vld [vmem:[%s2 + $0x4] sm:$0xf]
      %v895 = vld [vmem:[%s2 + $0x8] sm:$0xf]
      %v896 = vld [vmem:[%s2 + $0xc] sm:$0xf]
      %v897 = vld [vmem:[%s2 + $0x10] sm:$0xf]
      %v898 = vld [vmem:[%s2 + $0x14] sm:$0xf]
      %v899 = vld [vmem:[%s2 + $0x18] sm:$0xf]
      %v900 = vld [vmem:[%s2 + $0x1c] sm:$0xf]
      %v901 = vld [vmem:[%s2 + $0x20] sm:$0xf]
      %v902 = vld [vmem:[%s2 + $0x24] sm:$0xf]
      %v903 = vld [vmem:[%s2 + $0x28] sm:$0xf]
      %v904 = vld [vmem:[%s2 + $0x2c] sm:$0xf]
      %v905 = vld [vmem:[%s2 + $0x30] sm:$0xf]
      %v906 = vld [vmem:[%s2 + $0x34] sm:$0xf]
      %v907 = vld [vmem:[%s2 + $0x38] sm:$0xf]
      %v908 = vld [vmem:[%s2 + $0x3c] sm:$0xf]
      %v909 = vld [vmem:[%s2 + $0x40] sm:$0xf]
      %v910 = vld [vmem:[%s2 + $0x44] sm:$0xf]
      %v911 = vld [vmem:[%s2 + $0x48] sm:$0xf]
      %v912 = vld [vmem:[%s2 + $0x4c] sm:$0xf]
      %v913 = vld [vmem:[%s2 + $0x50] sm:$0xf]
      %v914 = vld [vmem:[%s2 + $0x54] sm:$0xf]
      %v915 = vld [vmem:[%s2 + $0x58] sm:$0xf]
      %v916 = vld [vmem:[%s2 + $0x5c] sm:$0xf]
      %v917 = vld [vmem:[%s2 + $0x60] sm:$0xf]
      %v918 = vld [vmem:[%s2 + $0x64] sm:$0xf]
      %v919 = vld [vmem:[%s2 + $0x68] sm:$0xf]
      %v920 = vld [vmem:[%s2 + $0x6c] sm:$0xf]
      %v921 = vld [vmem:[%s2 + $0x70] sm:$0xf]
      %v922 = vld [vmem:[%s2 + $0x74] sm:$0xf]
      %v923 = vld [vmem:[%s2 + $0x78] sm:$0xf]
      %v924 = vld [vmem:[%s2 + $0x7c] sm:$0xf]
      %v925 = vld [vmem:[%s2 + $0x80] sm:$0xf]
      %v926 = vld [vmem:[%s2 + $0x84] sm:$0xf]
      %v927 = vld [vmem:[%s2 + $0x88] sm:$0xf]
      %v928 = vld [vmem:[%s2 + $0x8c] sm:$0xf]
      %v929 = vld [vmem:[%s2 + $0x90] sm:$0xf]
      %v930 = vld [vmem:[%s2 + $0x94] sm:$0xf]
      %v931 = vld [vmem:[%s2 + $0x98] sm:$0xf]
      %v932 = vld [vmem:[%s2 + $0x9c] sm:$0xf]
      %v933 = vld [vmem:[%s2 + $0xa0] sm:$0xf]
      %v934 = vld [vmem:[%s2 + $0xa4] sm:$0xf]
      %v935 = vld [vmem:[%s2 + $0xa8] sm:$0xf]
      %v936 = vld [vmem:[%s2 + $0xac] sm:$0xf]
      %v937 = vld [vmem:[%s2 + $0xb0] sm:$0xf]
      %v938 = vld [vmem:[%s2 + $0xb4] sm:$0xf]
      %v939 = vld [vmem:[%s2 + $0xb8] sm:$0xf]
      %v940 = vld [vmem:[%s2 + $0xbc] sm:$0xf]
      %v941 = vld [vmem:[%s2 + $0xc0] sm:$0xf]
      %v942 = vld [vmem:[%s2 + $0xc4] sm:$0xf]
      %v943 = vld [vmem:[%s2 + $0xc8] sm:$0xf]
      %v944 = vld [vmem:[%s2 + $0xcc] sm:$0xf]
      %v945 = vld [vmem:[%s2 + $0xd0] sm:$0xf]
      %v946 = vld [vmem:[%s2 + $0xd4] sm:$0xf]
      %v947 = vld [vmem:[%s2 + $0xd8] sm:$0xf]
      %v948 = vld [vmem:[%s2 + $0xdc] sm:$0xf]
      %v949 = vld [vmem:[%s2 + $0xe0] sm:$0xf]
      %v950 = vld [vmem:[%s2 + $0xe4] sm:$0xf]
      %v951 = vld [vmem:[%s2 + $0xe8] sm:$0xf]
      %v952 = vld [vmem:[%s2 + $0xec] sm:$0xf]
      %v953 = vld [vmem:[%s2 + $0xf0] sm:$0xf]
      %v954 = vld [vmem:[%s2 + $0xf4] sm:$0xf]
      %v955 = vld [vmem:[%s2 + $0xf8] sm:$0xf]
      %v956 = vld [vmem:[%s2 + $0xfc] sm:$0xf]
      %v957 = vld [vmem:[%s2 + $0x100] sm:$0xf]
      %v958 = vld [vmem:[%s2 + $0x104] sm:$0xf]
      %v959 = vld [vmem:[%s2 + $0x108] sm:$0xf]
      %v960 = vld [vmem:[%s2 + $0x10c] sm:$0xf]
      %v961 = vld [vmem:[%s2 + $0x110] sm:$0xf]
      %v962 = vld [vmem:[%s2 + $0x114] sm:$0xf]
      %v963 = vld [vmem:[%s2 + $0x118] sm:$0xf]
      %v964 = vld [vmem:[%s2 + $0x11c] sm:$0xf]
      %v965 = vld [vmem:[%s2 + $0x120] sm:$0xf]
      %v966 = vld [vmem:[%s2 + $0x124] sm:$0xf]
      %v967 = vld [vmem:[%s2 + $0x128] sm:$0xf]
      %v968 = vld [vmem:[%s2 + $0x12c] sm:$0xf]
      %v969 = vld [vmem:[%s2 + $0x130] sm:$0xf]
      %v970 = vld [vmem:[%s2 + $0x134] sm:$0xf]
      %v971 = vld [vmem:[%s2 + $0x138] sm:$0xf]
      %v972 = vld [vmem:[%s2 + $0x13c] sm:$0xf]
      %v973 = vld [vmem:[%s2 + $0x140] sm:$0xf]
      %v974 = vld [vmem:[%s2 + $0x144] sm:$0xf]
      %v975 = vld [vmem:[%s2 + $0x148] sm:$0xf]
      %v976 = vld [vmem:[%s2 + $0x14c] sm:$0xf]
      %v977 = vld [vmem:[%s2 + $0x150] sm:$0xf]
      %v978 = vld [vmem:[%s2 + $0x154] sm:$0xf]
      %v979 = vld [vmem:[%s2 + $0x158] sm:$0xf]
      %v980 = vld [vmem:[%s2 + $0x15c] sm:$0xf]
      %v981 = vld [vmem:[%s2 + $0x160] sm:$0xf]
      %v982 = vld [vmem:[%s2 + $0x164] sm:$0xf]
      %v983 = vld [vmem:[%s2 + $0x168] sm:$0xf]
      %v984 = vld [vmem:[%s2 + $0x16c] sm:$0xf]
      %v985 = vld [vmem:[%s2 + $0x170] sm:$0xf]
      %v986 = vld [vmem:[%s2 + $0x174] sm:$0xf]
      %v987 = vld [vmem:[%s2 + $0x178] sm:$0xf]
      %v988 = vld [vmem:[%s2 + $0x17c] sm:$0xf]
      %v989 = vld [vmem:[%s2 + $0x180] sm:$0xf]
      %v990 = vld [vmem:[%s2 + $0x184] sm:$0xf]
      %v991 = vld [vmem:[%s2 + $0x188] sm:$0xf]
      %v992 = vld [vmem:[%s2 + $0x18c] sm:$0xf]
      %v993 = vld [vmem:[%s2 + $0x190] sm:$0xf]
      %v994 = vld [vmem:[%s2 + $0x194] sm:$0xf]
      %v995 = vld [vmem:[%s2 + $0x198] sm:$0xf]
      %v996 = vld [vmem:[%s2 + $0x19c] sm:$0xf]
      %v997 = vld [vmem:[%s2 + $0x1a0] sm:$0xf]
      %v998 = vld [vmem:[%s2 + $0x1a4] sm:$0xf]
      %v999 = vld [vmem:[%s2 + $0x1a8] sm:$0xf]
      %v1000 = vld [vmem:[%s2 + $0x1ac] sm:$0xf]
      %v1001 = vld [vmem:[%s2 + $0x1b0] sm:$0xf]
      %v1002 = vld [vmem:[%s2 + $0x1b4] sm:$0xf]
      %v1003 = vld [vmem:[%s2 + $0x1b8] sm:$0xf]
      %v1004 = vld [vmem:[%s2 + $0x1bc] sm:$0xf]
      %v1005 = vld [vmem:[%s2 + $0x1c0] sm:$0xf]
      %v1006 = vld [vmem:[%s2 + $0x1c4] sm:$0xf]
      %v1007 = vld [vmem:[%s2 + $0x1c8] sm:$0xf]
      %v1008 = vld [vmem:[%s2 + $0x1cc] sm:$0xf]
      %v1009 = vld [vmem:[%s2 + $0x1d0] sm:$0xf]
      %v1010 = vld [vmem:[%s2 + $0x1d4] sm:$0xf]
      %v1011 = vld [vmem:[%s2 + $0x1d8] sm:$0xf]
      %v1012 = vld [vmem:[%s2 + $0x1dc] sm:$0xf]
      %v1013 = vld [vmem:[%s2 + $0x1e0] sm:$0xf]
      %v1014 = vld [vmem:[%s2 + $0x1e4] sm:$0xf]
      %v1015 = vld [vmem:[%s2 + $0x1e8] sm:$0xf]
      %v1016 = vld [vmem:[%s2 + $0x1ec] sm:$0xf]
      %v1017 = vld [vmem:[%s2 + $0x1f0] sm:$0xf]
      %v1018 = vld [vmem:[%s2 + $0x1f4] sm:$0xf]
      %v1019 = vld [vmem:[%s2 + $0x1f8] sm:$0xf]
      %v1020 = vld [vmem:[%s2 + $0x1fc] sm:$0xf]
      %v1021 = vld [vmem:[%s2 + $0x200] sm:$0xf]
      %v1022 = vld [vmem:[%s2 + $0x204] sm:$0xf]
      %v1023 = vld [vmem:[%s2 + $0x208] sm:$0xf]
      %v1024 = vld [vmem:[%s2 + $0x20c] sm:$0xf]
      %v1025 = vld [vmem:[%s2 + $0x210] sm:$0xf]
      %v1026 = vld [vmem:[%s2 + $0x214] sm:$0xf]
      %v1027 = vld [vmem:[%s2 + $0x218] sm:$0xf]
      %v1028 = vld [vmem:[%s2 + $0x21c] sm:$0xf]
      %v1029 = vld [vmem:[%s2 + $0x220] sm:$0xf]
      %v1030 = vld [vmem:[%s2 + $0x224] sm:$0xf]
      %v1031 = vld [vmem:[%s2 + $0x228] sm:$0xf]
      %v1032 = vld [vmem:[%s2 + $0x22c] sm:$0xf]
      %v1033 = vld [vmem:[%s2 + $0x230] sm:$0xf]
      %v1034 = vld [vmem:[%s2 + $0x234] sm:$0xf]
      %v1035 = vld [vmem:[%s2 + $0x238] sm:$0xf]
      %v1036 = vld [vmem:[%s2 + $0x23c] sm:$0xf]
      %v1181 = vunpack.c.l.b16 %v893
      %v1182 = vunpack.c.l.b16 %v894
      %v1183 = vunpack.c.l.b16 %v895
      %v1184 = vunpack.c.l.b16 %v896
      %v1185 = vunpack.c.l.b16 %v897
      %v1186 = vunpack.c.l.b16 %v898
      %v1187 = vunpack.c.l.b16 %v899
      %v1188 = vunpack.c.l.b16 %v900
      %v1189 = vunpack.c.l.b16 %v901
      %v1190 = vunpack.c.l.b16 %v902
      %v1191 = vunpack.c.l.b16 %v903
      %v1192 = vunpack.c.l.b16 %v904
      %v1193 = vunpack.c.l.b16 %v905
      %v1194 = vunpack.c.l.b16 %v906
      %v1195 = vunpack.c.l.b16 %v907
      %v1196 = vunpack.c.l.b16 %v908
      %v1197 = vunpack.c.l.b16 %v909
      %v1198 = vunpack.c.l.b16 %v910
      %v1199 = vunpack.c.l.b16 %v911
      %v1200 = vunpack.c.l.b16 %v912
      %v1201 = vunpack.c.l.b16 %v913
      %v1202 = vunpack.c.l.b16 %v914
      %v1203 = vunpack.c.l.b16 %v915
      %v1204 = vunpack.c.l.b16 %v916
      %v1205 = vunpack.c.l.b16 %v917
      %v1206 = vunpack.c.l.b16 %v918
      %v1207 = vunpack.c.l.b16 %v919
      %v1208 = vunpack.c.l.b16 %v920
      %v1209 = vunpack.c.l.b16 %v921
      %v1210 = vunpack.c.l.b16 %v922
      %v1211 = vunpack.c.l.b16 %v923
      %v1212 = vunpack.c.l.b16 %v924
      %v1213 = vunpack.c.l.b16 %v925
      %v1214 = vunpack.c.l.b16 %v926
      %v1215 = vunpack.c.l.b16 %v927
      %v1216 = vunpack.c.l.b16 %v928
      %v1217 = vunpack.c.l.b16 %v929
      %v1218 = vunpack.c.l.b16 %v930
      %v1219 = vunpack.c.l.b16 %v931
      %v1220 = vunpack.c.l.b16 %v932
      %v1221 = vunpack.c.l.b16 %v933
      %v1222 = vunpack.c.l.b16 %v934
      %v1223 = vunpack.c.l.b16 %v935
      %v1224 = vunpack.c.l.b16 %v936
      %v1225 = vunpack.c.l.b16 %v937
      %v1226 = vunpack.c.l.b16 %v938
      %v1227 = vunpack.c.l.b16 %v939
      %v1228 = vunpack.c.l.b16 %v940
      %v1229 = vunpack.c.l.b16 %v941
      %v1230 = vunpack.c.l.b16 %v942
      %v1231 = vunpack.c.l.b16 %v943
      %v1232 = vunpack.c.l.b16 %v944
      %v1233 = vunpack.c.l.b16 %v945
      %v1234 = vunpack.c.l.b16 %v946
      %v1235 = vunpack.c.l.b16 %v947
      %v1236 = vunpack.c.l.b16 %v948
      %v1237 = vunpack.c.l.b16 %v949
      %v1238 = vunpack.c.l.b16 %v950
      %v1239 = vunpack.c.l.b16 %v951
      %v1240 = vunpack.c.l.b16 %v952
      %v1241 = vunpack.c.l.b16 %v953
      %v1242 = vunpack.c.l.b16 %v954
      %v1243 = vunpack.c.l.b16 %v955
      %v1244 = vunpack.c.l.b16 %v956
      %v1245 = vunpack.c.l.b16 %v957
      %v1246 = vunpack.c.l.b16 %v958
      %v1247 = vunpack.c.l.b16 %v959
      %v1248 = vunpack.c.l.b16 %v960
      %v1249 = vunpack.c.l.b16 %v961
      %v1250 = vunpack.c.l.b16 %v962
      %v1251 = vunpack.c.l.b16 %v963
      %v1252 = vunpack.c.l.b16 %v964
      %v1253 = vunpack.c.l.b16 %v965
      %v1254 = vunpack.c.l.b16 %v966
      %v1255 = vunpack.c.l.b16 %v967
      %v1256 = vunpack.c.l.b16 %v968
      %v1257 = vunpack.c.l.b16 %v969
      %v1258 = vunpack.c.l.b16 %v970
      %v1259 = vunpack.c.l.b16 %v971
      %v1260 = vunpack.c.l.b16 %v972
      %v1261 = vunpack.c.l.b16 %v973
      %v1262 = vunpack.c.l.b16 %v974
      %v1263 = vunpack.c.l.b16 %v975
      %v1264 = vunpack.c.l.b16 %v976
      %v1265 = vunpack.c.l.b16 %v977
      %v1266 = vunpack.c.l.b16 %v978
      %v1267 = vunpack.c.l.b16 %v979
      %v1268 = vunpack.c.l.b16 %v980
      %v1269 = vunpack.c.l.b16 %v981
      %v1270 = vunpack.c.l.b16 %v982
      %v1271 = vunpack.c.l.b16 %v983
      %v1272 = vunpack.c.l.b16 %v984
      %v1273 = vunpack.c.l.b16 %v985
      %v1274 = vunpack.c.l.b16 %v986
      %v1275 = vunpack.c.l.b16 %v987
      %v1276 = vunpack.c.l.b16 %v988
      %v1277 = vunpack.c.l.b16 %v989
      %v1278 = vunpack.c.l.b16 %v990
      %v1279 = vunpack.c.l.b16 %v991
      %v1280 = vunpack.c.l.b16 %v992
      %v1281 = vunpack.c.l.b16 %v993
      %v1282 = vunpack.c.l.b16 %v994
      %v1283 = vunpack.c.l.b16 %v995
      %v1284 = vunpack.c.l.b16 %v996
      %v1285 = vunpack.c.l.b16 %v997
      %v1286 = vunpack.c.l.b16 %v998
      %v1287 = vunpack.c.l.b16 %v999
      %v1288 = vunpack.c.l.b16 %v1000
      %v1289 = vunpack.c.l.b16 %v1001
      %v1290 = vunpack.c.l.b16 %v1002
      %v1291 = vunpack.c.l.b16 %v1003
      %v1292 = vunpack.c.l.b16 %v1004
      %v1293 = vunpack.c.l.b16 %v1005
      %v1294 = vunpack.c.l.b16 %v1006
      %v1295 = vunpack.c.l.b16 %v1007
      %v1296 = vunpack.c.l.b16 %v1008
      %v1297 = vunpack.c.l.b16 %v1009
      %v1298 = vunpack.c.l.b16 %v1010
      %v1299 = vunpack.c.l.b16 %v1011
      %v1300 = vunpack.c.l.b16 %v1012
      %v1301 = vunpack.c.l.b16 %v1013
      %v1302 = vunpack.c.l.b16 %v1014
      %v1303 = vunpack.c.l.b16 %v1015
      %v1304 = vunpack.c.l.b16 %v1016
      %v1305 = vunpack.c.l.b16 %v1017
      %v1306 = vunpack.c.l.b16 %v1018
      %v1307 = vunpack.c.l.b16 %v1019
      %v1308 = vunpack.c.l.b16 %v1020
      %v1309 = vunpack.c.l.b16 %v1021
      %v1310 = vunpack.c.l.b16 %v1022
      %v1311 = vunpack.c.l.b16 %v1023
      %v1312 = vunpack.c.l.b16 %v1024
      %v1313 = vunpack.c.l.b16 %v1025
      %v1314 = vunpack.c.l.b16 %v1026
      %v1315 = vunpack.c.l.b16 %v1027
      %v1316 = vunpack.c.l.b16 %v1028
      %v1317 = vunpack.c.l.b16 %v1029
      %v1318 = vunpack.c.l.b16 %v1030
      %v1319 = vunpack.c.l.b16 %v1031
      %v1320 = vunpack.c.l.b16 %v1032
      %v1321 = vunpack.c.l.b16 %v1033
      %v1322 = vunpack.c.l.b16 %v1034
      %v1323 = vunpack.c.l.b16 %v1035
      %v1324 = vunpack.c.l.b16 %v1036
      %v1325 = vpack.c.b16 %v1182, %v1181
      %v1326 = vpack.c.b16 %v1184, %v1183
      %v1327 = vpack.c.b16 %v1186, %v1185
      %v1328 = vpack.c.b16 %v1188, %v1187
      %v1329 = vpack.c.b16 %v1190, %v1189
      %v1330 = vpack.c.b16 %v1192, %v1191
      %v1331 = vpack.c.b16 %v1194, %v1193
      %v1332 = vpack.c.b16 %v1196, %v1195
      %v1333 = vpack.c.b16 %v1198, %v1197
      %v1334 = vpack.c.b16 %v1200, %v1199
      %v1335 = vpack.c.b16 %v1202, %v1201
      %v1336 = vpack.c.b16 %v1204, %v1203
      %v1337 = vpack.c.b16 %v1206, %v1205
      %v1338 = vpack.c.b16 %v1208, %v1207
      %v1339 = vpack.c.b16 %v1210, %v1209
      %v1340 = vpack.c.b16 %v1212, %v1211
      %v1341 = vpack.c.b16 %v1214, %v1213
      %v1342 = vpack.c.b16 %v1216, %v1215
      %v1343 = vpack.c.b16 %v1218, %v1217
      %v1344 = vpack.c.b16 %v1220, %v1219
      %v1345 = vpack.c.b16 %v1222, %v1221
      %v1346 = vpack.c.b16 %v1224, %v1223
      %v1347 = vpack.c.b16 %v1226, %v1225
      %v1348 = vpack.c.b16 %v1228, %v1227
      %v1349 = vpack.c.b16 %v1230, %v1229
      %v1350 = vpack.c.b16 %v1232, %v1231
      %v1351 = vpack.c.b16 %v1234, %v1233
      %v1352 = vpack.c.b16 %v1236, %v1235
      %v1353 = vpack.c.b16 %v1238, %v1237
      %v1354 = vpack.c.b16 %v1240, %v1239
      %v1355 = vpack.c.b16 %v1242, %v1241
      %v1356 = vpack.c.b16 %v1244, %v1243
      %v1357 = vpack.c.b16 %v1246, %v1245
      %v1358 = vpack.c.b16 %v1248, %v1247
      %v1359 = vpack.c.b16 %v1250, %v1249
      %v1360 = vpack.c.b16 %v1252, %v1251
      %v1361 = vpack.c.b16 %v1254, %v1253
      %v1362 = vpack.c.b16 %v1256, %v1255
      %v1363 = vpack.c.b16 %v1258, %v1257
      %v1364 = vpack.c.b16 %v1260, %v1259
      %v1365 = vpack.c.b16 %v1262, %v1261
      %v1366 = vpack.c.b16 %v1264, %v1263
      %v1367 = vpack.c.b16 %v1266, %v1265
      %v1368 = vpack.c.b16 %v1268, %v1267
      %v1369 = vpack.c.b16 %v1270, %v1269
      %v1370 = vpack.c.b16 %v1272, %v1271
      %v1371 = vpack.c.b16 %v1274, %v1273
      %v1372 = vpack.c.b16 %v1276, %v1275
      %v1373 = vpack.c.b16 %v1278, %v1277
      %v1374 = vpack.c.b16 %v1280, %v1279
      %v1375 = vpack.c.b16 %v1282, %v1281
      %v1376 = vpack.c.b16 %v1284, %v1283
      %v1377 = vpack.c.b16 %v1286, %v1285
      %v1378 = vpack.c.b16 %v1288, %v1287
      %v1379 = vpack.c.b16 %v1290, %v1289
      %v1380 = vpack.c.b16 %v1292, %v1291
      %v1381 = vpack.c.b16 %v1294, %v1293
      %v1382 = vpack.c.b16 %v1296, %v1295
      %v1383 = vpack.c.b16 %v1298, %v1297
      %v1384 = vpack.c.b16 %v1300, %v1299
      %v1385 = vpack.c.b16 %v1302, %v1301
      %v1386 = vpack.c.b16 %v1304, %v1303
      %v1387 = vpack.c.b16 %v1306, %v1305
      %v1388 = vpack.c.b16 %v1308, %v1307
      %v1389 = vpack.c.b16 %v1310, %v1309
      %v1390 = vpack.c.b16 %v1312, %v1311
      %v1391 = vpack.c.b16 %v1314, %v1313
      %v1392 = vpack.c.b16 %v1316, %v1315
      %v1393 = vpack.c.b16 %v1318, %v1317
      %v1394 = vpack.c.b16 %v1320, %v1319
      %v1395 = vpack.c.b16 %v1322, %v1321
      %v1396 = vpack.c.b16 %v1324, %v1323
      %1469 = vmatpush.bf16.msra.mxu0 %v1332
      %1470 = vmatpush.bf16.msra.mxu0 %v1331
      %1471 = vmatpush.bf16.msra.mxu0 %v1330
      %1472 = vmatpush.bf16.msra.mxu0 %v1329
      %1473 = vmatpush.bf16.msra.mxu0 %v1328
      %1474 = vmatpush.bf16.msra.mxu0 %v1327
      %1475 = vmatpush.bf16.msra.mxu0 %v1326
      %1476 = vmatpush.bf16.msra.mxu0 %v1325
      %1477 = vmatmul.bf16.gmra.mxu0 %v749
      %v1478 = vpop.f32.mrf.mxu0
      %v1479 = vadd.f32 0.0, %v1478
      %v1480 = vpop.f32.mrf.mxu0
      %v1481 = vadd.f32 0.0, %v1480
      %1482 = vmatmul.bf16.gmra.mxu0 %v758
      %v1483 = vpop.f32.mrf.mxu0
      %v1484 = vadd.f32 0.0, %v1483
      %v1485 = vpop.f32.mrf.mxu0
      %v1486 = vadd.f32 0.0, %v1485
      %1487 = vmatmul.bf16.gmra.mxu0 %v767
      %v1488 = vpop.f32.mrf.mxu0
      %v1489 = vadd.f32 0.0, %v1488
      %v1490 = vpop.f32.mrf.mxu0
      %v1491 = vadd.f32 0.0, %v1490
      %1492 = vmatmul.bf16.gmra.mxu0 %v776
      %v1493 = vpop.f32.mrf.mxu0
      %v1494 = vadd.f32 0.0, %v1493
      %v1495 = vpop.f32.mrf.mxu0
      %v1496 = vadd.f32 0.0, %v1495
      %1497 = vmatmul.bf16.gmra.mxu0 %v785
      %v1498 = vpop.f32.mrf.mxu0
      %v1499 = vadd.f32 0.0, %v1498
      %v1500 = vpop.f32.mrf.mxu0
      %v1501 = vadd.f32 0.0, %v1500
      %1502 = vmatmul.bf16.gmra.mxu0 %v794
      %v1503 = vpop.f32.mrf.mxu0
      %v1504 = vadd.f32 0.0, %v1503
      %v1505 = vpop.f32.mrf.mxu0
      %v1506 = vadd.f32 0.0, %v1505
      %1507 = vmatmul.bf16.gmra.mxu0 %v803
      %v1508 = vpop.f32.mrf.mxu0
      %v1509 = vadd.f32 0.0, %v1508
      %v1510 = vpop.f32.mrf.mxu0
      %v1511 = vadd.f32 0.0, %v1510
      %1512 = vmatmul.bf16.gmra.mxu0 %v812
      %v1513 = vpop.f32.mrf.mxu0
      %v1514 = vadd.f32 0.0, %v1513
      %v1515 = vpop.f32.mrf.mxu0
      %v1516 = vadd.f32 0.0, %v1515
      %1517 = vmatmul.bf16.gmra.mxu0 %v821
      %v1518 = vpop.f32.mrf.mxu0
      %v1519 = vadd.f32 0.0, %v1518
      %v1520 = vpop.f32.mrf.mxu0
      %v1521 = vadd.f32 0.0, %v1520
      %1522 = vmatmul.bf16.gmra.mxu0 %v830
      %v1523 = vpop.f32.mrf.mxu0
      %v1524 = vadd.f32 0.0, %v1523
      %v1525 = vpop.f32.mrf.mxu0
      %v1526 = vadd.f32 0.0, %v1525
      %1527 = vmatmul.bf16.gmra.mxu0 %v839
      %v1528 = vpop.f32.mrf.mxu0
      %v1529 = vadd.f32 0.0, %v1528
      %v1530 = vpop.f32.mrf.mxu0
      %v1531 = vadd.f32 0.0, %v1530
      %1532 = vmatmul.bf16.gmra.mxu0 %v848
      %v1533 = vpop.f32.mrf.mxu0
      %v1534 = vadd.f32 0.0, %v1533
      %v1535 = vpop.f32.mrf.mxu0
      %v1536 = vadd.f32 0.0, %v1535
      %1537 = vmatmul.bf16.gmra.mxu0 %v857
      %v1538 = vpop.f32.mrf.mxu0
      %v1539 = vadd.f32 0.0, %v1538
      %v1540 = vpop.f32.mrf.mxu0
      %v1541 = vadd.f32 0.0, %v1540
      %1542 = vmatmul.bf16.gmra.mxu0 %v866
      %v1543 = vpop.f32.mrf.mxu0
      %v1544 = vadd.f32 0.0, %v1543
      %v1545 = vpop.f32.mrf.mxu0
      %v1546 = vadd.f32 0.0, %v1545
      %1547 = vmatmul.bf16.gmra.mxu0 %v875
      %v1548 = vpop.f32.mrf.mxu0
      %v1549 = vadd.f32 0.0, %v1548
      %v1550 = vpop.f32.mrf.mxu0
      %v1551 = vadd.f32 0.0, %v1550
      %1552 = vmatmul.bf16.gmra.mxu0 %v884
      %v1553 = vpop.f32.mrf.mxu0
      %v1554 = vadd.f32 0.0, %v1553
      %v1555 = vpop.f32.mrf.mxu0
      %v1556 = vadd.f32 0.0, %v1555
      %1557 = vdwg.mxu0
      %1558 = vmatpush.bf16.msra.mxu0 %v1340
      %1559 = vmatpush.bf16.msra.mxu0 %v1339
      %1560 = vmatpush.bf16.msra.mxu0 %v1338
      %1561 = vmatpush.bf16.msra.mxu0 %v1337
      %1562 = vmatpush.bf16.msra.mxu0 %v1336
      %1563 = vmatpush.bf16.msra.mxu0 %v1335
      %1564 = vmatpush.bf16.msra.mxu0 %v1334
      %1565 = vmatpush.bf16.msra.mxu0 %v1333
      %1566 = vmatmul.bf16.gmra.mxu0 %v750
      %v1567 = vpop.f32.mrf.mxu0
      %v1568 = vadd.f32 %v1479, %v1567
      %v1569 = vpop.f32.mrf.mxu0
      %v1570 = vadd.f32 %v1481, %v1569
      %1571 = vmatmul.bf16.gmra.mxu0 %v759
      %v1572 = vpop.f32.mrf.mxu0
      %v1573 = vadd.f32 %v1484, %v1572
      %v1574 = vpop.f32.mrf.mxu0
      %v1575 = vadd.f32 %v1486, %v1574
      %1576 = vmatmul.bf16.gmra.mxu0 %v768
      %v1577 = vpop.f32.mrf.mxu0
      %v1578 = vadd.f32 %v1489, %v1577
      %v1579 = vpop.f32.mrf.mxu0
      %v1580 = vadd.f32 %v1491, %v1579
      %1581 = vmatmul.bf16.gmra.mxu0 %v777
      %v1582 = vpop.f32.mrf.mxu0
      %v1583 = vadd.f32 %v1494, %v1582
      %v1584 = vpop.f32.mrf.mxu0
      %v1585 = vadd.f32 %v1496, %v1584
      %1586 = vmatmul.bf16.gmra.mxu0 %v786
      %v1587 = vpop.f32.mrf.mxu0
      %v1588 = vadd.f32 %v1499, %v1587
      %v1589 = vpop.f32.mrf.mxu0
      %v1590 = vadd.f32 %v1501, %v1589
      %1591 = vmatmul.bf16.gmra.mxu0 %v795
      %v1592 = vpop.f32.mrf.mxu0
      %v1593 = vadd.f32 %v1504, %v1592
      %v1594 = vpop.f32.mrf.mxu0
      %v1595 = vadd.f32 %v1506, %v1594
      %1596 = vmatmul.bf16.gmra.mxu0 %v804
      %v1597 = vpop.f32.mrf.mxu0
      %v1598 = vadd.f32 %v1509, %v1597
      %v1599 = vpop.f32.mrf.mxu0
      %v1600 = vadd.f32 %v1511, %v1599
      %1601 = vmatmul.bf16.gmra.mxu0 %v813
      %v1602 = vpop.f32.mrf.mxu0
      %v1603 = vadd.f32 %v1514, %v1602
      %v1604 = vpop.f32.mrf.mxu0
      %v1605 = vadd.f32 %v1516, %v1604
      %1606 = vmatmul.bf16.gmra.mxu0 %v822
      %v1607 = vpop.f32.mrf.mxu0
      %v1608 = vadd.f32 %v1519, %v1607
      %v1609 = vpop.f32.mrf.mxu0
      %v1610 = vadd.f32 %v1521, %v1609
      %1611 = vmatmul.bf16.gmra.mxu0 %v831
      %v1612 = vpop.f32.mrf.mxu0
      %v1613 = vadd.f32 %v1524, %v1612
      %v1614 = vpop.f32.mrf.mxu0
      %v1615 = vadd.f32 %v1526, %v1614
      %1616 = vmatmul.bf16.gmra.mxu0 %v840
      %v1617 = vpop.f32.mrf.mxu0
      %v1618 = vadd.f32 %v1529, %v1617
      %v1619 = vpop.f32.mrf.mxu0
      %v1620 = vadd.f32 %v1531, %v1619
      %1621 = vmatmul.bf16.gmra.mxu0 %v849
      %v1622 = vpop.f32.mrf.mxu0
      %v1623 = vadd.f32 %v1534, %v1622
      %v1624 = vpop.f32.mrf.mxu0
      %v1625 = vadd.f32 %v1536, %v1624
      %1626 = vmatmul.bf16.gmra.mxu0 %v858
      %v1627 = vpop.f32.mrf.mxu0
      %v1628 = vadd.f32 %v1539, %v1627
      %v1629 = vpop.f32.mrf.mxu0
      %v1630 = vadd.f32 %v1541, %v1629
      %1631 = vmatmul.bf16.gmra.mxu0 %v867
      %v1632 = vpop.f32.mrf.mxu0
      %v1633 = vadd.f32 %v1544, %v1632
      %v1634 = vpop.f32.mrf.mxu0
      %v1635 = vadd.f32 %v1546, %v1634
      %1636 = vmatmul.bf16.gmra.mxu0 %v876
      %v1637 = vpop.f32.mrf.mxu0
      %v1638 = vadd.f32 %v1549, %v1637
      %v1639 = vpop.f32.mrf.mxu0
      %v1640 = vadd.f32 %v1551, %v1639
      %1641 = vmatmul.bf16.gmra.mxu0 %v885
      %v1642 = vpop.f32.mrf.mxu0
      %v1643 = vadd.f32 %v1554, %v1642
      %v1644 = vpop.f32.mrf.mxu0
      %v1645 = vadd.f32 %v1556, %v1644
      %1646 = vdwg.mxu0
      %1647 = vmatpush.bf16.msra.mxu0 %v1348
      %1648 = vmatpush.bf16.msra.mxu0 %v1347
      %1649 = vmatpush.bf16.msra.mxu0 %v1346
      %1650 = vmatpush.bf16.msra.mxu0 %v1345
      %1651 = vmatpush.bf16.msra.mxu0 %v1344
      %1652 = vmatpush.bf16.msra.mxu0 %v1343
      %1653 = vmatpush.bf16.msra.mxu0 %v1342
      %1654 = vmatpush.bf16.msra.mxu0 %v1341
      %1655 = vmatmul.bf16.gmra.mxu0 %v751
      %v1656 = vpop.f32.mrf.mxu0
      %v1657 = vadd.f32 %v1568, %v1656
      %v1658 = vpop.f32.mrf.mxu0
      %v1659 = vadd.f32 %v1570, %v1658
      %1660 = vmatmul.bf16.gmra.mxu0 %v760
      %v1661 = vpop.f32.mrf.mxu0
      %v1662 = vadd.f32 %v1573, %v1661
      %v1663 = vpop.f32.mrf.mxu0
      %v1664 = vadd.f32 %v1575, %v1663
      %1665 = vmatmul.bf16.gmra.mxu0 %v769
      %v1666 = vpop.f32.mrf.mxu0
      %v1667 = vadd.f32 %v1578, %v1666
      %v1668 = vpop.f32.mrf.mxu0
      %v1669 = vadd.f32 %v1580, %v1668
      %1670 = vmatmul.bf16.gmra.mxu0 %v778
      %v1671 = vpop.f32.mrf.mxu0
      %v1672 = vadd.f32 %v1583, %v1671
      %v1673 = vpop.f32.mrf.mxu0
      %v1674 = vadd.f32 %v1585, %v1673
      %1675 = vmatmul.bf16.gmra.mxu0 %v787
      %v1676 = vpop.f32.mrf.mxu0
      %v1677 = vadd.f32 %v1588, %v1676
      %v1678 = vpop.f32.mrf.mxu0
      %v1679 = vadd.f32 %v1590, %v1678
      %1680 = vmatmul.bf16.gmra.mxu0 %v796
      %v1681 = vpop.f32.mrf.mxu0
      %v1682 = vadd.f32 %v1593, %v1681
      %v1683 = vpop.f32.mrf.mxu0
      %v1684 = vadd.f32 %v1595, %v1683
      %1685 = vmatmul.bf16.gmra.mxu0 %v805
      %v1686 = vpop.f32.mrf.mxu0
      %v1687 = vadd.f32 %v1598, %v1686
      %v1688 = vpop.f32.mrf.mxu0
      %v1689 = vadd.f32 %v1600, %v1688
      %1690 = vmatmul.bf16.gmra.mxu0 %v814
      %v1691 = vpop.f32.mrf.mxu0
      %v1692 = vadd.f32 %v1603, %v1691
      %v1693 = vpop.f32.mrf.mxu0
      %v1694 = vadd.f32 %v1605, %v1693
      %1695 = vmatmul.bf16.gmra.mxu0 %v823
      %v1696 = vpop.f32.mrf.mxu0
      %v1697 = vadd.f32 %v1608, %v1696
      %v1698 = vpop.f32.mrf.mxu0
      %v1699 = vadd.f32 %v1610, %v1698
      %1700 = vmatmul.bf16.gmra.mxu0 %v832
      %v1701 = vpop.f32.mrf.mxu0
      %v1702 = vadd.f32 %v1613, %v1701
      %v1703 = vpop.f32.mrf.mxu0
      %v1704 = vadd.f32 %v1615, %v1703
      %1705 = vmatmul.bf16.gmra.mxu0 %v841
      %v1706 = vpop.f32.mrf.mxu0
      %v1707 = vadd.f32 %v1618, %v1706
      %v1708 = vpop.f32.mrf.mxu0
      %v1709 = vadd.f32 %v1620, %v1708
      %1710 = vmatmul.bf16.gmra.mxu0 %v850
      %v1711 = vpop.f32.mrf.mxu0
      %v1712 = vadd.f32 %v1623, %v1711
      %v1713 = vpop.f32.mrf.mxu0
      %v1714 = vadd.f32 %v1625, %v1713
      %1715 = vmatmul.bf16.gmra.mxu0 %v859
      %v1716 = vpop.f32.mrf.mxu0
      %v1717 = vadd.f32 %v1628, %v1716
      %v1718 = vpop.f32.mrf.mxu0
      %v1719 = vadd.f32 %v1630, %v1718
      %1720 = vmatmul.bf16.gmra.mxu0 %v868
      %v1721 = vpop.f32.mrf.mxu0
      %v1722 = vadd.f32 %v1633, %v1721
      %v1723 = vpop.f32.mrf.mxu0
      %v1724 = vadd.f32 %v1635, %v1723
      %1725 = vmatmul.bf16.gmra.mxu0 %v877
      %v1726 = vpop.f32.mrf.mxu0
      %v1727 = vadd.f32 %v1638, %v1726
      %v1728 = vpop.f32.mrf.mxu0
      %v1729 = vadd.f32 %v1640, %v1728
      %1730 = vmatmul.bf16.gmra.mxu0 %v886
      %v1731 = vpop.f32.mrf.mxu0
      %v1732 = vadd.f32 %v1643, %v1731
      %v1733 = vpop.f32.mrf.mxu0
      %v1734 = vadd.f32 %v1645, %v1733
      %1735 = vdwg.mxu0
      %1736 = vmatpush.bf16.msra.mxu0 %v1356
      %1737 = vmatpush.bf16.msra.mxu0 %v1355
      %1738 = vmatpush.bf16.msra.mxu0 %v1354
      %1739 = vmatpush.bf16.msra.mxu0 %v1353
      %1740 = vmatpush.bf16.msra.mxu0 %v1352
      %1741 = vmatpush.bf16.msra.mxu0 %v1351
      %1742 = vmatpush.bf16.msra.mxu0 %v1350
      %1743 = vmatpush.bf16.msra.mxu0 %v1349
      %1744 = vmatmul.bf16.gmra.mxu0 %v752
      %v1745 = vpop.f32.mrf.mxu0
      %v1746 = vadd.f32 %v1657, %v1745
      %v1747 = vpop.f32.mrf.mxu0
      %v1748 = vadd.f32 %v1659, %v1747
      %1749 = vmatmul.bf16.gmra.mxu0 %v761
      %v1750 = vpop.f32.mrf.mxu0
      %v1751 = vadd.f32 %v1662, %v1750
      %v1752 = vpop.f32.mrf.mxu0
      %v1753 = vadd.f32 %v1664, %v1752
      %1754 = vmatmul.bf16.gmra.mxu0 %v770
      %v1755 = vpop.f32.mrf.mxu0
      %v1756 = vadd.f32 %v1667, %v1755
      %v1757 = vpop.f32.mrf.mxu0
      %v1758 = vadd.f32 %v1669, %v1757
      %1759 = vmatmul.bf16.gmra.mxu0 %v779
      %v1760 = vpop.f32.mrf.mxu0
      %v1761 = vadd.f32 %v1672, %v1760
      %v1762 = vpop.f32.mrf.mxu0
      %v1763 = vadd.f32 %v1674, %v1762
      %1764 = vmatmul.bf16.gmra.mxu0 %v788
      %v1765 = vpop.f32.mrf.mxu0
      %v1766 = vadd.f32 %v1677, %v1765
      %v1767 = vpop.f32.mrf.mxu0
      %v1768 = vadd.f32 %v1679, %v1767
      %1769 = vmatmul.bf16.gmra.mxu0 %v797
      %v1770 = vpop.f32.mrf.mxu0
      %v1771 = vadd.f32 %v1682, %v1770
      %v1772 = vpop.f32.mrf.mxu0
      %v1773 = vadd.f32 %v1684, %v1772
      %1774 = vmatmul.bf16.gmra.mxu0 %v806
      %v1775 = vpop.f32.mrf.mxu0
      %v1776 = vadd.f32 %v1687, %v1775
      %v1777 = vpop.f32.mrf.mxu0
      %v1778 = vadd.f32 %v1689, %v1777
      %1779 = vmatmul.bf16.gmra.mxu0 %v815
      %v1780 = vpop.f32.mrf.mxu0
      %v1781 = vadd.f32 %v1692, %v1780
      %v1782 = vpop.f32.mrf.mxu0
      %v1783 = vadd.f32 %v1694, %v1782
      %1784 = vmatmul.bf16.gmra.mxu0 %v824
      %v1785 = vpop.f32.mrf.mxu0
      %v1786 = vadd.f32 %v1697, %v1785
      %v1787 = vpop.f32.mrf.mxu0
      %v1788 = vadd.f32 %v1699, %v1787
      %1789 = vmatmul.bf16.gmra.mxu0 %v833
      %v1790 = vpop.f32.mrf.mxu0
      %v1791 = vadd.f32 %v1702, %v1790
      %v1792 = vpop.f32.mrf.mxu0
      %v1793 = vadd.f32 %v1704, %v1792
      %1794 = vmatmul.bf16.gmra.mxu0 %v842
      %v1795 = vpop.f32.mrf.mxu0
      %v1796 = vadd.f32 %v1707, %v1795
      %v1797 = vpop.f32.mrf.mxu0
      %v1798 = vadd.f32 %v1709, %v1797
      %1799 = vmatmul.bf16.gmra.mxu0 %v851
      %v1800 = vpop.f32.mrf.mxu0
      %v1801 = vadd.f32 %v1712, %v1800
      %v1802 = vpop.f32.mrf.mxu0
      %v1803 = vadd.f32 %v1714, %v1802
      %1804 = vmatmul.bf16.gmra.mxu0 %v860
      %v1805 = vpop.f32.mrf.mxu0
      %v1806 = vadd.f32 %v1717, %v1805
      %v1807 = vpop.f32.mrf.mxu0
      %v1808 = vadd.f32 %v1719, %v1807
      %1809 = vmatmul.bf16.gmra.mxu0 %v869
      %v1810 = vpop.f32.mrf.mxu0
      %v1811 = vadd.f32 %v1722, %v1810
      %v1812 = vpop.f32.mrf.mxu0
      %v1813 = vadd.f32 %v1724, %v1812
      %1814 = vmatmul.bf16.gmra.mxu0 %v878
      %v1815 = vpop.f32.mrf.mxu0
      %v1816 = vadd.f32 %v1727, %v1815
      %v1817 = vpop.f32.mrf.mxu0
      %v1818 = vadd.f32 %v1729, %v1817
      %1819 = vmatmul.bf16.gmra.mxu0 %v887
      %v1820 = vpop.f32.mrf.mxu0
      %v1821 = vadd.f32 %v1732, %v1820
      %v1822 = vpop.f32.mrf.mxu0
      %v1823 = vadd.f32 %v1734, %v1822
      %1824 = vdwg.mxu0
      %1825 = vmatpush.bf16.msra.mxu0 %v1364
      %1826 = vmatpush.bf16.msra.mxu0 %v1363
      %1827 = vmatpush.bf16.msra.mxu0 %v1362
      %1828 = vmatpush.bf16.msra.mxu0 %v1361
      %1829 = vmatpush.bf16.msra.mxu0 %v1360
      %1830 = vmatpush.bf16.msra.mxu0 %v1359
      %1831 = vmatpush.bf16.msra.mxu0 %v1358
      %1832 = vmatpush.bf16.msra.mxu0 %v1357
      %1833 = vmatmul.bf16.gmra.mxu0 %v753
      %v1834 = vpop.f32.mrf.mxu0
      %v1835 = vadd.f32 %v1746, %v1834
      %v1836 = vpop.f32.mrf.mxu0
      %v1837 = vadd.f32 %v1748, %v1836
      %1838 = vmatmul.bf16.gmra.mxu0 %v762
      %v1839 = vpop.f32.mrf.mxu0
      %v1840 = vadd.f32 %v1751, %v1839
      %v1841 = vpop.f32.mrf.mxu0
      %v1842 = vadd.f32 %v1753, %v1841
      %1843 = vmatmul.bf16.gmra.mxu0 %v771
      %v1844 = vpop.f32.mrf.mxu0
      %v1845 = vadd.f32 %v1756, %v1844
      %v1846 = vpop.f32.mrf.mxu0
      %v1847 = vadd.f32 %v1758, %v1846
      %1848 = vmatmul.bf16.gmra.mxu0 %v780
      %v1849 = vpop.f32.mrf.mxu0
      %v1850 = vadd.f32 %v1761, %v1849
      %v1851 = vpop.f32.mrf.mxu0
      %v1852 = vadd.f32 %v1763, %v1851
      %1853 = vmatmul.bf16.gmra.mxu0 %v789
      %v1854 = vpop.f32.mrf.mxu0
      %v1855 = vadd.f32 %v1766, %v1854
      %v1856 = vpop.f32.mrf.mxu0
      %v1857 = vadd.f32 %v1768, %v1856
      %1858 = vmatmul.bf16.gmra.mxu0 %v798
      %v1859 = vpop.f32.mrf.mxu0
      %v1860 = vadd.f32 %v1771, %v1859
      %v1861 = vpop.f32.mrf.mxu0
      %v1862 = vadd.f32 %v1773, %v1861
      %1863 = vmatmul.bf16.gmra.mxu0 %v807
      %v1864 = vpop.f32.mrf.mxu0
      %v1865 = vadd.f32 %v1776, %v1864
      %v1866 = vpop.f32.mrf.mxu0
      %v1867 = vadd.f32 %v1778, %v1866
      %1868 = vmatmul.bf16.gmra.mxu0 %v816
      %v1869 = vpop.f32.mrf.mxu0
      %v1870 = vadd.f32 %v1781, %v1869
      %v1871 = vpop.f32.mrf.mxu0
      %v1872 = vadd.f32 %v1783, %v1871
      %1873 = vmatmul.bf16.gmra.mxu0 %v825
      %v1874 = vpop.f32.mrf.mxu0
      %v1875 = vadd.f32 %v1786, %v1874
      %v1876 = vpop.f32.mrf.mxu0
      %v1877 = vadd.f32 %v1788, %v1876
      %1878 = vmatmul.bf16.gmra.mxu0 %v834
      %v1879 = vpop.f32.mrf.mxu0
      %v1880 = vadd.f32 %v1791, %v1879
      %v1881 = vpop.f32.mrf.mxu0
      %v1882 = vadd.f32 %v1793, %v1881
      %1883 = vmatmul.bf16.gmra.mxu0 %v843
      %v1884 = vpop.f32.mrf.mxu0
      %v1885 = vadd.f32 %v1796, %v1884
      %v1886 = vpop.f32.mrf.mxu0
      %v1887 = vadd.f32 %v1798, %v1886
      %1888 = vmatmul.bf16.gmra.mxu0 %v852
      %v1889 = vpop.f32.mrf.mxu0
      %v1890 = vadd.f32 %v1801, %v1889
      %v1891 = vpop.f32.mrf.mxu0
      %v1892 = vadd.f32 %v1803, %v1891
      %1893 = vmatmul.bf16.gmra.mxu0 %v861
      %v1894 = vpop.f32.mrf.mxu0
      %v1895 = vadd.f32 %v1806, %v1894
      %v1896 = vpop.f32.mrf.mxu0
      %v1897 = vadd.f32 %v1808, %v1896
      %1898 = vmatmul.bf16.gmra.mxu0 %v870
      %v1899 = vpop.f32.mrf.mxu0
      %v1900 = vadd.f32 %v1811, %v1899
      %v1901 = vpop.f32.mrf.mxu0
      %v1902 = vadd.f32 %v1813, %v1901
      %1903 = vmatmul.bf16.gmra.mxu0 %v879
      %v1904 = vpop.f32.mrf.mxu0
      %v1905 = vadd.f32 %v1816, %v1904
      %v1906 = vpop.f32.mrf.mxu0
      %v1907 = vadd.f32 %v1818, %v1906
      %1908 = vmatmul.bf16.gmra.mxu0 %v888
      %v1909 = vpop.f32.mrf.mxu0
      %v1910 = vadd.f32 %v1821, %v1909
      %v1911 = vpop.f32.mrf.mxu0
      %v1912 = vadd.f32 %v1823, %v1911
      %1913 = vdwg.mxu0
      %1914 = vmatpush.bf16.msra.mxu0 %v1372
      %1915 = vmatpush.bf16.msra.mxu0 %v1371
      %1916 = vmatpush.bf16.msra.mxu0 %v1370
      %1917 = vmatpush.bf16.msra.mxu0 %v1369
      %1918 = vmatpush.bf16.msra.mxu0 %v1368
      %1919 = vmatpush.bf16.msra.mxu0 %v1367
      %1920 = vmatpush.bf16.msra.mxu0 %v1366
      %1921 = vmatpush.bf16.msra.mxu0 %v1365
      %1922 = vmatmul.bf16.gmra.mxu0 %v754
      %v1923 = vpop.f32.mrf.mxu0
      %v1924 = vadd.f32 %v1835, %v1923
      %v1925 = vpop.f32.mrf.mxu0
      %v1926 = vadd.f32 %v1837, %v1925
      %1927 = vmatmul.bf16.gmra.mxu0 %v763
      %v1928 = vpop.f32.mrf.mxu0
      %v1929 = vadd.f32 %v1840, %v1928
      %v1930 = vpop.f32.mrf.mxu0
      %v1931 = vadd.f32 %v1842, %v1930
      %1932 = vmatmul.bf16.gmra.mxu0 %v772
      %v1933 = vpop.f32.mrf.mxu0
      %v1934 = vadd.f32 %v1845, %v1933
      %v1935 = vpop.f32.mrf.mxu0
      %v1936 = vadd.f32 %v1847, %v1935
      %1937 = vmatmul.bf16.gmra.mxu0 %v781
      %v1938 = vpop.f32.mrf.mxu0
      %v1939 = vadd.f32 %v1850, %v1938
      %v1940 = vpop.f32.mrf.mxu0
      %v1941 = vadd.f32 %v1852, %v1940
      %1942 = vmatmul.bf16.gmra.mxu0 %v790
      %v1943 = vpop.f32.mrf.mxu0
      %v1944 = vadd.f32 %v1855, %v1943
      %v1945 = vpop.f32.mrf.mxu0
      %v1946 = vadd.f32 %v1857, %v1945
      %1947 = vmatmul.bf16.gmra.mxu0 %v799
      %v1948 = vpop.f32.mrf.mxu0
      %v1949 = vadd.f32 %v1860, %v1948
      %v1950 = vpop.f32.mrf.mxu0
      %v1951 = vadd.f32 %v1862, %v1950
      %1952 = vmatmul.bf16.gmra.mxu0 %v808
      %v1953 = vpop.f32.mrf.mxu0
      %v1954 = vadd.f32 %v1865, %v1953
      %v1955 = vpop.f32.mrf.mxu0
      %v1956 = vadd.f32 %v1867, %v1955
      %1957 = vmatmul.bf16.gmra.mxu0 %v817
      %v1958 = vpop.f32.mrf.mxu0
      %v1959 = vadd.f32 %v1870, %v1958
      %v1960 = vpop.f32.mrf.mxu0
      %v1961 = vadd.f32 %v1872, %v1960
      %1962 = vmatmul.bf16.gmra.mxu0 %v826
      %v1963 = vpop.f32.mrf.mxu0
      %v1964 = vadd.f32 %v1875, %v1963
      %v1965 = vpop.f32.mrf.mxu0
      %v1966 = vadd.f32 %v1877, %v1965
      %1967 = vmatmul.bf16.gmra.mxu0 %v835
      %v1968 = vpop.f32.mrf.mxu0
      %v1969 = vadd.f32 %v1880, %v1968
      %v1970 = vpop.f32.mrf.mxu0
      %v1971 = vadd.f32 %v1882, %v1970
      %1972 = vmatmul.bf16.gmra.mxu0 %v844
      %v1973 = vpop.f32.mrf.mxu0
      %v1974 = vadd.f32 %v1885, %v1973
      %v1975 = vpop.f32.mrf.mxu0
      %v1976 = vadd.f32 %v1887, %v1975
      %1977 = vmatmul.bf16.gmra.mxu0 %v853
      %v1978 = vpop.f32.mrf.mxu0
      %v1979 = vadd.f32 %v1890, %v1978
      %v1980 = vpop.f32.mrf.mxu0
      %v1981 = vadd.f32 %v1892, %v1980
      %1982 = vmatmul.bf16.gmra.mxu0 %v862
      %v1983 = vpop.f32.mrf.mxu0
      %v1984 = vadd.f32 %v1895, %v1983
      %v1985 = vpop.f32.mrf.mxu0
      %v1986 = vadd.f32 %v1897, %v1985
      %1987 = vmatmul.bf16.gmra.mxu0 %v871
      %v1988 = vpop.f32.mrf.mxu0
      %v1989 = vadd.f32 %v1900, %v1988
      %v1990 = vpop.f32.mrf.mxu0
      %v1991 = vadd.f32 %v1902, %v1990
      %1992 = vmatmul.bf16.gmra.mxu0 %v880
      %v1993 = vpop.f32.mrf.mxu0
      %v1994 = vadd.f32 %v1905, %v1993
      %v1995 = vpop.f32.mrf.mxu0
      %v1996 = vadd.f32 %v1907, %v1995
      %1997 = vmatmul.bf16.gmra.mxu0 %v889
      %v1998 = vpop.f32.mrf.mxu0
      %v1999 = vadd.f32 %v1910, %v1998
      %v2000 = vpop.f32.mrf.mxu0
      %v2001 = vadd.f32 %v1912, %v2000
      %2002 = vdwg.mxu0
      %2003 = vmatpush.bf16.msra.mxu0 %v1380
      %2004 = vmatpush.bf16.msra.mxu0 %v1379
      %2005 = vmatpush.bf16.msra.mxu0 %v1378
      %2006 = vmatpush.bf16.msra.mxu0 %v1377
      %2007 = vmatpush.bf16.msra.mxu0 %v1376
      %2008 = vmatpush.bf16.msra.mxu0 %v1375
      %2009 = vmatpush.bf16.msra.mxu0 %v1374
      %2010 = vmatpush.bf16.msra.mxu0 %v1373
      %2011 = vmatmul.bf16.gmra.mxu0 %v755
      %v2012 = vpop.f32.mrf.mxu0
      %v2013 = vadd.f32 %v1924, %v2012
      %v2014 = vpop.f32.mrf.mxu0
      %v2015 = vadd.f32 %v1926, %v2014
      %2016 = vmatmul.bf16.gmra.mxu0 %v764
      %v2017 = vpop.f32.mrf.mxu0
      %v2018 = vadd.f32 %v1929, %v2017
      %v2019 = vpop.f32.mrf.mxu0
      %v2020 = vadd.f32 %v1931, %v2019
      %2021 = vmatmul.bf16.gmra.mxu0 %v773
      %v2022 = vpop.f32.mrf.mxu0
      %v2023 = vadd.f32 %v1934, %v2022
      %v2024 = vpop.f32.mrf.mxu0
      %v2025 = vadd.f32 %v1936, %v2024
      %2026 = vmatmul.bf16.gmra.mxu0 %v782
      %v2027 = vpop.f32.mrf.mxu0
      %v2028 = vadd.f32 %v1939, %v2027
      %v2029 = vpop.f32.mrf.mxu0
      %v2030 = vadd.f32 %v1941, %v2029
      %2031 = vmatmul.bf16.gmra.mxu0 %v791
      %v2032 = vpop.f32.mrf.mxu0
      %v2033 = vadd.f32 %v1944, %v2032
      %v2034 = vpop.f32.mrf.mxu0
      %v2035 = vadd.f32 %v1946, %v2034
      %2036 = vmatmul.bf16.gmra.mxu0 %v800
      %v2037 = vpop.f32.mrf.mxu0
      %v2038 = vadd.f32 %v1949, %v2037
      %v2039 = vpop.f32.mrf.mxu0
      %v2040 = vadd.f32 %v1951, %v2039
      %2041 = vmatmul.bf16.gmra.mxu0 %v809
      %v2042 = vpop.f32.mrf.mxu0
      %v2043 = vadd.f32 %v1954, %v2042
      %v2044 = vpop.f32.mrf.mxu0
      %v2045 = vadd.f32 %v1956, %v2044
      %2046 = vmatmul.bf16.gmra.mxu0 %v818
      %v2047 = vpop.f32.mrf.mxu0
      %v2048 = vadd.f32 %v1959, %v2047
      %v2049 = vpop.f32.mrf.mxu0
      %v2050 = vadd.f32 %v1961, %v2049
      %2051 = vmatmul.bf16.gmra.mxu0 %v827
      %v2052 = vpop.f32.mrf.mxu0
      %v2053 = vadd.f32 %v1964, %v2052
      %v2054 = vpop.f32.mrf.mxu0
      %v2055 = vadd.f32 %v1966, %v2054
      %2056 = vmatmul.bf16.gmra.mxu0 %v836
      %v2057 = vpop.f32.mrf.mxu0
      %v2058 = vadd.f32 %v1969, %v2057
      %v2059 = vpop.f32.mrf.mxu0
      %v2060 = vadd.f32 %v1971, %v2059
      %2061 = vmatmul.bf16.gmra.mxu0 %v845
      %v2062 = vpop.f32.mrf.mxu0
      %v2063 = vadd.f32 %v1974, %v2062
      %v2064 = vpop.f32.mrf.mxu0
      %v2065 = vadd.f32 %v1976, %v2064
      %2066 = vmatmul.bf16.gmra.mxu0 %v854
      %v2067 = vpop.f32.mrf.mxu0
      %v2068 = vadd.f32 %v1979, %v2067
      %v2069 = vpop.f32.mrf.mxu0
      %v2070 = vadd.f32 %v1981, %v2069
      %2071 = vmatmul.bf16.gmra.mxu0 %v863
      %v2072 = vpop.f32.mrf.mxu0
      %v2073 = vadd.f32 %v1984, %v2072
      %v2074 = vpop.f32.mrf.mxu0
      %v2075 = vadd.f32 %v1986, %v2074
      %2076 = vmatmul.bf16.gmra.mxu0 %v872
      %v2077 = vpop.f32.mrf.mxu0
      %v2078 = vadd.f32 %v1989, %v2077
      %v2079 = vpop.f32.mrf.mxu0
      %v2080 = vadd.f32 %v1991, %v2079
      %2081 = vmatmul.bf16.gmra.mxu0 %v881
      %v2082 = vpop.f32.mrf.mxu0
      %v2083 = vadd.f32 %v1994, %v2082
      %v2084 = vpop.f32.mrf.mxu0
      %v2085 = vadd.f32 %v1996, %v2084
      %2086 = vmatmul.bf16.gmra.mxu0 %v890
      %v2087 = vpop.f32.mrf.mxu0
      %v2088 = vadd.f32 %v1999, %v2087
      %v2089 = vpop.f32.mrf.mxu0
      %v2090 = vadd.f32 %v2001, %v2089
      %2091 = vdwg.mxu0
      %2092 = vmatpush.bf16.msra.mxu0 %v1388
      %2093 = vmatpush.bf16.msra.mxu0 %v1387
      %2094 = vmatpush.bf16.msra.mxu0 %v1386
      %2095 = vmatpush.bf16.msra.mxu0 %v1385
      %2096 = vmatpush.bf16.msra.mxu0 %v1384
      %2097 = vmatpush.bf16.msra.mxu0 %v1383
      %2098 = vmatpush.bf16.msra.mxu0 %v1382
      %2099 = vmatpush.bf16.msra.mxu0 %v1381
      %2100 = vmatmul.bf16.gmra.mxu0 %v756
      %v2101 = vpop.f32.mrf.mxu0
      %v2102 = vadd.f32 %v2013, %v2101
      %v2103 = vpop.f32.mrf.mxu0
      %v2104 = vadd.f32 %v2015, %v2103
      %2105 = vmatmul.bf16.gmra.mxu0 %v765
      %v2106 = vpop.f32.mrf.mxu0
      %v2107 = vadd.f32 %v2018, %v2106
      %v2108 = vpop.f32.mrf.mxu0
      %v2109 = vadd.f32 %v2020, %v2108
      %2110 = vmatmul.bf16.gmra.mxu0 %v774
      %v2111 = vpop.f32.mrf.mxu0
      %v2112 = vadd.f32 %v2023, %v2111
      %v2113 = vpop.f32.mrf.mxu0
      %v2114 = vadd.f32 %v2025, %v2113
      %2115 = vmatmul.bf16.gmra.mxu0 %v783
      %v2116 = vpop.f32.mrf.mxu0
      %v2117 = vadd.f32 %v2028, %v2116
      %v2118 = vpop.f32.mrf.mxu0
      %v2119 = vadd.f32 %v2030, %v2118
      %2120 = vmatmul.bf16.gmra.mxu0 %v792
      %v2121 = vpop.f32.mrf.mxu0
      %v2122 = vadd.f32 %v2033, %v2121
      %v2123 = vpop.f32.mrf.mxu0
      %v2124 = vadd.f32 %v2035, %v2123
      %2125 = vmatmul.bf16.gmra.mxu0 %v801
      %v2126 = vpop.f32.mrf.mxu0
      %v2127 = vadd.f32 %v2038, %v2126
      %v2128 = vpop.f32.mrf.mxu0
      %v2129 = vadd.f32 %v2040, %v2128
      %2130 = vmatmul.bf16.gmra.mxu0 %v810
      %v2131 = vpop.f32.mrf.mxu0
      %v2132 = vadd.f32 %v2043, %v2131
      %v2133 = vpop.f32.mrf.mxu0
      %v2134 = vadd.f32 %v2045, %v2133
      %2135 = vmatmul.bf16.gmra.mxu0 %v819
      %v2136 = vpop.f32.mrf.mxu0
      %v2137 = vadd.f32 %v2048, %v2136
      %v2138 = vpop.f32.mrf.mxu0
      %v2139 = vadd.f32 %v2050, %v2138
      %2140 = vmatmul.bf16.gmra.mxu0 %v828
      %v2141 = vpop.f32.mrf.mxu0
      %v2142 = vadd.f32 %v2053, %v2141
      %v2143 = vpop.f32.mrf.mxu0
      %v2144 = vadd.f32 %v2055, %v2143
      %2145 = vmatmul.bf16.gmra.mxu0 %v837
      %v2146 = vpop.f32.mrf.mxu0
      %v2147 = vadd.f32 %v2058, %v2146
      %v2148 = vpop.f32.mrf.mxu0
      %v2149 = vadd.f32 %v2060, %v2148
      %2150 = vmatmul.bf16.gmra.mxu0 %v846
      %v2151 = vpop.f32.mrf.mxu0
      %v2152 = vadd.f32 %v2063, %v2151
      %v2153 = vpop.f32.mrf.mxu0
      %v2154 = vadd.f32 %v2065, %v2153
      %2155 = vmatmul.bf16.gmra.mxu0 %v855
      %v2156 = vpop.f32.mrf.mxu0
      %v2157 = vadd.f32 %v2068, %v2156
      %v2158 = vpop.f32.mrf.mxu0
      %v2159 = vadd.f32 %v2070, %v2158
      %2160 = vmatmul.bf16.gmra.mxu0 %v864
      %v2161 = vpop.f32.mrf.mxu0
      %v2162 = vadd.f32 %v2073, %v2161
      %v2163 = vpop.f32.mrf.mxu0
      %v2164 = vadd.f32 %v2075, %v2163
      %2165 = vmatmul.bf16.gmra.mxu0 %v873
      %v2166 = vpop.f32.mrf.mxu0
      %v2167 = vadd.f32 %v2078, %v2166
      %v2168 = vpop.f32.mrf.mxu0
      %v2169 = vadd.f32 %v2080, %v2168
      %2170 = vmatmul.bf16.gmra.mxu0 %v882
      %v2171 = vpop.f32.mrf.mxu0
      %v2172 = vadd.f32 %v2083, %v2171
      %v2173 = vpop.f32.mrf.mxu0
      %v2174 = vadd.f32 %v2085, %v2173
      %2175 = vmatmul.bf16.gmra.mxu0 %v891
      %v2176 = vpop.f32.mrf.mxu0
      %v2177 = vadd.f32 %v2088, %v2176
      %v2178 = vpop.f32.mrf.mxu0
      %v2179 = vadd.f32 %v2090, %v2178
      %2180 = vdwg.mxu0
      %2181 = vmatpush.bf16.msra.mxu0 %v1396
      %2182 = vmatpush.bf16.msra.mxu0 %v1395
      %2183 = vmatpush.bf16.msra.mxu0 %v1394
      %2184 = vmatpush.bf16.msra.mxu0 %v1393
      %2185 = vmatpush.bf16.msra.mxu0 %v1392
      %2186 = vmatpush.bf16.msra.mxu0 %v1391
      %2187 = vmatpush.bf16.msra.mxu0 %v1390
      %2188 = vmatpush.bf16.msra.mxu0 %v1389
      %2189 = vmatmul.bf16.gmra.mxu0 %v757
      %v2190 = vpop.f32.mrf.mxu0
      %v2191 = vadd.f32 %v2102, %v2190
      %v2192 = vpop.f32.mrf.mxu0
      %v2193 = vadd.f32 %v2104, %v2192
      %2194 = vmatmul.bf16.gmra.mxu0 %v766
      %v2195 = vpop.f32.mrf.mxu0
      %v2196 = vadd.f32 %v2107, %v2195
      %v2197 = vpop.f32.mrf.mxu0
      %v2198 = vadd.f32 %v2109, %v2197
      %2199 = vmatmul.bf16.gmra.mxu0 %v775
      %v2200 = vpop.f32.mrf.mxu0
      %v2201 = vadd.f32 %v2112, %v2200
      %v2202 = vpop.f32.mrf.mxu0
      %v2203 = vadd.f32 %v2114, %v2202
      %2204 = vmatmul.bf16.gmra.mxu0 %v784
      %v2205 = vpop.f32.mrf.mxu0
      %v2206 = vadd.f32 %v2117, %v2205
      %v2207 = vpop.f32.mrf.mxu0
      %v2208 = vadd.f32 %v2119, %v2207
      %2209 = vmatmul.bf16.gmra.mxu0 %v793
      %v2210 = vpop.f32.mrf.mxu0
      %v2211 = vadd.f32 %v2122, %v2210
      %v2212 = vpop.f32.mrf.mxu0
      %v2213 = vadd.f32 %v2124, %v2212
      %2214 = vmatmul.bf16.gmra.mxu0 %v802
      %v2215 = vpop.f32.mrf.mxu0
      %v2216 = vadd.f32 %v2127, %v2215
      %v2217 = vpop.f32.mrf.mxu0
      %v2218 = vadd.f32 %v2129, %v2217
      %2219 = vmatmul.bf16.gmra.mxu0 %v811
      %v2220 = vpop.f32.mrf.mxu0
      %v2221 = vadd.f32 %v2132, %v2220
      %v2222 = vpop.f32.mrf.mxu0
      %v2223 = vadd.f32 %v2134, %v2222
      %2224 = vmatmul.bf16.gmra.mxu0 %v820
      %v2225 = vpop.f32.mrf.mxu0
      %v2226 = vadd.f32 %v2137, %v2225
      %v2227 = vpop.f32.mrf.mxu0
      %v2228 = vadd.f32 %v2139, %v2227
      %2229 = vmatmul.bf16.gmra.mxu0 %v829
      %v2230 = vpop.f32.mrf.mxu0
      %v2231 = vadd.f32 %v2142, %v2230
      %v2232 = vpop.f32.mrf.mxu0
      %v2233 = vadd.f32 %v2144, %v2232
      %2234 = vmatmul.bf16.gmra.mxu0 %v838
      %v2235 = vpop.f32.mrf.mxu0
      %v2236 = vadd.f32 %v2147, %v2235
      %v2237 = vpop.f32.mrf.mxu0
      %v2238 = vadd.f32 %v2149, %v2237
      %2239 = vmatmul.bf16.gmra.mxu0 %v847
      %v2240 = vpop.f32.mrf.mxu0
      %v2241 = vadd.f32 %v2152, %v2240
      %v2242 = vpop.f32.mrf.mxu0
      %v2243 = vadd.f32 %v2154, %v2242
      %2244 = vmatmul.bf16.gmra.mxu0 %v856
      %v2245 = vpop.f32.mrf.mxu0
      %v2246 = vadd.f32 %v2157, %v2245
      %v2247 = vpop.f32.mrf.mxu0
      %v2248 = vadd.f32 %v2159, %v2247
      %2249 = vmatmul.bf16.gmra.mxu0 %v865
      %v2250 = vpop.f32.mrf.mxu0
      %v2251 = vadd.f32 %v2162, %v2250
      %v2252 = vpop.f32.mrf.mxu0
      %v2253 = vadd.f32 %v2164, %v2252
      %2254 = vmatmul.bf16.gmra.mxu0 %v874
      %v2255 = vpop.f32.mrf.mxu0
      %v2256 = vadd.f32 %v2167, %v2255
      %v2257 = vpop.f32.mrf.mxu0
      %v2258 = vadd.f32 %v2169, %v2257
      %2259 = vmatmul.bf16.gmra.mxu0 %v883
      %v2260 = vpop.f32.mrf.mxu0
      %v2261 = vadd.f32 %v2172, %v2260
      %v2262 = vpop.f32.mrf.mxu0
      %v2263 = vadd.f32 %v2174, %v2262
      %2264 = vmatmul.bf16.gmra.mxu0 %v892
      %v2265 = vpop.f32.mrf.mxu0
      %v2266 = vadd.f32 %v2177, %v2265
      %v2267 = vpop.f32.mrf.mxu0
      %v2268 = vadd.f32 %v2179, %v2267
      %2269 = vdwg.mxu0
      %v2270 = vpack.c.bf16 %v2191, %v2191
      %v2271 = vpack.c.bf16 %v2193, %v2193
      %v2272 = vpack.c.bf16 %v2196, %v2196
      %v2273 = vpack.c.bf16 %v2198, %v2198
      %v2274 = vpack.c.bf16 %v2201, %v2201
      %v2275 = vpack.c.bf16 %v2203, %v2203
      %v2276 = vpack.c.bf16 %v2206, %v2206
      %v2277 = vpack.c.bf16 %v2208, %v2208
      %v2278 = vpack.c.bf16 %v2211, %v2211
      %v2279 = vpack.c.bf16 %v2213, %v2213
      %v2280 = vpack.c.bf16 %v2216, %v2216
      %v2281 = vpack.c.bf16 %v2218, %v2218
      %v2282 = vpack.c.bf16 %v2221, %v2221
      %v2283 = vpack.c.bf16 %v2223, %v2223
      %v2284 = vpack.c.bf16 %v2226, %v2226
      %v2285 = vpack.c.bf16 %v2228, %v2228
      %v2286 = vpack.c.bf16 %v2231, %v2231
      %v2287 = vpack.c.bf16 %v2233, %v2233
      %v2288 = vpack.c.bf16 %v2236, %v2236
      %v2289 = vpack.c.bf16 %v2238, %v2238
      %v2290 = vpack.c.bf16 %v2241, %v2241
      %v2291 = vpack.c.bf16 %v2243, %v2243
      %v2292 = vpack.c.bf16 %v2246, %v2246
      %v2293 = vpack.c.bf16 %v2248, %v2248
      %v2294 = vpack.c.bf16 %v2251, %v2251
      %v2295 = vpack.c.bf16 %v2253, %v2253
      %v2296 = vpack.c.bf16 %v2256, %v2256
      %v2297 = vpack.c.bf16 %v2258, %v2258
      %v2298 = vpack.c.bf16 %v2261, %v2261
      %v2299 = vpack.c.bf16 %v2263, %v2263
      %v2300 = vpack.c.bf16 %v2266, %v2266
      %v2301 = vpack.c.bf16 %v2268, %v2268
      %2302 = vst [vmem:[%s204] sm:$0xf] %v2270
      %2303 = vst [vmem:[%s204 + $0x4] sm:$0xf] %v2271
      %2304 = vst [vmem:[%s204 + $0x8] sm:$0xf] %v2272
      %2305 = vst [vmem:[%s204 + $0xc] sm:$0xf] %v2273
      %2306 = vst [vmem:[%s204 + $0x10] sm:$0xf] %v2274
      %2307 = vst [vmem:[%s204 + $0x14] sm:$0xf] %v2275
      %2308 = vst [vmem:[%s204 + $0x18] sm:$0xf] %v2276
      %2309 = vst [vmem:[%s204 + $0x1c] sm:$0xf] %v2277
      %2310 = vst [vmem:[%s204 + $0x20] sm:$0xf] %v2278
      %2311 = vst [vmem:[%s204 + $0x24] sm:$0xf] %v2279
      %2312 = vst [vmem:[%s204 + $0x28] sm:$0xf] %v2280
      %2313 = vst [vmem:[%s204 + $0x2c] sm:$0xf] %v2281
      %2314 = vst [vmem:[%s204 + $0x30] sm:$0xf] %v2282
      %2315 = vst [vmem:[%s204 + $0x34] sm:$0xf] %v2283
      %2316 = vst [vmem:[%s204 + $0x38] sm:$0xf] %v2284
      %2317 = vst [vmem:[%s204 + $0x3c] sm:$0xf] %v2285
      %2318 = vst [vmem:[%s204 + $0x40] sm:$0xf] %v2286
      %2319 = vst [vmem:[%s204 + $0x44] sm:$0xf] %v2287
      %2320 = vst [vmem:[%s204 + $0x48] sm:$0xf] %v2288
      %2321 = vst [vmem:[%s204 + $0x4c] sm:$0xf] %v2289
      %2322 = vst [vmem:[%s204 + $0x50] sm:$0xf] %v2290
      %2323 = vst [vmem:[%s204 + $0x54] sm:$0xf] %v2291
      %2324 = vst [vmem:[%s204 + $0x58] sm:$0xf] %v2292
      %2325 = vst [vmem:[%s204 + $0x5c] sm:$0xf] %v2293
      %2326 = vst [vmem:[%s204 + $0x60] sm:$0xf] %v2294
      %2327 = vst [vmem:[%s204 + $0x64] sm:$0xf] %v2295
      %2328 = vst [vmem:[%s204 + $0x68] sm:$0xf] %v2296
      %2329 = vst [vmem:[%s204 + $0x6c] sm:$0xf] %v2297
      %2330 = vst [vmem:[%s204 + $0x70] sm:$0xf] %v2298
      %2331 = vst [vmem:[%s204 + $0x74] sm:$0xf] %v2299
      %2332 = vst [vmem:[%s204 + $0x78] sm:$0xf] %v2300
      %2333 = vst [vmem:[%s204 + $0x7c] sm:$0xf] %v2301
      %v2334 = vadd.f32 %v2191, %v2193
      %v2335 = vadd.f32 %v2334, %v2196
      %v2336 = vadd.f32 %v2335, %v2198
      %v2337 = vadd.f32 %v2336, %v2201
      %v2338 = vadd.f32 %v2337, %v2203
      %v2339 = vadd.f32 %v2338, %v2206
      %v2340 = vadd.f32 %v2339, %v2208
      %v2341 = vadd.f32 %v2340, %v2211
      %v2342 = vadd.f32 %v2341, %v2213
      %v2343 = vadd.f32 %v2342, %v2216
      %v2344 = vadd.f32 %v2343, %v2218
      %v2345 = vadd.f32 %v2344, %v2221
      %v2346 = vadd.f32 %v2345, %v2223
      %v2347 = vadd.f32 %v2346, %v2226
      %v2348 = vadd.f32 %v2347, %v2228
      %v2349 = vadd.f32 %v2348, %v2231
      %v2350 = vadd.f32 %v2349, %v2233
      %v2351 = vadd.f32 %v2350, %v2236
      %v2352 = vadd.f32 %v2351, %v2238
      %v2353 = vadd.f32 %v2352, %v2241
      %v2354 = vadd.f32 %v2353, %v2243
      %v2355 = vadd.f32 %v2354, %v2246
      %v2356 = vadd.f32 %v2355, %v2248
      %v2357 = vadd.f32 %v2356, %v2251
      %v2358 = vadd.f32 %v2357, %v2253
      %v2359 = vadd.f32 %v2358, %v2256
      %v2360 = vadd.f32 %v2359, %v2258
      %v2361 = vadd.f32 %v2360, %v2261
      %v2362 = vadd.f32 %v2361, %v2263
      %v2363 = vadd.f32 %v2362, %v2266
      %v2364 = vadd.f32 %v2363, %v2268
      %v2365 = vrot.slane %v2364, 4
      %v2366 = vadd.f32 %v2364, %v2365
      %v2367 = vrot.slane %v2366, 2
      %v2368 = vadd.f32 %v2366, %v2367
      %v2369 = vrot.slane %v2368, 1
      %v2370 = vadd.f32 %v2368, %v2369
      %v2371 = vmul.f32 %v2191, %v2191
      %v2372 = vmul.f32 %v2193, %v2193
      %v2373 = vmul.f32 %v2196, %v2196
      %v2374 = vmul.f32 %v2198, %v2198
      %v2375 = vmul.f32 %v2201, %v2201
      %v2376 = vmul.f32 %v2203, %v2203
      %v2377 = vmul.f32 %v2206, %v2206
      %v2378 = vmul.f32 %v2208, %v2208
      %v2379 = vmul.f32 %v2211, %v2211
      %v2380 = vmul.f32 %v2213, %v2213
      %v2381 = vmul.f32 %v2216, %v2216
      %v2382 = vmul.f32 %v2218, %v2218
      %v2383 = vmul.f32 %v2221, %v2221
      %v2384 = vmul.f32 %v2223, %v2223
      %v2385 = vmul.f32 %v2226, %v2226
      %v2386 = vmul.f32 %v2228, %v2228
      %v2387 = vmul.f32 %v2231, %v2231
      %v2388 = vmul.f32 %v2233, %v2233
      %v2389 = vmul.f32 %v2236, %v2236
      %v2390 = vmul.f32 %v2238, %v2238
      %v2391 = vmul.f32 %v2241, %v2241
      %v2392 = vmul.f32 %v2243, %v2243
      %v2393 = vmul.f32 %v2246, %v2246
      %v2394 = vmul.f32 %v2248, %v2248
      %v2395 = vmul.f32 %v2251, %v2251
      %v2396 = vmul.f32 %v2253, %v2253
      %v2397 = vmul.f32 %v2256, %v2256
      %v2398 = vmul.f32 %v2258, %v2258
      %v2399 = vmul.f32 %v2261, %v2261
      %v2400 = vmul.f32 %v2263, %v2263
      %v2401 = vmul.f32 %v2266, %v2266
      %v2402 = vmul.f32 %v2268, %v2268
      %v2403 = vadd.f32 %v2371, %v2372
      %v2404 = vadd.f32 %v2403, %v2373
      %v2405 = vadd.f32 %v2404, %v2374
      %v2406 = vadd.f32 %v2405, %v2375
      %v2407 = vadd.f32 %v2406, %v2376
      %v2408 = vadd.f32 %v2407, %v2377
      %v2409 = vadd.f32 %v2408, %v2378
      %v2410 = vadd.f32 %v2409, %v2379
      %v2411 = vadd.f32 %v2410, %v2380
      %v2412 = vadd.f32 %v2411, %v2381
      %v2413 = vadd.f32 %v2412, %v2382
      %v2414 = vadd.f32 %v2413, %v2383
      %v2415 = vadd.f32 %v2414, %v2384
      %v2416 = vadd.f32 %v2415, %v2385
      %v2417 = vadd.f32 %v2416, %v2386
      %v2418 = vadd.f32 %v2417, %v2387
      %v2419 = vadd.f32 %v2418, %v2388
      %v2420 = vadd.f32 %v2419, %v2389
      %v2421 = vadd.f32 %v2420, %v2390
      %v2422 = vadd.f32 %v2421, %v2391
      %v2423 = vadd.f32 %v2422, %v2392
      %v2424 = vadd.f32 %v2423, %v2393
      %v2425 = vadd.f32 %v2424, %v2394
      %v2426 = vadd.f32 %v2425, %v2395
      %v2427 = vadd.f32 %v2426, %v2396
      %v2428 = vadd.f32 %v2427, %v2397
      %v2429 = vadd.f32 %v2428, %v2398
      %v2430 = vadd.f32 %v2429, %v2399
      %v2431 = vadd.f32 %v2430, %v2400
      %v2432 = vadd.f32 %v2431, %v2401
      %v2433 = vadd.f32 %v2432, %v2402
      %v2434 = vrot.slane %v2433, 4
      %v2435 = vadd.f32 %v2433, %v2434
      %v2436 = vrot.slane %v2435, 2
      %v2437 = vadd.f32 %v2435, %v2436
      %v2438 = vrot.slane %v2437, 1
      %v2439 = vadd.f32 %v2437, %v2438
      %vm2440 = vcmask 1040384
      %v2441 = vsel %vm2440, %v2370, %v2439
      %2442 = vst [vmem:[%s208] sm:$0x3] %v2441
      %p2443 = scmp.lt.s32.totalorder %s16, 1
      %s2444 = scalar_select %p2443, %s16, 1
      %s2445 = smul.addr %s2444, 32
      %s2446 = smul.addr %s2445, 4
      %s2447 = scalar_lea.vmem %s3, %s2446
      %p2448 = scmp.lt.s32.totalorder %s16, 1
      %s2449 = scalar_select %p2448, %s16, 1
      %s2450 = smul.addr %s2449, 2
      %s2451 = scalar_lea.vmem %s4, %s2450
      // Predicated region
      $region33: #{basic_conv2d_block.4} parent=31 // pred_check
        %p2452 = pneg %p102
      $region34: #{basic_conv2d_block.4} parent=31 // pred_check_branch
        %2454 = sbr.rel (%p2452) target = $region36
      $region35: #{basic_conv2d_block.4} parent=31 // pred_region
        _
      $region36: #{basic_conv2d_block.4} parent=31 // pred_fallthru
        _
      // Predicated region
      $region37: #{basic_conv2d_block.4} parent=31 // pred_check
        %p2455 = pneg %p128
      $region38: #{basic_conv2d_block.4} parent=31 // pred_check_branch
        %2457 = sbr.rel (%p2455) target = $region40
      $region39: #{basic_conv2d_block.4} parent=31 // pred_region
        _
      $region40: #{basic_conv2d_block.4} parent=31 // pred_fallthru
        _
    $region32: #{basic_conv2d_block.4} parent=5 // pred_fallthru
      _
    %p2458 = scmp.le.s32.totalorder 2, %s11
    // Predicated region
    $region41: #{basic_conv2d_block.4} parent=5 // pred_check
      %p2459 = pneg %p2458
    $region42: #{basic_conv2d_block.4} parent=5 // pred_check_branch
      %2461 = sbr.rel (%p2459) target = $region44
    $region43: #{basic_conv2d_block.4} parent=5 // pred_region
      %s2462 = ssub.s32 %s11, 2
      // Predicated region
      $region45: #{basic_conv2d_block.4} parent=43 // pred_check
        %p2463 = pneg %p108
      $region46: #{basic_conv2d_block.4} parent=43 // pred_check_branch
        %2465 = sbr.rel (%p2463) target = $region48
      $region47: #{basic_conv2d_block.4} parent=43 // pred_region
        %p2466 = scmp.lt.s32.totalorder %s17, 1
        %s2467 = scalar_select %p2466, %s17, 1
        %s2468 = smul.addr %s2467, 32
        %s2469 = smul.addr %s2468, 4
        %s2470 = scalar_lea.vmem %s3, %s2469
      $region48: #{basic_conv2d_block.4} parent=43 // pred_fallthru
        _
      // Predicated region
      $region49: #{basic_conv2d_block.4} parent=43 // pred_check
        %p2471 = pneg %p134
      $region50: #{basic_conv2d_block.4} parent=43 // pred_check_branch
        %2473 = sbr.rel (%p2471) target = $region52
      $region51: #{basic_conv2d_block.4} parent=43 // pred_region
        %p2474 = scmp.lt.s32.totalorder %s17, 1
        %s2475 = scalar_select %p2474, %s17, 1
        %s2476 = smul.addr %s2475, 2
        %s2477 = scalar_lea.vmem %s4, %s2476
      $region52: #{basic_conv2d_block.4} parent=43 // pred_fallthru
        _
    $region44: #{basic_conv2d_block.4} parent=5 // pred_fallthru
      _
  $region6: #{basic_conv2d_block.4} parent=0 // loop_footer
    %s15 = sadd.s32 1, %s11
  $region7: #{basic_conv2d_block.4} parent=0 // loop_footer_branch
    %10 = sbr.rel target = $region3
  $region8: #{basic_conv2d_block.4} parent=0 // loop_exit
    _

</llo_original>
